<compile_context>
chip_gen: v5e
topology: v5e:2x2
jax: 0.10.0
libtpu: 0.0.40
codegen_flags: <defaults>
</compile_context>

<pallas_src>
import jax
import jax.numpy as jnp
import numpy as np
from jax.experimental import pallas as pl
from jax.experimental.pallas import tpu as pltpu


# ----------------------------- Pallas kernels -----------------------------

def conv_pool_kernel(p00_ref, p01_ref, p10_ref, p11_ref, w_ref, b_ref, o_ref):
    """Fused conv (as im2col matmul with packed [real|imag] weight) + bias +
    relu + 2x2 maxpool.

    Each p??_ref holds the im2col patches of one position of the 2x2 pooling
    window, with identical row order (n, h_out, w_out).  The pool is an
    elementwise max of the four matmul results; relu/max commute and the bias
    is shared, so bias+relu are applied once after the max.
    """
    w = w_ref[...]

    def mm(p_ref):
        return jnp.dot(p_ref[...], w, preferred_element_type=jnp.float32)

    m = jnp.maximum(jnp.maximum(mm(p00_ref), mm(p01_ref)),
                    jnp.maximum(mm(p10_ref), mm(p11_ref)))
    o_ref[...] = jnp.maximum(m + b_ref[...], 0.0).astype(o_ref.dtype)


def fc_fused_kernel(x_ref, w1_ref, b1_ref, w2_ref, b2_ref, o_ref):
    """Fused complex fc1 (packed [rf|jf] output) + relu + fc2."""
    z = jnp.dot(x_ref[...], w1_ref[...],
                preferred_element_type=jnp.float32) + b1_ref[...]
    z = jnp.maximum(z, 0.0).astype(w2_ref.dtype)
    o_ref[...] = (jnp.dot(z, w2_ref[...], preferred_element_type=jnp.float32)
                  + b2_ref[...])


# ----------------------------- Pallas wrappers -----------------------------

def conv_relu_pool(pat, w, b):
    """pat: (N, H, W, K) im2col patches (bf16).  w: (K, C2) packed weight,
    b: (1, C2) f32 bias.  Returns (N*(H//2)*(W//2), C2) bf16, rows in
    (n, h_out, w_out) order, channels packed [real | imag]."""
    N, H, W, K = pat.shape
    Ho, Wo = H // 2, W // 2
    M = N * Ho * Wo
    C2 = w.shape[1]

    # One row-aligned patch matrix per 2x2 pool-window position (XLA strided
    # slices; cheap layout glue).
    ps = [pat[:, ph::2, pw::2, :].reshape(M, K)
          for ph in (0, 1) for pw in (0, 1)]

    # 2-step parallel grid: one step per TensorCore on v7x; near-free on the
    # single-TC v5e/v6e.  Everything fits VMEM trivially at these sizes.
    if M % 16 == 0:
        tm, grid = M // 2, (2,)
    else:
        tm, grid = M, (1,)

    lhs_spec = pl.BlockSpec((tm, K), lambda i: (i, 0))
    return pl.pallas_call(
        conv_pool_kernel,
        out_shape=jax.ShapeDtypeStruct((M, C2), jnp.bfloat16),
        grid=grid,
        in_specs=[lhs_spec] * 4 + [
            pl.BlockSpec((K, C2), lambda i: (0, 0)),
            pl.BlockSpec((1, C2), lambda i: (0, 0)),
        ],
        out_specs=pl.BlockSpec((tm, C2), lambda i: (i, 0)),
        compiler_params=pltpu.CompilerParams(
            dimension_semantics=("parallel",) * len(grid)),
    )(*ps, w, b)


def fc_fused(x, w1, b1, w2, b2):
    """relu(x @ w1 + b1) @ w2 + b2 in a single kernel."""
    N, K = x.shape
    Hh = w1.shape[1]
    Co = w2.shape[1]
    return pl.pallas_call(
        fc_fused_kernel,
        out_shape=jax.ShapeDtypeStruct((N, Co), jnp.float32),
        grid=(1,),
        in_specs=[
            pl.BlockSpec((N, K), lambda i: (0, 0)),
            pl.BlockSpec((K, Hh), lambda i: (0, 0)),
            pl.BlockSpec((1, Hh), lambda i: (0, 0)),
            pl.BlockSpec((Hh, Co), lambda i: (0, 0)),
            pl.BlockSpec((1, Co), lambda i: (0, 0)),
        ],
        out_specs=pl.BlockSpec((N, Co), lambda i: (0, 0)),
    )(x, w1, b1, w2, b2)


# ----------------------------- JAX glue -----------------------------

def im2col_3x3(x):
    """(N,H,W,C) -> (N,H,W,9*C), padding=1, column order (kh, kw, cin)."""
    N, H, W, C = x.shape
    xp = jnp.pad(x, ((0, 0), (1, 1), (1, 1), (0, 0)))
    cols = [xp[:, kh:kh + H, kw:kw + W, :] for kh in range(3) for kw in range(3)]
    return jnp.concatenate(cols, axis=-1)


def prepare_params(p, mm_dtype=jnp.bfloat16):
    """One-time packing of the complex weights (hoisted out of the jit)."""
    f32 = jnp.float32

    def conv_w_to_mat(w):
        # Torch conv weight (Cout,Cin,KH,KW) -> (KH*KW*Cin, Cout), rows (kh,kw,cin).
        return jnp.transpose(w, (2, 3, 1, 0)).reshape(-1, w.shape[0])

    # conv1: both branches see the same (real) input ->
    #   real = relu(x @ (Wr-Wi) + (br-bi)),  imag = relu(x @ (Wr+Wi) + (br+bi))
    w1r, w1i = conv_w_to_mat(p['conv1_r_w']), conv_w_to_mat(p['conv1_i_w'])
    conv1_w = jnp.concatenate([w1r - w1i, w1r + w1i], axis=1)
    conv1_b = jnp.concatenate([p['conv1_r_b'] - p['conv1_i_b'],
                               p['conv1_r_b'] + p['conv1_i_b']])[None, :]

    # conv2: input channels packed [real | imag]; output packed [real | imag].
    co2, ci2, kh, kw = p['conv2_r_w'].shape
    a_r = conv_w_to_mat(p['conv2_r_w']).reshape(kh * kw, ci2, co2)
    a_i = conv_w_to_mat(p['conv2_i_w']).reshape(kh * kw, ci2, co2)
    conv2_w = jnp.concatenate([
        jnp.concatenate([a_r, a_i], axis=-1),    # rows for real input channels
        jnp.concatenate([-a_i, a_r], axis=-1),   # rows for imag input channels
    ], axis=1).reshape(kh * kw * 2 * ci2, 2 * co2)
    conv2_b = jnp.concatenate([p['conv2_r_b'] - p['conv2_i_b'],
                               p['conv2_r_b'] + p['conv2_i_b']])[None, :]

    # fc1: input is the flattened packed (h, w, [r|i]) feature map.
    hid, fin = p['fc1_r_w'].shape            # (32, out*out*32)
    hw = fin // co2
    w_r = p['fc1_r_w'].T.reshape(hw, co2, hid)
    w_i = p['fc1_i_w'].T.reshape(hw, co2, hid)
    fc1_w = jnp.concatenate([
        jnp.concatenate([w_r, w_i], axis=-1),
        jnp.concatenate([-w_i, w_r], axis=-1),
    ], axis=1).reshape(hw * 2 * co2, 2 * hid)
    fc1_b = jnp.concatenate([p['fc1_r_b'] - p['fc1_i_b'],
                             p['fc1_r_b'] + p['fc1_i_b']])[None, :]

    fc2_w = p['fc2_w'].T
    fc2_b = p['fc2_b'][None, :]

    return {
        'conv1_w': conv1_w.astype(mm_dtype), 'conv1_b': conv1_b.astype(f32),
        'conv2_w': conv2_w.astype(mm_dtype), 'conv2_b': conv2_b.astype(f32),
        'fc1_w': fc1_w.astype(mm_dtype),     'fc1_b': fc1_b.astype(f32),
        'fc2_w': fc2_w.astype(mm_dtype),     'fc2_b': fc2_b.astype(f32),
    }


def complex_cnn_forward(x_nchw, pp):
    x = jnp.transpose(x_nchw, (0, 2, 3, 1)).astype(jnp.bfloat16)   # NCHW -> NHWC
    N, H, W, _ = x.shape

    # conv block 1: conv + bias + relu + 2x2 pool, one kernel, one fused weight.
    y1 = conv_relu_pool(im2col_3x3(x), pp['conv1_w'], pp['conv1_b'])
    y1 = y1.reshape(N, H // 2, W // 2, pp['conv1_w'].shape[1])      # packed [r|i]

    # conv block 2 on the packed feature map.
    y2 = conv_relu_pool(im2col_3x3(y1), pp['conv2_w'], pp['conv2_b'])

    # fc1 (complex, packed) + relu + fc2, one kernel.  Flatten is (h, w, [r|i]).
    x_fc = y2.reshape(N, -1)
    return fc_fused(x_fc, pp['fc1_w'], pp['fc1_b'], pp['fc2_w'], pp['fc2_b'])


# ----------------------------- pure-JAX reference -----------------------------

def reference_forward(x_nchw, p):
    x = jnp.transpose(x_nchw, (0, 2, 3, 1))

    def conv(x, w, b):
        wm = jnp.transpose(w, (2, 3, 1, 0))  # HWIO
        y = jax.lax.conv_general_dilated(
            x, wm, (1, 1), ((1, 1), (1, 1)),
            dimension_numbers=('NHWC', 'HWIO', 'NHWC'),
            precision=jax.lax.Precision.HIGHEST)
        return y + b

    def pool(x):
        N, H, W, C = x.shape
        return jnp.max(x.reshape(N, H // 2, 2, W // 2, 2, C), axis=(2, 4))

    def lin(x, w, b):
        return jnp.dot(x, w.T, precision=jax.lax.Precision.HIGHEST) + b

    c1r = conv(x, p['conv1_r_w'], p['conv1_r_b'])
    c1i = conv(x, p['conv1_i_w'], p['conv1_i_b'])
    xr = pool(jax.nn.relu(c1r - c1i))
    xi = pool(jax.nn.relu(c1r + c1i))
    r2 = jax.nn.relu(conv(xr, p['conv2_r_w'], p['conv2_r_b'])
                     - conv(xi, p['conv2_i_w'], p['conv2_i_b']))
    i2 = jax.nn.relu(conv(xi, p['conv2_r_w'], p['conv2_r_b'])
                     + conv(xr, p['conv2_i_w'], p['conv2_i_b']))
    r2 = pool(r2)
    i2 = pool(i2)
    fr = r2.reshape(r2.shape[0], -1)
    fi = i2.reshape(i2.shape[0], -1)
    rf = jax.nn.relu(lin(fr, p['fc1_r_w'], p['fc1_r_b'])
                     - lin(fi, p['fc1_i_w'], p['fc1_i_b']))
    jf = jax.nn.relu(lin(fi, p['fc1_r_w'], p['fc1_r_b'])
                     + lin(fr, p['fc1_i_w'], p['fc1_i_b']))
    comb = jnp.concatenate([rf, jf], axis=1)
    return lin(comb, p['fc2_w'], p['fc2_b'])


# ----------------------------- main -----------------------------

if __name__ == "__main__":
    grayscale = False                       # -> in_dim=3, out_size=8
    in_dim = 1 if grayscale else 3
    out_size = 7 if grayscale else 8
    H = W = out_size * 4                    # two 2x2 pools -> out_size
    N = 2

    key = jax.random.PRNGKey(0)
    ks = jax.random.split(key, 16)

    def init(k, shape, scale=0.05):
        return (scale * jax.random.normal(k, shape)).astype(jnp.float32)

    params = {
        'conv1_r_w': init(ks[0], (16, in_dim, 3, 3)), 'conv1_r_b': init(ks[1], (16,)),
        'conv1_i_w': init(ks[2], (16, in_dim, 3, 3)), 'conv1_i_b': init(ks[3], (16,)),
        'conv2_r_w': init(ks[4], (32, 16, 3, 3)),     'conv2_r_b': init(ks[5], (32,)),
        'conv2_i_w': init(ks[6], (32, 16, 3, 3)),     'conv2_i_b': init(ks[7], (32,)),
        'fc1_r_w': init(ks[8], (32, out_size * out_size * 32)),
        'fc1_r_b': init(ks[9], (32,)),
        'fc1_i_w': init(ks[10], (32, out_size * out_size * 32)),
        'fc1_i_b': init(ks[11], (32,)),
        'fc2_w': init(ks[12], (10, 64)), 'fc2_b': init(ks[13], (10,)),
    }
    x = jax.random.normal(ks[14], (N, in_dim, H, W), jnp.float32)

    # One-time weight packing, outside the jitted hot path.
    pp = prepare_params(params)

    fwd = jax.jit(complex_cnn_forward)
    out = jax.block_until_ready(fwd(x, pp))
    assert out.shape == (N, 10), out.shape

    ref = reference_forward(x, params)
    np.testing.assert_allclose(np.asarray(out), np.asarray(ref),
                               rtol=2e-2, atol=2e-2)
    print("KERNEL_OK")
</pallas_src>

<mosaic_0001>
module attributes {stable_mosaic.version = 11 : i64} {
  func.func @conv_pool_kernel(%arg0: i32, %arg1: memref<256x27xbf16, #tpu.memory_space<vmem>>, %arg2: memref<256x27xbf16, #tpu.memory_space<vmem>>, %arg3: memref<256x27xbf16, #tpu.memory_space<vmem>>, %arg4: memref<256x27xbf16, #tpu.memory_space<vmem>>, %arg5: memref<27x32xbf16, #tpu.memory_space<vmem>>, %arg6: memref<1x32xf32, #tpu.memory_space<vmem>>, %arg7: memref<256x32xbf16, #tpu.memory_space<vmem>>) attributes {dimension_semantics = [#tpu.dimension_semantics<parallel>], iteration_bounds = array<i64: 2>, scalar_prefetch = 0 : i64, scratch_operands = 0 : i64, tpu.core_type = #tpu.core_type<tc>, window_params = [{transform_indices = @transform_0, window_bounds = array<i64: 256, 27>}, {transform_indices = @transform_1, window_bounds = array<i64: 256, 27>}, {transform_indices = @transform_2, window_bounds = array<i64: 256, 27>}, {transform_indices = @transform_3, window_bounds = array<i64: 256, 27>}, {pipeline_mode = #tpu.pipeline_mode<synchronous>, transform_indices = @transform_4, window_bounds = array<i64: 27, 32>}, {pipeline_mode = #tpu.pipeline_mode<synchronous>, transform_indices = @transform_5, window_bounds = array<i64: 1, 32>}, {transform_indices = @transform_6, window_bounds = array<i64: 256, 32>}]} {
    %c0 = arith.constant 0 : index
    %c0_0 = arith.constant 0 : index
    %0 = vector.load %arg5[%c0, %c0_0] : memref<27x32xbf16, #tpu.memory_space<vmem>>, vector<27x32xbf16>
    %c0_1 = arith.constant 0 : index
    %c0_2 = arith.constant 0 : index
    %1 = vector.load %arg1[%c0_1, %c0_2] : memref<256x27xbf16, #tpu.memory_space<vmem>>, vector<256x27xbf16>
    %cst = arith.constant dense<0.000000e+00> : vector<256x32xf32>
    %2 = tpu.matmul %1, %0, %cst {dimension_numbers = #tpu.dot_dimension_numbers<[1], [0], [0], [1], [0, 0, 1, 1], [], []>} : vector<256x27xbf16>, vector<27x32xbf16>, vector<256x32xf32> -> vector<256x32xf32>
    %c0_3 = arith.constant 0 : index
    %c0_4 = arith.constant 0 : index
    %3 = vector.load %arg2[%c0_3, %c0_4] : memref<256x27xbf16, #tpu.memory_space<vmem>>, vector<256x27xbf16>
    %cst_5 = arith.constant dense<0.000000e+00> : vector<256x32xf32>
    %4 = tpu.matmul %3, %0, %cst_5 {dimension_numbers = #tpu.dot_dimension_numbers<[1], [0], [0], [1], [0, 0, 1, 1], [], []>} : vector<256x27xbf16>, vector<27x32xbf16>, vector<256x32xf32> -> vector<256x32xf32>
    %5 = arith.maximumf %2, %4 : vector<256x32xf32>
    %c0_6 = arith.constant 0 : index
    %c0_7 = arith.constant 0 : index
    %6 = vector.load %arg3[%c0_6, %c0_7] : memref<256x27xbf16, #tpu.memory_space<vmem>>, vector<256x27xbf16>
    %cst_8 = arith.constant dense<0.000000e+00> : vector<256x32xf32>
    %7 = tpu.matmul %6, %0, %cst_8 {dimension_numbers = #tpu.dot_dimension_numbers<[1], [0], [0], [1], [0, 0, 1, 1], [], []>} : vector<256x27xbf16>, vector<27x32xbf16>, vector<256x32xf32> -> vector<256x32xf32>
    %c0_9 = arith.constant 0 : index
    %c0_10 = arith.constant 0 : index
    %8 = vector.load %arg4[%c0_9, %c0_10] : memref<256x27xbf16, #tpu.memory_space<vmem>>, vector<256x27xbf16>
    %cst_11 = arith.constant dense<0.000000e+00> : vector<256x32xf32>
    %9 = tpu.matmul %8, %0, %cst_11 {dimension_numbers = #tpu.dot_dimension_numbers<[1], [0], [0], [1], [0, 0, 1, 1], [], []>} : vector<256x27xbf16>, vector<27x32xbf16>, vector<256x32xf32> -> vector<256x32xf32>
    %10 = arith.maximumf %7, %9 : vector<256x32xf32>
    %11 = arith.maximumf %5, %10 : vector<256x32xf32>
    %c0_12 = arith.constant 0 : index
    %c0_13 = arith.constant 0 : index
    %12 = vector.load %arg6[%c0_12, %c0_13] : memref<1x32xf32, #tpu.memory_space<vmem>>, vector<1x32xf32>
    %13 = vector.broadcast %12 : vector<1x32xf32> to vector<256x32xf32>
    %14 = arith.addf %11, %13 : vector<256x32xf32>
    %cst_14 = arith.constant 0.000000e+00 : f32
    %15 = vector.broadcast %cst_14 : f32 to vector<256x32xf32>
    %16 = arith.maximumf %14, %15 : vector<256x32xf32>
    %17 = arith.truncf %16 : vector<256x32xf32> to vector<256x32xbf16>
    %c0_15 = arith.constant 0 : index
    %c0_16 = arith.constant 0 : index
    %18 = vector.load %arg7[%c0_15, %c0_16] : memref<256x32xbf16, #tpu.memory_space<vmem>>, vector<256x32xbf16>
    tpu.vector_store %arg7[%c0_15, %c0_16], %17 {strides = array<i32>} : memref<256x32xbf16, #tpu.memory_space<vmem>>, vector<256x32xbf16>,
    return
  }
  func.func @transform_0(%arg0: i32) -> (i32, i32) {
    %c0_i32 = arith.constant 0 : i32
    %c0_i32_0 = arith.constant 0 : i32
    return %arg0, %c0_i32 : i32, i32
  }
  func.func @transform_1(%arg0: i32) -> (i32, i32) {
    %c0_i32 = arith.constant 0 : i32
    %c0_i32_0 = arith.constant 0 : i32
    return %arg0, %c0_i32 : i32, i32
  }
  func.func @transform_2(%arg0: i32) -> (i32, i32) {
    %c0_i32 = arith.constant 0 : i32
    %c0_i32_0 = arith.constant 0 : i32
    return %arg0, %c0_i32 : i32, i32
  }
  func.func @transform_3(%arg0: i32) -> (i32, i32) {
    %c0_i32 = arith.constant 0 : i32
    %c0_i32_0 = arith.constant 0 : i32
    return %arg0, %c0_i32 : i32, i32
  }
  func.func @transform_4(%arg0: i32) -> (i32, i32) {
    %c0_i32 = arith.constant 0 : i32
    %c0_i32_0 = arith.constant 0 : i32
    %c0_i32_1 = arith.constant 0 : i32
    return %c0_i32, %c0_i32_0 : i32, i32
  }
  func.func @transform_5(%arg0: i32) -> (i32, i32) {
    %c0_i32 = arith.constant 0 : i32
    %c0_i32_0 = arith.constant 0 : i32
    %c0_i32_1 = arith.constant 0 : i32
    return %c0_i32, %c0_i32_0 : i32, i32
  }
  func.func @transform_6(%arg0: i32) -> (i32, i32) {
    %c0_i32 = arith.constant 0 : i32
    %c0_i32_0 = arith.constant 0 : i32
    return %arg0, %c0_i32 : i32, i32
  }
}

module attributes {stable_mosaic.version = 11 : i64} {
  func.func @conv_pool_kernel(%arg0: i32, %arg1: memref<64x288xbf16, #tpu.memory_space<vmem>>, %arg2: memref<64x288xbf16, #tpu.memory_space<vmem>>, %arg3: memref<64x288xbf16, #tpu.memory_space<vmem>>, %arg4: memref<64x288xbf16, #tpu.memory_space<vmem>>, %arg5: memref<288x64xbf16, #tpu.memory_space<vmem>>, %arg6: memref<1x64xf32, #tpu.memory_space<vmem>>, %arg7: memref<64x64xbf16, #tpu.memory_space<vmem>>) attributes {dimension_semantics = [#tpu.dimension_semantics<parallel>], iteration_bounds = array<i64: 2>, scalar_prefetch = 0 : i64, scratch_operands = 0 : i64, tpu.core_type = #tpu.core_type<tc>, window_params = [{transform_indices = @transform_0, window_bounds = array<i64: 64, 288>}, {transform_indices = @transform_1, window_bounds = array<i64: 64, 288>}, {transform_indices = @transform_2, window_bounds = array<i64: 64, 288>}, {transform_indices = @transform_3, window_bounds = array<i64: 64, 288>}, {pipeline_mode = #tpu.pipeline_mode<synchronous>, transform_indices = @transform_4, window_bounds = array<i64: 288, 64>}, {pipeline_mode = #tpu.pipeline_mode<synchronous>, transform_indices = @transform_5, window_bounds = array<i64: 1, 64>}, {transform_indices = @transform_6, window_bounds = array<i64: 64, 64>}]} {
    %c0 = arith.constant 0 : index
    %c0_0 = arith.constant 0 : index
    %0 = vector.load %arg5[%c0, %c0_0] : memref<288x64xbf16, #tpu.memory_space<vmem>>, vector<288x64xbf16>
    %c0_1 = arith.constant 0 : index
    %c0_2 = arith.constant 0 : index
    %1 = vector.load %arg1[%c0_1, %c0_2] : memref<64x288xbf16, #tpu.memory_space<vmem>>, vector<64x288xbf16>
    %cst = arith.constant dense<0.000000e+00> : vector<64x64xf32>
    %2 = tpu.matmul %1, %0, %cst {dimension_numbers = #tpu.dot_dimension_numbers<[1], [0], [0], [1], [0, 0, 1, 1], [], []>} : vector<64x288xbf16>, vector<288x64xbf16>, vector<64x64xf32> -> vector<64x64xf32>
    %c0_3 = arith.constant 0 : index
    %c0_4 = arith.constant 0 : index
    %3 = vector.load %arg2[%c0_3, %c0_4] : memref<64x288xbf16, #tpu.memory_space<vmem>>, vector<64x288xbf16>
    %cst_5 = arith.constant dense<0.000000e+00> : vector<64x64xf32>
    %4 = tpu.matmul %3, %0, %cst_5 {dimension_numbers = #tpu.dot_dimension_numbers<[1], [0], [0], [1], [0, 0, 1, 1], [], []>} : vector<64x288xbf16>, vector<288x64xbf16>, vector<64x64xf32> -> vector<64x64xf32>
    %5 = arith.maximumf %2, %4 : vector<64x64xf32>
    %c0_6 = arith.constant 0 : index
    %c0_7 = arith.constant 0 : index
    %6 = vector.load %arg3[%c0_6, %c0_7] : memref<64x288xbf16, #tpu.memory_space<vmem>>, vector<64x288xbf16>
    %cst_8 = arith.constant dense<0.000000e+00> : vector<64x64xf32>
    %7 = tpu.matmul %6, %0, %cst_8 {dimension_numbers = #tpu.dot_dimension_numbers<[1], [0], [0], [1], [0, 0, 1, 1], [], []>} : vector<64x288xbf16>, vector<288x64xbf16>, vector<64x64xf32> -> vector<64x64xf32>
    %c0_9 = arith.constant 0 : index
    %c0_10 = arith.constant 0 : index
    %8 = vector.load %arg4[%c0_9, %c0_10] : memref<64x288xbf16, #tpu.memory_space<vmem>>, vector<64x288xbf16>
    %cst_11 = arith.constant dense<0.000000e+00> : vector<64x64xf32>
    %9 = tpu.matmul %8, %0, %cst_11 {dimension_numbers = #tpu.dot_dimension_numbers<[1], [0], [0], [1], [0, 0, 1, 1], [], []>} : vector<64x288xbf16>, vector<288x64xbf16>, vector<64x64xf32> -> vector<64x64xf32>
    %10 = arith.maximumf %7, %9 : vector<64x64xf32>
    %11 = arith.maximumf %5, %10 : vector<64x64xf32>
    %c0_12 = arith.constant 0 : index
    %c0_13 = arith.constant 0 : index
    %12 = vector.load %arg6[%c0_12, %c0_13] : memref<1x64xf32, #tpu.memory_space<vmem>>, vector<1x64xf32>
    %13 = vector.broadcast %12 : vector<1x64xf32> to vector<64x64xf32>
    %14 = arith.addf %11, %13 : vector<64x64xf32>
    %cst_14 = arith.constant 0.000000e+00 : f32
    %15 = vector.broadcast %cst_14 : f32 to vector<64x64xf32>
    %16 = arith.maximumf %14, %15 : vector<64x64xf32>
    %17 = arith.truncf %16 : vector<64x64xf32> to vector<64x64xbf16>
    %c0_15 = arith.constant 0 : index
    %c0_16 = arith.constant 0 : index
    %18 = vector.load %arg7[%c0_15, %c0_16] : memref<64x64xbf16, #tpu.memory_space<vmem>>, vector<64x64xbf16>
    tpu.vector_store %arg7[%c0_15, %c0_16], %17 {strides = array<i32>} : memref<64x64xbf16, #tpu.memory_space<vmem>>, vector<64x64xbf16>,
    return
  }
  func.func @transform_0(%arg0: i32) -> (i32, i32) {
    %c0_i32 = arith.constant 0 : i32
    %c0_i32_0 = arith.constant 0 : i32
    return %arg0, %c0_i32 : i32, i32
  }
  func.func @transform_1(%arg0: i32) -> (i32, i32) {
    %c0_i32 = arith.constant 0 : i32
    %c0_i32_0 = arith.constant 0 : i32
    return %arg0, %c0_i32 : i32, i32
  }
  func.func @transform_2(%arg0: i32) -> (i32, i32) {
    %c0_i32 = arith.constant 0 : i32
    %c0_i32_0 = arith.constant 0 : i32
    return %arg0, %c0_i32 : i32, i32
  }
  func.func @transform_3(%arg0: i32) -> (i32, i32) {
    %c0_i32 = arith.constant 0 : i32
    %c0_i32_0 = arith.constant 0 : i32
    return %arg0, %c0_i32 : i32, i32
  }
  func.func @transform_4(%arg0: i32) -> (i32, i32) {
    %c0_i32 = arith.constant 0 : i32
    %c0_i32_0 = arith.constant 0 : i32
    %c0_i32_1 = arith.constant 0 : i32
    return %c0_i32, %c0_i32_0 : i32, i32
  }
  func.func @transform_5(%arg0: i32) -> (i32, i32) {
    %c0_i32 = arith.constant 0 : i32
    %c0_i32_0 = arith.constant 0 : i32
    %c0_i32_1 = arith.constant 0 : i32
    return %c0_i32, %c0_i32_0 : i32, i32
  }
  func.func @transform_6(%arg0: i32) -> (i32, i32) {
    %c0_i32 = arith.constant 0 : i32
    %c0_i32_0 = arith.constant 0 : i32
    return %arg0, %c0_i32 : i32, i32
  }
}

module attributes {stable_mosaic.version = 11 : i64} {
  func.func @fc_fused_kernel(%arg0: i32, %arg1: memref<2x4096xbf16, #tpu.memory_space<vmem>>, %arg2: memref<4096x64xbf16, #tpu.memory_space<vmem>>, %arg3: memref<1x64xf32, #tpu.memory_space<vmem>>, %arg4: memref<64x10xbf16, #tpu.memory_space<vmem>>, %arg5: memref<1x10xf32, #tpu.memory_space<vmem>>, %arg6: memref<2x10xf32, #tpu.memory_space<vmem>>) attributes {dimension_semantics = [#tpu.dimension_semantics<arbitrary>], iteration_bounds = array<i64: 1>, scalar_prefetch = 0 : i64, scratch_operands = 0 : i64, tpu.core_type = #tpu.core_type<tc>, window_params = [{pipeline_mode = #tpu.pipeline_mode<synchronous>, transform_indices = @transform_0, window_bounds = array<i64: 2, 4096>}, {pipeline_mode = #tpu.pipeline_mode<synchronous>, transform_indices = @transform_1, window_bounds = array<i64: 4096, 64>}, {pipeline_mode = #tpu.pipeline_mode<synchronous>, transform_indices = @transform_2, window_bounds = array<i64: 1, 64>}, {pipeline_mode = #tpu.pipeline_mode<synchronous>, transform_indices = @transform_3, window_bounds = array<i64: 64, 10>}, {pipeline_mode = #tpu.pipeline_mode<synchronous>, transform_indices = @transform_4, window_bounds = array<i64: 1, 10>}, {pipeline_mode = #tpu.pipeline_mode<synchronous>, transform_indices = @transform_5, window_bounds = array<i64: 2, 10>}]} {
    %c0 = arith.constant 0 : index
    %c0_0 = arith.constant 0 : index
    %0 = vector.load %arg1[%c0, %c0_0] : memref<2x4096xbf16, #tpu.memory_space<vmem>>, vector<2x4096xbf16>
    %c0_1 = arith.constant 0 : index
    %c0_2 = arith.constant 0 : index
    %1 = vector.load %arg2[%c0_1, %c0_2] : memref<4096x64xbf16, #tpu.memory_space<vmem>>, vector<4096x64xbf16>
    %cst = arith.constant dense<0.000000e+00> : vector<2x64xf32>
    %2 = tpu.matmul %0, %1, %cst {dimension_numbers = #tpu.dot_dimension_numbers<[1], [0], [0], [1], [0, 0, 1, 1], [], []>} : vector<2x4096xbf16>, vector<4096x64xbf16>, vector<2x64xf32> -> vector<2x64xf32>
    %c0_3 = arith.constant 0 : index
    %c0_4 = arith.constant 0 : index
    %3 = vector.load %arg3[%c0_3, %c0_4] : memref<1x64xf32, #tpu.memory_space<vmem>>, vector<1x64xf32>
    %4 = vector.broadcast %3 : vector<1x64xf32> to vector<2x64xf32>
    %5 = arith.addf %2, %4 : vector<2x64xf32>
    %cst_5 = arith.constant 0.000000e+00 : f32
    %6 = vector.broadcast %cst_5 : f32 to vector<2x64xf32>
    %7 = arith.maximumf %5, %6 : vector<2x64xf32>
    %8 = arith.truncf %7 : vector<2x64xf32> to vector<2x64xbf16>
    %c0_6 = arith.constant 0 : index
    %c0_7 = arith.constant 0 : index
    %9 = vector.load %arg4[%c0_6, %c0_7] : memref<64x10xbf16, #tpu.memory_space<vmem>>, vector<64x10xbf16>
    %cst_8 = arith.constant dense<0.000000e+00> : vector<2x10xf32>
    %10 = tpu.matmul %8, %9, %cst_8 {dimension_numbers = #tpu.dot_dimension_numbers<[1], [0], [0], [1], [0, 0, 1, 1], [], []>} : vector<2x64xbf16>, vector<64x10xbf16>, vector<2x10xf32> -> vector<2x10xf32>
    %c0_9 = arith.constant 0 : index
    %c0_10 = arith.constant 0 : index
    %11 = vector.load %arg5[%c0_9, %c0_10] : memref<1x10xf32, #tpu.memory_space<vmem>>, vector<1x10xf32>
    %12 = vector.broadcast %11 : vector<1x10xf32> to vector<2x10xf32>
    %13 = arith.addf %10, %12 : vector<2x10xf32>
    %c0_11 = arith.constant 0 : index
    %c0_12 = arith.constant 0 : index
    %14 = vector.load %arg6[%c0_11, %c0_12] : memref<2x10xf32, #tpu.memory_space<vmem>>, vector<2x10xf32>
    tpu.vector_store %arg6[%c0_11, %c0_12], %13 {strides = array<i32>} : memref<2x10xf32, #tpu.memory_space<vmem>>, vector<2x10xf32>,
    return
  }
  func.func @transform_0(%arg0: i32) -> (i32, i32) {
    %c0_i32 = arith.constant 0 : i32
    %c0_i32_0 = arith.constant 0 : i32
    %c0_i32_1 = arith.constant 0 : i32
    return %c0_i32, %c0_i32_0 : i32, i32
  }
  func.func @transform_1(%arg0: i32) -> (i32, i32) {
    %c0_i32 = arith.constant 0 : i32
    %c0_i32_0 = arith.constant 0 : i32
    %c0_i32_1 = arith.constant 0 : i32
    return %c0_i32, %c0_i32_0 : i32, i32
  }
  func.func @transform_2(%arg0: i32) -> (i32, i32) {
    %c0_i32 = arith.constant 0 : i32
    %c0_i32_0 = arith.constant 0 : i32
    %c0_i32_1 = arith.constant 0 : i32
    return %c0_i32, %c0_i32_0 : i32, i32
  }
  func.func @transform_3(%arg0: i32) -> (i32, i32) {
    %c0_i32 = arith.constant 0 : i32
    %c0_i32_0 = arith.constant 0 : i32
    %c0_i32_1 = arith.constant 0 : i32
    return %c0_i32, %c0_i32_0 : i32, i32
  }
  func.func @transform_4(%arg0: i32) -> (i32, i32) {
    %c0_i32 = arith.constant 0 : i32
    %c0_i32_0 = arith.constant 0 : i32
    %c0_i32_1 = arith.constant 0 : i32
    return %c0_i32, %c0_i32_0 : i32, i32
  }
  func.func @transform_5(%arg0: i32) -> (i32, i32) {
    %c0_i32 = arith.constant 0 : i32
    %c0_i32_0 = arith.constant 0 : i32
    %c0_i32_1 = arith.constant 0 : i32
    return %c0_i32, %c0_i32_0 : i32, i32
  }
}

</mosaic_0001>

<llo_original>
// kernel: complex_cnn_forward.3
$region0: #{complex_cnn_forward.3}
  #allocation0 [shape = 'u32[]', space=smem, size = 0x4, offset = 0x4, fixed_abs, tag = 'smem constant byte address 0x4 - core index']
  #allocation1 [shape = 'u32[72,128]{1,0:T(1,128)}', space=vmem, size = 0x9000, scoped, tag = 'internal scratch']
  %s0 = inlined_call_operand.vmem [shape: bf16[512,27], index: 0, kind: input, shape index: {}]
  %s1 = inlined_call_operand.vmem [shape: bf16[512,27], index: 1, kind: input, shape index: {}]
  %s2 = inlined_call_operand.vmem [shape: bf16[512,27], index: 2, kind: input, shape index: {}]
  %s3 = inlined_call_operand.vmem [shape: bf16[512,27], index: 3, kind: input, shape index: {}]
  %s4 = inlined_call_operand.vmem [shape: bf16[27,32], index: 4, kind: input, shape index: {}]
  %s5 = inlined_call_operand.vmem [shape: f32[1,32], index: 5, kind: input, shape index: {}]
  %s6 = inlined_call_operand.vmem [shape: bf16[512,32], index: 6, kind: output, shape index: {}]
  %s7 = sld [smem:[#allocation0]]
  $region57: #{complex_cnn_forward.3} parent=0
    _
  %s9 = ssub.s32 1, %s7
  %s10 = scalar_select 0, %s9, %s7
  loop: start=0, step=1, limit=4
  $region2: #{complex_cnn_forward.3} parent=0 // loop_pre_header
    _
  $region3: #{complex_cnn_forward.3} parent=0 // loop_header
    %s12 = sphi 0, %s16
    %p13 = scmp.ge.s32.totalorder %s12, 4
    %s22 = sphi 0, %s24
    %s25 = sphi 0, %s22
    %s26 = sphi 0, %s25
    %s42 = sphi 0, %s26
    %s48 = sphi 0, %s50
    %s51 = sphi 0, %s48
    %s52 = sphi 0, %s51
    %s68 = sphi 0, %s52
    %s74 = sphi 0, %s76
    %s77 = sphi 0, %s74
    %s78 = sphi 0, %s77
    %s94 = sphi 0, %s78
    %s100 = sphi 0, %s102
    %s103 = sphi 0, %s100
    %s104 = sphi 0, %s103
    %s120 = sphi 0, %s104
    %s124 = sphi 0, %s124
    %s126 = sphi 0, %s124
    %s127 = sphi 0, %s126
    %s141 = sphi 0, %s127
    %s145 = sphi 0, %s145
    %s147 = sphi 0, %s145
    %s148 = sphi 0, %s147
    %s162 = sphi 0, %s148
    %s168 = sphi 0, %s170
    %s171 = sphi 0, %s168
    %s172 = sphi 0, %s171
    %s188 = sphi 0, %s172
  $region4: #{complex_cnn_forward.3} parent=0 // loop_header_branch
    %15 = sbr.rel (%p13) target = $region8
  $region5: #{complex_cnn_forward.3} parent=0 // loop_body
    %s17 = ssub.s32 %s12, 1
    %s18 = ssub.s32 %s12, 2
    %s19 = sadd.s32 %s12, 1
    %s20 = ssub.s32 %s12, %s19
    %p21 = scmp.eq.s32.totalorder %s20, 0
    %s23 = sadd.s32 %s22, 1
    %s24 = scalar_select %p21, %s22, %s23
    %p27 = pneg %p21
    %p28 = scmp.eq.s32.totalorder %s12, 1
    %p29 = por %p27, %p28
    %p30 = scmp.ne.s32.totalorder %s22, %s25
    %p31 = scmp.eq.s32.totalorder %s12, 0
    %p32 = por %p30, %p31
    %p33 = scmp.ne.s32.totalorder %s22, %s25
    %p34 = scmp.eq.s32.totalorder %s17, 1
    %p35 = por %p33, %p34
    %p36 = scmp.ne.s32.totalorder %s25, %s26
    %p37 = scmp.eq.s32.totalorder %s17, 0
    %p38 = por %p36, %p37
    %p39 = scmp.ne.s32.totalorder %s25, %s26
    %p40 = scmp.eq.s32.totalorder %s18, 1
    %p41 = por %p39, %p40
    %p43 = scmp.ne.s32.totalorder %s26, %s42
    %p44 = scmp.eq.s32.totalorder %s18, 0
    %p45 = por %p43, %p44
    %s46 = ssub.s32 %s12, %s19
    %p47 = scmp.eq.s32.totalorder %s46, 0
    %s49 = sadd.s32 %s48, 1
    %s50 = scalar_select %p47, %s48, %s49
    %p53 = pneg %p47
    %p54 = scmp.eq.s32.totalorder %s12, 1
    %p55 = por %p53, %p54
    %p56 = scmp.ne.s32.totalorder %s48, %s51
    %p57 = scmp.eq.s32.totalorder %s12, 0
    %p58 = por %p56, %p57
    %p59 = scmp.ne.s32.totalorder %s48, %s51
    %p60 = scmp.eq.s32.totalorder %s17, 1
    %p61 = por %p59, %p60
    %p62 = scmp.ne.s32.totalorder %s51, %s52
    %p63 = scmp.eq.s32.totalorder %s17, 0
    %p64 = por %p62, %p63
    %p65 = scmp.ne.s32.totalorder %s51, %s52
    %p66 = scmp.eq.s32.totalorder %s18, 1
    %p67 = por %p65, %p66
    %p69 = scmp.ne.s32.totalorder %s52, %s68
    %p70 = scmp.eq.s32.totalorder %s18, 0
    %p71 = por %p69, %p70
    %s72 = ssub.s32 %s12, %s19
    %p73 = scmp.eq.s32.totalorder %s72, 0
    %s75 = sadd.s32 %s74, 1
    %s76 = scalar_select %p73, %s74, %s75
    %p79 = pneg %p73
    %p80 = scmp.eq.s32.totalorder %s12, 1
    %p81 = por %p79, %p80
    %p82 = scmp.ne.s32.totalorder %s74, %s77
    %p83 = scmp.eq.s32.totalorder %s12, 0
    %p84 = por %p82, %p83
    %p85 = scmp.ne.s32.totalorder %s74, %s77
    %p86 = scmp.eq.s32.totalorder %s17, 1
    %p87 = por %p85, %p86
    %p88 = scmp.ne.s32.totalorder %s77, %s78
    %p89 = scmp.eq.s32.totalorder %s17, 0
    %p90 = por %p88, %p89
    %p91 = scmp.ne.s32.totalorder %s77, %s78
    %p92 = scmp.eq.s32.totalorder %s18, 1
    %p93 = por %p91, %p92
    %p95 = scmp.ne.s32.totalorder %s78, %s94
    %p96 = scmp.eq.s32.totalorder %s18, 0
    %p97 = por %p95, %p96
    %s98 = ssub.s32 %s12, %s19
    %p99 = scmp.eq.s32.totalorder %s98, 0
    %s101 = sadd.s32 %s100, 1
    %s102 = scalar_select %p99, %s100, %s101
    %p105 = pneg %p99
    %p106 = scmp.eq.s32.totalorder %s12, 1
    %p107 = por %p105, %p106
    %p108 = scmp.ne.s32.totalorder %s100, %s103
    %p109 = scmp.eq.s32.totalorder %s12, 0
    %p110 = por %p108, %p109
    %p111 = scmp.ne.s32.totalorder %s100, %s103
    %p112 = scmp.eq.s32.totalorder %s17, 1
    %p113 = por %p111, %p112
    %p114 = scmp.ne.s32.totalorder %s103, %s104
    %p115 = scmp.eq.s32.totalorder %s17, 0
    %p116 = por %p114, %p115
    %p117 = scmp.ne.s32.totalorder %s103, %s104
    %p118 = scmp.eq.s32.totalorder %s18, 1
    %p119 = por %p117, %p118
    %p121 = scmp.ne.s32.totalorder %s104, %s120
    %p122 = scmp.eq.s32.totalorder %s18, 0
    %p123 = por %p121, %p122
    %s125 = sadd.s32 %s124, 1
    %p128 = scmp.eq.s32.totalorder %s12, 1
    %p129 = scmp.ne.s32.totalorder %s124, %s126
    %p130 = scmp.eq.s32.totalorder %s12, 0
    %p131 = por %p129, %p130
    %p132 = scmp.ne.s32.totalorder %s124, %s126
    %p133 = scmp.eq.s32.totalorder %s17, 1
    %p134 = por %p132, %p133
    %p135 = scmp.ne.s32.totalorder %s126, %s127
    %p136 = scmp.eq.s32.totalorder %s17, 0
    %p137 = por %p135, %p136
    %p138 = scmp.ne.s32.totalorder %s126, %s127
    %p139 = scmp.eq.s32.totalorder %s18, 1
    %p140 = por %p138, %p139
    %p142 = scmp.ne.s32.totalorder %s127, %s141
    %p143 = scmp.eq.s32.totalorder %s18, 0
    %p144 = por %p142, %p143
    %s146 = sadd.s32 %s145, 1
    %p149 = scmp.eq.s32.totalorder %s12, 1
    %p150 = scmp.ne.s32.totalorder %s145, %s147
    %p151 = scmp.eq.s32.totalorder %s12, 0
    %p152 = por %p150, %p151
    %p153 = scmp.ne.s32.totalorder %s145, %s147
    %p154 = scmp.eq.s32.totalorder %s17, 1
    %p155 = por %p153, %p154
    %p156 = scmp.ne.s32.totalorder %s147, %s148
    %p157 = scmp.eq.s32.totalorder %s17, 0
    %p158 = por %p156, %p157
    %p159 = scmp.ne.s32.totalorder %s147, %s148
    %p160 = scmp.eq.s32.totalorder %s18, 1
    %p161 = por %p159, %p160
    %p163 = scmp.ne.s32.totalorder %s148, %s162
    %p164 = scmp.eq.s32.totalorder %s18, 0
    %p165 = por %p163, %p164
    %s166 = ssub.s32 %s12, %s19
    %p167 = scmp.eq.s32.totalorder %s166, 0
    %s169 = sadd.s32 %s168, 1
    %s170 = scalar_select %p167, %s168, %s169
    %p173 = pneg %p167
    %p174 = scmp.eq.s32.totalorder %s12, 1
    %p175 = por %p173, %p174
    %p176 = scmp.ne.s32.totalorder %s168, %s171
    %p177 = scmp.eq.s32.totalorder %s12, 0
    %p178 = por %p176, %p177
    %p179 = scmp.ne.s32.totalorder %s168, %s171
    %p180 = scmp.eq.s32.totalorder %s17, 1
    %p181 = por %p179, %p180
    %p182 = scmp.ne.s32.totalorder %s171, %s172
    %p183 = scmp.eq.s32.totalorder %s17, 0
    %p184 = por %p182, %p183
    %p185 = scmp.ne.s32.totalorder %s171, %s172
    %p186 = scmp.eq.s32.totalorder %s18, 1
    %p187 = por %p185, %p186
    %p189 = scmp.ne.s32.totalorder %s172, %s188
    %p190 = scmp.eq.s32.totalorder %s18, 0
    %p191 = por %p189, %p190
    %p192 = scmp.le.s32.totalorder 1, %s12
    %p193 = scmp.lt.s32.totalorder %s12, 3
    %p194 = pnand %p192, %p193
    %p195 = pneg %p194
    // Predicated region
    $region9: #{complex_cnn_forward.3} parent=5 // pred_check
      _
    $region10: #{complex_cnn_forward.3} parent=5 // pred_check_branch
      %197 = sbr.rel (%p194) target = $region12
    $region11: #{complex_cnn_forward.3} parent=5 // pred_region
      %s198 = ssub.s32 %s12, 1
      // Predicated region
      $region13: #{complex_cnn_forward.3} parent=11 // pred_check
        %p199 = pneg %p137
      $region14: #{complex_cnn_forward.3} parent=11 // pred_check_branch
        %201 = sbr.rel (%p199) target = $region16
      $region15: #{complex_cnn_forward.3} parent=11 // pred_region
        _
      $region16: #{complex_cnn_forward.3} parent=11 // pred_fallthru
        _
      // Predicated region
      $region17: #{complex_cnn_forward.3} parent=11 // pred_check
        %p202 = pneg %p158
      $region18: #{complex_cnn_forward.3} parent=11 // pred_check_branch
        %204 = sbr.rel (%p202) target = $region20
      $region19: #{complex_cnn_forward.3} parent=11 // pred_region
        _
      $region20: #{complex_cnn_forward.3} parent=11 // pred_fallthru
        _
    $region12: #{complex_cnn_forward.3} parent=5 // pred_fallthru
      _
    %p205 = scmp.lt.s32.totalorder %s12, 2
    // Predicated region
    $region21: #{complex_cnn_forward.3} parent=5 // pred_check
      %p206 = pneg %p205
    $region22: #{complex_cnn_forward.3} parent=5 // pred_check_branch
      %208 = sbr.rel (%p206) target = $region24
    $region23: #{complex_cnn_forward.3} parent=5 // pred_region
      // Predicated region
      $region25: #{complex_cnn_forward.3} parent=23 // pred_check
        %p209 = pneg %p32
      $region26: #{complex_cnn_forward.3} parent=23 // pred_check_branch
        %211 = sbr.rel (%p209) target = $region28
      $region27: #{complex_cnn_forward.3} parent=23 // pred_region
        %s212 = smul.u32 32, %s12
        %p213 = scmp.lt.s32.totalorder %s212, 63
        %s214 = scalar_select %p213, %s212, 63
        %s215 = smul.addr %s214, 4
        %s216 = scalar_lea.vmem %s0, %s215
        %s217 = smul.u32 32, %s12
      $region28: #{complex_cnn_forward.3} parent=23 // pred_fallthru
        _
      // Predicated region
      $region29: #{complex_cnn_forward.3} parent=23 // pred_check
        %p218 = pneg %p58
      $region30: #{complex_cnn_forward.3} parent=23 // pred_check_branch
        %220 = sbr.rel (%p218) target = $region32
      $region31: #{complex_cnn_forward.3} parent=23 // pred_region
        %s221 = smul.u32 32, %s12
        %p222 = scmp.lt.s32.totalorder %s221, 63
        %s223 = scalar_select %p222, %s221, 63
        %s224 = smul.addr %s223, 4
        %s225 = scalar_lea.vmem %s1, %s224
        %s226 = smul.u32 32, %s12
      $region32: #{complex_cnn_forward.3} parent=23 // pred_fallthru
        _
      // Predicated region
      $region33: #{complex_cnn_forward.3} parent=23 // pred_check
        %p227 = pneg %p84
      $region34: #{complex_cnn_forward.3} parent=23 // pred_check_branch
        %229 = sbr.rel (%p227) target = $region36
      $region35: #{complex_cnn_forward.3} parent=23 // pred_region
        %s230 = smul.u32 32, %s12
        %p231 = scmp.lt.s32.totalorder %s230, 63
        %s232 = scalar_select %p231, %s230, 63
        %s233 = smul.addr %s232, 4
        %s234 = scalar_lea.vmem %s2, %s233
        %s235 = smul.u32 32, %s12
      $region36: #{complex_cnn_forward.3} parent=23 // pred_fallthru
        _
      // Predicated region
      $region37: #{complex_cnn_forward.3} parent=23 // pred_check
        %p236 = pneg %p110
      $region38: #{complex_cnn_forward.3} parent=23 // pred_check_branch
        %238 = sbr.rel (%p236) target = $region40
      $region39: #{complex_cnn_forward.3} parent=23 // pred_region
        %s239 = smul.u32 32, %s12
        %p240 = scmp.lt.s32.totalorder %s239, 63
        %s241 = scalar_select %p240, %s239, 63
        %s242 = smul.addr %s241, 4
        %s243 = scalar_lea.vmem %s3, %s242
        %s244 = smul.u32 32, %s12
      $region40: #{complex_cnn_forward.3} parent=23 // pred_fallthru
        _
    $region24: #{complex_cnn_forward.3} parent=5 // pred_fallthru
      _
    %p245 = scmp.le.s32.totalorder 1, %s12
    %p246 = scmp.lt.s32.totalorder %s12, 3
    %p247 = pnand %p245, %p246
    %p248 = pneg %p247
    // Predicated region
    $region41: #{complex_cnn_forward.3} parent=5 // pred_check
      _
    $region42: #{complex_cnn_forward.3} parent=5 // pred_check_branch
      %250 = sbr.rel (%p247) target = $region44
    $region43: #{complex_cnn_forward.3} parent=5 // pred_region
      %s251 = ssub.s32 %s12, 1
      %s252 = smul.u32 32, %s17
      %p253 = scmp.lt.s32.totalorder %s252, 63
      %s254 = scalar_select %p253, %s252, 63
      %s255 = smul.addr %s254, 4
      %s256 = scalar_lea.vmem %s0, %s255
      %p257 = pneg %p38
      %p258 = pneg %p35
      %s259 = smul.u32 32, %s17
      %p260 = scmp.lt.s32.totalorder %s259, 63
      %s261 = scalar_select %p260, %s259, 63
      %s262 = smul.addr %s261, 4
      %s263 = scalar_lea.vmem %s1, %s262
      %p264 = pneg %p64
      %p265 = pneg %p61
      %s266 = smul.u32 32, %s17
      %p267 = scmp.lt.s32.totalorder %s266, 63
      %s268 = scalar_select %p267, %s266, 63
      %s269 = smul.addr %s268, 4
      %s270 = scalar_lea.vmem %s2, %s269
      %p271 = pneg %p90
      %p272 = pneg %p87
      %s273 = smul.u32 32, %s17
      %p274 = scmp.lt.s32.totalorder %s273, 63
      %s275 = scalar_select %p274, %s273, 63
      %s276 = smul.addr %s275, 4
      %s277 = scalar_lea.vmem %s3, %s276
      %p278 = pneg %p116
      %p279 = pneg %p113
      %p280 = pneg %p137
      %p281 = pneg %p134
      %p282 = pneg %p158
      %p283 = pneg %p155
      %p284 = pneg %p184
      %p285 = pneg %p181
      %s286 = smul.u32 32, %s17
      %p287 = scmp.lt.s32.totalorder %s286, 63
      %s288 = scalar_select %p287, %s286, 63
      %s289 = smul.addr %s288, 4
      %s290 = scalar_lea.vmem %s6, %s289
      %s291 = smul.u32 32, %s17
      %p292 = scmp.lt.s32.totalorder %s291, 63
      %s293 = scalar_select %p292, %s291, 63
      %s294 = smul.addr %s293, 4
      %s295 = scalar_lea.vmem %s0, %s294
      %s296 = smul.u32 32, %s17
      %s297 = smul.u32 32, %s17
      %p298 = scmp.lt.s32.totalorder %s297, 63
      %s299 = scalar_select %p298, %s297, 63
      %s300 = smul.addr %s299, 4
      %s301 = scalar_lea.vmem %s1, %s300
      %s302 = smul.u32 32, %s17
      %s303 = smul.u32 32, %s17
      %p304 = scmp.lt.s32.totalorder %s303, 63
      %s305 = scalar_select %p304, %s303, 63
      %s306 = smul.addr %s305, 4
      %s307 = scalar_lea.vmem %s2, %s306
      %s308 = smul.u32 32, %s17
      %s309 = smul.u32 32, %s17
      %p310 = scmp.lt.s32.totalorder %s309, 63
      %s311 = scalar_select %p310, %s309, 63
      %s312 = smul.addr %s311, 4
      %s313 = scalar_lea.vmem %s3, %s312
      %s314 = smul.u32 32, %s17
      %s315 = smul.u32 32, %s17
      %p316 = scmp.lt.s32.totalorder %s315, 63
      %s317 = scalar_select %p316, %s315, 63
      %s318 = smul.addr %s317, 4
      %s319 = scalar_lea.vmem %s6, %s318
      %s320 = smul.u32 32, %s17
      %v322 = vld [vmem:[%s4] sm:$0xf]
      %v323 = vld [vmem:[%s4 + $0x4] sm:$0xf]
      %v324 = vld [vmem:[%s4 + $0x8] sm:$0xf]
      %v325 = vld [vmem:[%s4 + $0xc] sm:$0x3]
      %v326 = vld [vmem:[%s295] sm:$0xf]
      %v327 = vld [vmem:[%s295 + $0x4] sm:$0xf]
      %v328 = vld [vmem:[%s295 + $0x8] sm:$0xf]
      %v329 = vld [vmem:[%s295 + $0xc] sm:$0xf]
      %v330 = vld [vmem:[%s295 + $0x10] sm:$0xf]
      %v331 = vld [vmem:[%s295 + $0x14] sm:$0xf]
      %v332 = vld [vmem:[%s295 + $0x18] sm:$0xf]
      %v333 = vld [vmem:[%s295 + $0x1c] sm:$0xf]
      %v334 = vld [vmem:[%s295 + $0x20] sm:$0xf]
      %v335 = vld [vmem:[%s295 + $0x24] sm:$0xf]
      %v336 = vld [vmem:[%s295 + $0x28] sm:$0xf]
      %v337 = vld [vmem:[%s295 + $0x2c] sm:$0xf]
      %v338 = vld [vmem:[%s295 + $0x30] sm:$0xf]
      %v339 = vld [vmem:[%s295 + $0x34] sm:$0xf]
      %v340 = vld [vmem:[%s295 + $0x38] sm:$0xf]
      %v341 = vld [vmem:[%s295 + $0x3c] sm:$0xf]
      %v342 = vld [vmem:[%s295 + $0x40] sm:$0xf]
      %v343 = vld [vmem:[%s295 + $0x44] sm:$0xf]
      %v344 = vld [vmem:[%s295 + $0x48] sm:$0xf]
      %v345 = vld [vmem:[%s295 + $0x4c] sm:$0xf]
      %v346 = vld [vmem:[%s295 + $0x50] sm:$0xf]
      %v347 = vld [vmem:[%s295 + $0x54] sm:$0xf]
      %v348 = vld [vmem:[%s295 + $0x58] sm:$0xf]
      %v349 = vld [vmem:[%s295 + $0x5c] sm:$0xf]
      %v350 = vld [vmem:[%s295 + $0x60] sm:$0xf]
      %v351 = vld [vmem:[%s295 + $0x64] sm:$0xf]
      %v352 = vld [vmem:[%s295 + $0x68] sm:$0xf]
      %v353 = vld [vmem:[%s295 + $0x6c] sm:$0xf]
      %v354 = vld [vmem:[%s295 + $0x70] sm:$0xf]
      %v355 = vld [vmem:[%s295 + $0x74] sm:$0xf]
      %v356 = vld [vmem:[%s295 + $0x78] sm:$0xf]
      %v357 = vld [vmem:[%s295 + $0x7c] sm:$0xf]
      %v390 = vunpack.c.l.b16 %v326
      %v391 = vunpack.c.l.b16 %v327
      %v392 = vunpack.c.l.b16 %v328
      %v393 = vunpack.c.l.b16 %v329
      %v394 = vunpack.c.l.b16 %v330
      %v395 = vunpack.c.l.b16 %v331
      %v396 = vunpack.c.l.b16 %v332
      %v397 = vunpack.c.l.b16 %v333
      %v398 = vunpack.c.l.b16 %v334
      %v399 = vunpack.c.l.b16 %v335
      %v400 = vunpack.c.l.b16 %v336
      %v401 = vunpack.c.l.b16 %v337
      %v402 = vunpack.c.l.b16 %v338
      %v403 = vunpack.c.l.b16 %v339
      %v404 = vunpack.c.l.b16 %v340
      %v405 = vunpack.c.l.b16 %v341
      %v406 = vunpack.c.l.b16 %v342
      %v407 = vunpack.c.l.b16 %v343
      %v408 = vunpack.c.l.b16 %v344
      %v409 = vunpack.c.l.b16 %v345
      %v410 = vunpack.c.l.b16 %v346
      %v411 = vunpack.c.l.b16 %v347
      %v412 = vunpack.c.l.b16 %v348
      %v413 = vunpack.c.l.b16 %v349
      %v414 = vunpack.c.l.b16 %v350
      %v415 = vunpack.c.l.b16 %v351
      %v416 = vunpack.c.l.b16 %v352
      %v417 = vunpack.c.l.b16 %v353
      %v418 = vunpack.c.l.b16 %v354
      %v419 = vunpack.c.l.b16 %v355
      %v420 = vunpack.c.l.b16 %v356
      %v421 = vunpack.c.l.b16 %v357
      %v422 = vpack.c.b16 %v391, %v390
      %v423 = vpack.c.b16 %v393, %v392
      %v424 = vpack.c.b16 %v395, %v394
      %v425 = vpack.c.b16 %v397, %v396
      %v426 = vpack.c.b16 %v399, %v398
      %v427 = vpack.c.b16 %v401, %v400
      %v428 = vpack.c.b16 %v403, %v402
      %v429 = vpack.c.b16 %v405, %v404
      %v430 = vpack.c.b16 %v407, %v406
      %v431 = vpack.c.b16 %v409, %v408
      %v432 = vpack.c.b16 %v411, %v410
      %v433 = vpack.c.b16 %v413, %v412
      %v434 = vpack.c.b16 %v415, %v414
      %v435 = vpack.c.b16 %v417, %v416
      %v436 = vpack.c.b16 %v419, %v418
      %v437 = vpack.c.b16 %v421, %v420
      %v442 = vunpack.c.l.b16 %v322
      %v443 = vunpack.c.l.b16 %v323
      %v444 = vunpack.c.l.b16 %v324
      %v445 = vunpack.c.l.b16 %v325
      %v446 = vpack.c.b16 %v443, %v442
      %v447 = vpack.c.b16 %v445, %v444
      %vm449 = vcmask 220160
      %v451 = vsel %vm449, %v422, 0
      %v454 = vsel %vm449, %v423, 0
      %v457 = vsel %vm449, %v424, 0
      %v460 = vsel %vm449, %v425, 0
      %v463 = vsel %vm449, %v426, 0
      %v466 = vsel %vm449, %v427, 0
      %v469 = vsel %vm449, %v428, 0
      %v472 = vsel %vm449, %v429, 0
      %v475 = vsel %vm449, %v430, 0
      %v478 = vsel %vm449, %v431, 0
      %v481 = vsel %vm449, %v432, 0
      %v484 = vsel %vm449, %v433, 0
      %v487 = vsel %vm449, %v434, 0
      %v490 = vsel %vm449, %v435, 0
      %v493 = vsel %vm449, %v436, 0
      %v496 = vsel %vm449, %v437, 0
      %vm498 = vcmask 1044480
      %vm499 = vcmask 1045504
      %v500 = vsel %vm498, 4294967295, 65535
      %v501 = vsel %vm499, %v500, 0
      %v503 = vand.u32 %v447, %v501
      %505 = vmatpush.bf16.msra.mxu0 0
      %506 = vmatpush.bf16.msra.mxu0 0
      %507 = vmatpush.bf16.msra.mxu0 0
      %508 = vmatpush.bf16.msra.mxu0 0
      %509 = vmatpush.bf16.msra.mxu0 0
      %510 = vmatpush.bf16.msra.mxu0 0
      %511 = vmatpush.bf16.msra.mxu0 %v503
      %512 = vmatpush.bf16.msra.mxu0 %v446
      %513 = vmatmul.bf16.gmra.mxu0 %v451
      %v514 = vpop.f32.mrf.mxu0
      %v515 = vadd.f32 0.0, %v514
      %v516 = vpop.f32.mrf.mxu0
      %v517 = vadd.f32 0.0, %v516
      %518 = vmatmul.bf16.gmra.mxu0 %v454
      %v519 = vpop.f32.mrf.mxu0
      %v520 = vadd.f32 0.0, %v519
      %v521 = vpop.f32.mrf.mxu0
      %v522 = vadd.f32 0.0, %v521
      %523 = vmatmul.bf16.gmra.mxu0 %v457
      %v524 = vpop.f32.mrf.mxu0
      %v525 = vadd.f32 0.0, %v524
      %v526 = vpop.f32.mrf.mxu0
      %v527 = vadd.f32 0.0, %v526
      %528 = vmatmul.bf16.gmra.mxu0 %v460
      %v529 = vpop.f32.mrf.mxu0
      %v530 = vadd.f32 0.0, %v529
      %v531 = vpop.f32.mrf.mxu0
      %v532 = vadd.f32 0.0, %v531
      %533 = vmatmul.bf16.gmra.mxu0 %v463
      %v534 = vpop.f32.mrf.mxu0
      %v535 = vadd.f32 0.0, %v534
      %v536 = vpop.f32.mrf.mxu0
      %v537 = vadd.f32 0.0, %v536
      %538 = vmatmul.bf16.gmra.mxu0 %v466
      %v539 = vpop.f32.mrf.mxu0
      %v540 = vadd.f32 0.0, %v539
      %v541 = vpop.f32.mrf.mxu0
      %v542 = vadd.f32 0.0, %v541
      %543 = vmatmul.bf16.gmra.mxu0 %v469
      %v544 = vpop.f32.mrf.mxu0
      %v545 = vadd.f32 0.0, %v544
      %v546 = vpop.f32.mrf.mxu0
      %v547 = vadd.f32 0.0, %v546
      %548 = vmatmul.bf16.gmra.mxu0 %v472
      %v549 = vpop.f32.mrf.mxu0
      %v550 = vadd.f32 0.0, %v549
      %v551 = vpop.f32.mrf.mxu0
      %v552 = vadd.f32 0.0, %v551
      %553 = vmatmul.bf16.gmra.mxu0 %v475
      %v554 = vpop.f32.mrf.mxu0
      %v555 = vadd.f32 0.0, %v554
      %v556 = vpop.f32.mrf.mxu0
      %v557 = vadd.f32 0.0, %v556
      %558 = vmatmul.bf16.gmra.mxu0 %v478
      %v559 = vpop.f32.mrf.mxu0
      %v560 = vadd.f32 0.0, %v559
      %v561 = vpop.f32.mrf.mxu0
      %v562 = vadd.f32 0.0, %v561
      %563 = vmatmul.bf16.gmra.mxu0 %v481
      %v564 = vpop.f32.mrf.mxu0
      %v565 = vadd.f32 0.0, %v564
      %v566 = vpop.f32.mrf.mxu0
      %v567 = vadd.f32 0.0, %v566
      %568 = vmatmul.bf16.gmra.mxu0 %v484
      %v569 = vpop.f32.mrf.mxu0
      %v570 = vadd.f32 0.0, %v569
      %v571 = vpop.f32.mrf.mxu0
      %v572 = vadd.f32 0.0, %v571
      %573 = vmatmul.bf16.gmra.mxu0 %v487
      %v574 = vpop.f32.mrf.mxu0
      %v575 = vadd.f32 0.0, %v574
      %v576 = vpop.f32.mrf.mxu0
      %v577 = vadd.f32 0.0, %v576
      %578 = vmatmul.bf16.gmra.mxu0 %v490
      %v579 = vpop.f32.mrf.mxu0
      %v580 = vadd.f32 0.0, %v579
      %v581 = vpop.f32.mrf.mxu0
      %v582 = vadd.f32 0.0, %v581
      %583 = vmatmul.bf16.gmra.mxu0 %v493
      %v584 = vpop.f32.mrf.mxu0
      %v585 = vadd.f32 0.0, %v584
      %v586 = vpop.f32.mrf.mxu0
      %v587 = vadd.f32 0.0, %v586
      %588 = vmatmul.bf16.gmra.mxu0 %v496
      %v589 = vpop.f32.mrf.mxu0
      %v590 = vadd.f32 0.0, %v589
      %v591 = vpop.f32.mrf.mxu0
      %v592 = vadd.f32 0.0, %v591
      %593 = vdwg.mxu0
      %v594 = vld [vmem:[%s301] sm:$0xf]
      %v595 = vld [vmem:[%s301 + $0x4] sm:$0xf]
      %v596 = vld [vmem:[%s301 + $0x8] sm:$0xf]
      %v597 = vld [vmem:[%s301 + $0xc] sm:$0xf]
      %v598 = vld [vmem:[%s301 + $0x10] sm:$0xf]
      %v599 = vld [vmem:[%s301 + $0x14] sm:$0xf]
      %v600 = vld [vmem:[%s301 + $0x18] sm:$0xf]
      %v601 = vld [vmem:[%s301 + $0x1c] sm:$0xf]
      %v602 = vld [vmem:[%s301 + $0x20] sm:$0xf]
      %v603 = vld [vmem:[%s301 + $0x24] sm:$0xf]
      %v604 = vld [vmem:[%s301 + $0x28] sm:$0xf]
      %v605 = vld [vmem:[%s301 + $0x2c] sm:$0xf]
      %v606 = vld [vmem:[%s301 + $0x30] sm:$0xf]
      %v607 = vld [vmem:[%s301 + $0x34] sm:$0xf]
      %v608 = vld [vmem:[%s301 + $0x38] sm:$0xf]
      %v609 = vld [vmem:[%s301 + $0x3c] sm:$0xf]
      %v610 = vld [vmem:[%s301 + $0x40] sm:$0xf]
      %v611 = vld [vmem:[%s301 + $0x44] sm:$0xf]
      %v612 = vld [vmem:[%s301 + $0x48] sm:$0xf]
      %v613 = vld [vmem:[%s301 + $0x4c] sm:$0xf]
      %v614 = vld [vmem:[%s301 + $0x50] sm:$0xf]
      %v615 = vld [vmem:[%s301 + $0x54] sm:$0xf]
      %v616 = vld [vmem:[%s301 + $0x58] sm:$0xf]
      %v617 = vld [vmem:[%s301 + $0x5c] sm:$0xf]
      %v618 = vld [vmem:[%s301 + $0x60] sm:$0xf]
      %v619 = vld [vmem:[%s301 + $0x64] sm:$0xf]
      %v620 = vld [vmem:[%s301 + $0x68] sm:$0xf]
      %v621 = vld [vmem:[%s301 + $0x6c] sm:$0xf]
      %v622 = vld [vmem:[%s301 + $0x70] sm:$0xf]
      %v623 = vld [vmem:[%s301 + $0x74] sm:$0xf]
      %v624 = vld [vmem:[%s301 + $0x78] sm:$0xf]
      %v625 = vld [vmem:[%s301 + $0x7c] sm:$0xf]
      %v658 = vunpack.c.l.b16 %v594
      %v659 = vunpack.c.l.b16 %v595
      %v660 = vunpack.c.l.b16 %v596
      %v661 = vunpack.c.l.b16 %v597
      %v662 = vunpack.c.l.b16 %v598
      %v663 = vunpack.c.l.b16 %v599
      %v664 = vunpack.c.l.b16 %v600
      %v665 = vunpack.c.l.b16 %v601
      %v666 = vunpack.c.l.b16 %v602
      %v667 = vunpack.c.l.b16 %v603
      %v668 = vunpack.c.l.b16 %v604
      %v669 = vunpack.c.l.b16 %v605
      %v670 = vunpack.c.l.b16 %v606
      %v671 = vunpack.c.l.b16 %v607
      %v672 = vunpack.c.l.b16 %v608
      %v673 = vunpack.c.l.b16 %v609
      %v674 = vunpack.c.l.b16 %v610
      %v675 = vunpack.c.l.b16 %v611
      %v676 = vunpack.c.l.b16 %v612
      %v677 = vunpack.c.l.b16 %v613
      %v678 = vunpack.c.l.b16 %v614
      %v679 = vunpack.c.l.b16 %v615
      %v680 = vunpack.c.l.b16 %v616
      %v681 = vunpack.c.l.b16 %v617
      %v682 = vunpack.c.l.b16 %v618
      %v683 = vunpack.c.l.b16 %v619
      %v684 = vunpack.c.l.b16 %v620
      %v685 = vunpack.c.l.b16 %v621
      %v686 = vunpack.c.l.b16 %v622
      %v687 = vunpack.c.l.b16 %v623
      %v688 = vunpack.c.l.b16 %v624
      %v689 = vunpack.c.l.b16 %v625
      %v690 = vpack.c.b16 %v659, %v658
      %v691 = vpack.c.b16 %v661, %v660
      %v692 = vpack.c.b16 %v663, %v662
      %v693 = vpack.c.b16 %v665, %v664
      %v694 = vpack.c.b16 %v667, %v666
      %v695 = vpack.c.b16 %v669, %v668
      %v696 = vpack.c.b16 %v671, %v670
      %v697 = vpack.c.b16 %v673, %v672
      %v698 = vpack.c.b16 %v675, %v674
      %v699 = vpack.c.b16 %v677, %v676
      %v700 = vpack.c.b16 %v679, %v678
      %v701 = vpack.c.b16 %v681, %v680
      %v702 = vpack.c.b16 %v683, %v682
      %v703 = vpack.c.b16 %v685, %v684
      %v704 = vpack.c.b16 %v687, %v686
      %v705 = vpack.c.b16 %v689, %v688
      %v707 = vsel %vm449, %v690, 0
      %v710 = vsel %vm449, %v691, 0
      %v713 = vsel %vm449, %v692, 0
      %v716 = vsel %vm449, %v693, 0
      %v719 = vsel %vm449, %v694, 0
      %v722 = vsel %vm449, %v695, 0
      %v725 = vsel %vm449, %v696, 0
      %v728 = vsel %vm449, %v697, 0
      %v731 = vsel %vm449, %v698, 0
      %v734 = vsel %vm449, %v699, 0
      %v737 = vsel %vm449, %v700, 0
      %v740 = vsel %vm449, %v701, 0
      %v743 = vsel %vm449, %v702, 0
      %v746 = vsel %vm449, %v703, 0
      %v749 = vsel %vm449, %v704, 0
      %v752 = vsel %vm449, %v705, 0
      %754 = vmatpush.bf16.msra.mxu0 0
      %755 = vmatpush.bf16.msra.mxu0 0
      %756 = vmatpush.bf16.msra.mxu0 0
      %757 = vmatpush.bf16.msra.mxu0 0
      %758 = vmatpush.bf16.msra.mxu0 0
      %759 = vmatpush.bf16.msra.mxu0 0
      %760 = vmatpush.bf16.msra.mxu0 %v503
      %761 = vmatpush.bf16.msra.mxu0 %v446
      %762 = vmatmul.bf16.gmra.mxu0 %v707
      %v763 = vpop.f32.mrf.mxu0
      %v764 = vadd.f32 0.0, %v763
      %v765 = vpop.f32.mrf.mxu0
      %v766 = vadd.f32 0.0, %v765
      %767 = vmatmul.bf16.gmra.mxu0 %v710
      %v768 = vpop.f32.mrf.mxu0
      %v769 = vadd.f32 0.0, %v768
      %v770 = vpop.f32.mrf.mxu0
      %v771 = vadd.f32 0.0, %v770
      %772 = vmatmul.bf16.gmra.mxu0 %v713
      %v773 = vpop.f32.mrf.mxu0
      %v774 = vadd.f32 0.0, %v773
      %v775 = vpop.f32.mrf.mxu0
      %v776 = vadd.f32 0.0, %v775
      %777 = vmatmul.bf16.gmra.mxu0 %v716
      %v778 = vpop.f32.mrf.mxu0
      %v779 = vadd.f32 0.0, %v778
      %v780 = vpop.f32.mrf.mxu0
      %v781 = vadd.f32 0.0, %v780
      %782 = vmatmul.bf16.gmra.mxu0 %v719
      %v783 = vpop.f32.mrf.mxu0
      %v784 = vadd.f32 0.0, %v783
      %v785 = vpop.f32.mrf.mxu0
      %v786 = vadd.f32 0.0, %v785
      %787 = vmatmul.bf16.gmra.mxu0 %v722
      %v788 = vpop.f32.mrf.mxu0
      %v789 = vadd.f32 0.0, %v788
      %v790 = vpop.f32.mrf.mxu0
      %v791 = vadd.f32 0.0, %v790
      %792 = vmatmul.bf16.gmra.mxu0 %v725
      %v793 = vpop.f32.mrf.mxu0
      %v794 = vadd.f32 0.0, %v793
      %v795 = vpop.f32.mrf.mxu0
      %v796 = vadd.f32 0.0, %v795
      %797 = vmatmul.bf16.gmra.mxu0 %v728
      %v798 = vpop.f32.mrf.mxu0
      %v799 = vadd.f32 0.0, %v798
      %v800 = vpop.f32.mrf.mxu0
      %v801 = vadd.f32 0.0, %v800
      %802 = vmatmul.bf16.gmra.mxu0 %v731
      %v803 = vpop.f32.mrf.mxu0
      %v804 = vadd.f32 0.0, %v803
      %v805 = vpop.f32.mrf.mxu0
      %v806 = vadd.f32 0.0, %v805
      %807 = vmatmul.bf16.gmra.mxu0 %v734
      %v808 = vpop.f32.mrf.mxu0
      %v809 = vadd.f32 0.0, %v808
      %v810 = vpop.f32.mrf.mxu0
      %v811 = vadd.f32 0.0, %v810
      %812 = vmatmul.bf16.gmra.mxu0 %v737
      %v813 = vpop.f32.mrf.mxu0
      %v814 = vadd.f32 0.0, %v813
      %v815 = vpop.f32.mrf.mxu0
      %v816 = vadd.f32 0.0, %v815
      %817 = vmatmul.bf16.gmra.mxu0 %v740
      %v818 = vpop.f32.mrf.mxu0
      %v819 = vadd.f32 0.0, %v818
      %v820 = vpop.f32.mrf.mxu0
      %v821 = vadd.f32 0.0, %v820
      %822 = vmatmul.bf16.gmra.mxu0 %v743
      %v823 = vpop.f32.mrf.mxu0
      %v824 = vadd.f32 0.0, %v823
      %v825 = vpop.f32.mrf.mxu0
      %v826 = vadd.f32 0.0, %v825
      %827 = vmatmul.bf16.gmra.mxu0 %v746
      %v828 = vpop.f32.mrf.mxu0
      %v829 = vadd.f32 0.0, %v828
      %v830 = vpop.f32.mrf.mxu0
      %v831 = vadd.f32 0.0, %v830
      %832 = vmatmul.bf16.gmra.mxu0 %v749
      %v833 = vpop.f32.mrf.mxu0
      %v834 = vadd.f32 0.0, %v833
      %v835 = vpop.f32.mrf.mxu0
      %v836 = vadd.f32 0.0, %v835
      %837 = vmatmul.bf16.gmra.mxu0 %v752
      %v838 = vpop.f32.mrf.mxu0
      %v839 = vadd.f32 0.0, %v838
      %v840 = vpop.f32.mrf.mxu0
      %v841 = vadd.f32 0.0, %v840
      %842 = vdwg.mxu0
      %v843 = vmax.f32 %v515, %v764
      %v844 = vmax.f32 %v517, %v766
      %v845 = vmax.f32 %v520, %v769
      %v846 = vmax.f32 %v522, %v771
      %v847 = vmax.f32 %v525, %v774
      %v848 = vmax.f32 %v527, %v776
      %v849 = vmax.f32 %v530, %v779
      %v850 = vmax.f32 %v532, %v781
      %v851 = vmax.f32 %v535, %v784
      %v852 = vmax.f32 %v537, %v786
      %v853 = vmax.f32 %v540, %v789
      %v854 = vmax.f32 %v542, %v791
      %v855 = vmax.f32 %v545, %v794
      %v856 = vmax.f32 %v547, %v796
      %v857 = vmax.f32 %v550, %v799
      %v858 = vmax.f32 %v552, %v801
      %v859 = vmax.f32 %v555, %v804
      %v860 = vmax.f32 %v557, %v806
      %v861 = vmax.f32 %v560, %v809
      %v862 = vmax.f32 %v562, %v811
      %v863 = vmax.f32 %v565, %v814
      %v864 = vmax.f32 %v567, %v816
      %v865 = vmax.f32 %v570, %v819
      %v866 = vmax.f32 %v572, %v821
      %v867 = vmax.f32 %v575, %v824
      %v868 = vmax.f32 %v577, %v826
      %v869 = vmax.f32 %v580, %v829
      %v870 = vmax.f32 %v582, %v831
      %v871 = vmax.f32 %v585, %v834
      %v872 = vmax.f32 %v587, %v836
      %v873 = vmax.f32 %v590, %v839
      %v874 = vmax.f32 %v592, %v841
      %v875 = vld [vmem:[%s307] sm:$0xf]
      %v876 = vld [vmem:[%s307 + $0x4] sm:$0xf]
      %v877 = vld [vmem:[%s307 + $0x8] sm:$0xf]
      %v878 = vld [vmem:[%s307 + $0xc] sm:$0xf]
      %v879 = vld [vmem:[%s307 + $0x10] sm:$0xf]
      %v880 = vld [vmem:[%s307 + $0x14] sm:$0xf]
      %v881 = vld [vmem:[%s307 + $0x18] sm:$0xf]
      %v882 = vld [vmem:[%s307 + $0x1c] sm:$0xf]
      %v883 = vld [vmem:[%s307 + $0x20] sm:$0xf]
      %v884 = vld [vmem:[%s307 + $0x24] sm:$0xf]
      %v885 = vld [vmem:[%s307 + $0x28] sm:$0xf]
      %v886 = vld [vmem:[%s307 + $0x2c] sm:$0xf]
      %v887 = vld [vmem:[%s307 + $0x30] sm:$0xf]
      %v888 = vld [vmem:[%s307 + $0x34] sm:$0xf]
      %v889 = vld [vmem:[%s307 + $0x38] sm:$0xf]
      %v890 = vld [vmem:[%s307 + $0x3c] sm:$0xf]
      %v891 = vld [vmem:[%s307 + $0x40] sm:$0xf]
      %v892 = vld [vmem:[%s307 + $0x44] sm:$0xf]
      %v893 = vld [vmem:[%s307 + $0x48] sm:$0xf]
      %v894 = vld [vmem:[%s307 + $0x4c] sm:$0xf]
      %v895 = vld [vmem:[%s307 + $0x50] sm:$0xf]
      %v896 = vld [vmem:[%s307 + $0x54] sm:$0xf]
      %v897 = vld [vmem:[%s307 + $0x58] sm:$0xf]
      %v898 = vld [vmem:[%s307 + $0x5c] sm:$0xf]
      %v899 = vld [vmem:[%s307 + $0x60] sm:$0xf]
      %v900 = vld [vmem:[%s307 + $0x64] sm:$0xf]
      %v901 = vld [vmem:[%s307 + $0x68] sm:$0xf]
      %v902 = vld [vmem:[%s307 + $0x6c] sm:$0xf]
      %v903 = vld [vmem:[%s307 + $0x70] sm:$0xf]
      %v904 = vld [vmem:[%s307 + $0x74] sm:$0xf]
      %v905 = vld [vmem:[%s307 + $0x78] sm:$0xf]
      %v906 = vld [vmem:[%s307 + $0x7c] sm:$0xf]
      %v939 = vunpack.c.l.b16 %v875
      %v940 = vunpack.c.l.b16 %v876
      %v941 = vunpack.c.l.b16 %v877
      %v942 = vunpack.c.l.b16 %v878
      %v943 = vunpack.c.l.b16 %v879
      %v944 = vunpack.c.l.b16 %v880
      %v945 = vunpack.c.l.b16 %v881
      %v946 = vunpack.c.l.b16 %v882
      %v947 = vunpack.c.l.b16 %v883
      %v948 = vunpack.c.l.b16 %v884
      %v949 = vunpack.c.l.b16 %v885
      %v950 = vunpack.c.l.b16 %v886
      %v951 = vunpack.c.l.b16 %v887
      %v952 = vunpack.c.l.b16 %v888
      %v953 = vunpack.c.l.b16 %v889
      %v954 = vunpack.c.l.b16 %v890
      %v955 = vunpack.c.l.b16 %v891
      %v956 = vunpack.c.l.b16 %v892
      %v957 = vunpack.c.l.b16 %v893
      %v958 = vunpack.c.l.b16 %v894
      %v959 = vunpack.c.l.b16 %v895
      %v960 = vunpack.c.l.b16 %v896
      %v961 = vunpack.c.l.b16 %v897
      %v962 = vunpack.c.l.b16 %v898
      %v963 = vunpack.c.l.b16 %v899
      %v964 = vunpack.c.l.b16 %v900
      %v965 = vunpack.c.l.b16 %v901
      %v966 = vunpack.c.l.b16 %v902
      %v967 = vunpack.c.l.b16 %v903
      %v968 = vunpack.c.l.b16 %v904
      %v969 = vunpack.c.l.b16 %v905
      %v970 = vunpack.c.l.b16 %v906
      %v971 = vpack.c.b16 %v940, %v939
      %v972 = vpack.c.b16 %v942, %v941
      %v973 = vpack.c.b16 %v944, %v943
      %v974 = vpack.c.b16 %v946, %v945
      %v975 = vpack.c.b16 %v948, %v947
      %v976 = vpack.c.b16 %v950, %v949
      %v977 = vpack.c.b16 %v952, %v951
      %v978 = vpack.c.b16 %v954, %v953
      %v979 = vpack.c.b16 %v956, %v955
      %v980 = vpack.c.b16 %v958, %v957
      %v981 = vpack.c.b16 %v960, %v959
      %v982 = vpack.c.b16 %v962, %v961
      %v983 = vpack.c.b16 %v964, %v963
      %v984 = vpack.c.b16 %v966, %v965
      %v985 = vpack.c.b16 %v968, %v967
      %v986 = vpack.c.b16 %v970, %v969
      %v988 = vsel %vm449, %v971, 0
      %v991 = vsel %vm449, %v972, 0
      %v994 = vsel %vm449, %v973, 0
      %v997 = vsel %vm449, %v974, 0
      %v1000 = vsel %vm449, %v975, 0
      %v1003 = vsel %vm449, %v976, 0
      %v1006 = vsel %vm449, %v977, 0
      %v1009 = vsel %vm449, %v978, 0
      %v1012 = vsel %vm449, %v979, 0
      %v1015 = vsel %vm449, %v980, 0
      %v1018 = vsel %vm449, %v981, 0
      %v1021 = vsel %vm449, %v982, 0
      %v1024 = vsel %vm449, %v983, 0
      %v1027 = vsel %vm449, %v984, 0
      %v1030 = vsel %vm449, %v985, 0
      %v1033 = vsel %vm449, %v986, 0
      %1035 = vmatpush.bf16.msra.mxu0 0
      %1036 = vmatpush.bf16.msra.mxu0 0
      %1037 = vmatpush.bf16.msra.mxu0 0
      %1038 = vmatpush.bf16.msra.mxu0 0
      %1039 = vmatpush.bf16.msra.mxu0 0
      %1040 = vmatpush.bf16.msra.mxu0 0
      %1041 = vmatpush.bf16.msra.mxu0 %v503
      %1042 = vmatpush.bf16.msra.mxu0 %v446
      %1043 = vmatmul.bf16.gmra.mxu0 %v988
      %v1044 = vpop.f32.mrf.mxu0
      %v1045 = vadd.f32 0.0, %v1044
      %v1046 = vpop.f32.mrf.mxu0
      %v1047 = vadd.f32 0.0, %v1046
      %1048 = vmatmul.bf16.gmra.mxu0 %v991
      %v1049 = vpop.f32.mrf.mxu0
      %v1050 = vadd.f32 0.0, %v1049
      %v1051 = vpop.f32.mrf.mxu0
      %v1052 = vadd.f32 0.0, %v1051
      %1053 = vmatmul.bf16.gmra.mxu0 %v994
      %v1054 = vpop.f32.mrf.mxu0
      %v1055 = vadd.f32 0.0, %v1054
      %v1056 = vpop.f32.mrf.mxu0
      %v1057 = vadd.f32 0.0, %v1056
      %1058 = vmatmul.bf16.gmra.mxu0 %v997
      %v1059 = vpop.f32.mrf.mxu0
      %v1060 = vadd.f32 0.0, %v1059
      %v1061 = vpop.f32.mrf.mxu0
      %v1062 = vadd.f32 0.0, %v1061
      %1063 = vmatmul.bf16.gmra.mxu0 %v1000
      %v1064 = vpop.f32.mrf.mxu0
      %v1065 = vadd.f32 0.0, %v1064
      %v1066 = vpop.f32.mrf.mxu0
      %v1067 = vadd.f32 0.0, %v1066
      %1068 = vmatmul.bf16.gmra.mxu0 %v1003
      %v1069 = vpop.f32.mrf.mxu0
      %v1070 = vadd.f32 0.0, %v1069
      %v1071 = vpop.f32.mrf.mxu0
      %v1072 = vadd.f32 0.0, %v1071
      %1073 = vmatmul.bf16.gmra.mxu0 %v1006
      %v1074 = vpop.f32.mrf.mxu0
      %v1075 = vadd.f32 0.0, %v1074
      %v1076 = vpop.f32.mrf.mxu0
      %v1077 = vadd.f32 0.0, %v1076
      %1078 = vmatmul.bf16.gmra.mxu0 %v1009
      %v1079 = vpop.f32.mrf.mxu0
      %v1080 = vadd.f32 0.0, %v1079
      %v1081 = vpop.f32.mrf.mxu0
      %v1082 = vadd.f32 0.0, %v1081
      %1083 = vmatmul.bf16.gmra.mxu0 %v1012
      %v1084 = vpop.f32.mrf.mxu0
      %v1085 = vadd.f32 0.0, %v1084
      %v1086 = vpop.f32.mrf.mxu0
      %v1087 = vadd.f32 0.0, %v1086
      %1088 = vmatmul.bf16.gmra.mxu0 %v1015
      %v1089 = vpop.f32.mrf.mxu0
      %v1090 = vadd.f32 0.0, %v1089
      %v1091 = vpop.f32.mrf.mxu0
      %v1092 = vadd.f32 0.0, %v1091
      %1093 = vmatmul.bf16.gmra.mxu0 %v1018
      %v1094 = vpop.f32.mrf.mxu0
      %v1095 = vadd.f32 0.0, %v1094
      %v1096 = vpop.f32.mrf.mxu0
      %v1097 = vadd.f32 0.0, %v1096
      %1098 = vmatmul.bf16.gmra.mxu0 %v1021
      %v1099 = vpop.f32.mrf.mxu0
      %v1100 = vadd.f32 0.0, %v1099
      %v1101 = vpop.f32.mrf.mxu0
      %v1102 = vadd.f32 0.0, %v1101
      %1103 = vmatmul.bf16.gmra.mxu0 %v1024
      %v1104 = vpop.f32.mrf.mxu0
      %v1105 = vadd.f32 0.0, %v1104
      %v1106 = vpop.f32.mrf.mxu0
      %v1107 = vadd.f32 0.0, %v1106
      %1108 = vmatmul.bf16.gmra.mxu0 %v1027
      %v1109 = vpop.f32.mrf.mxu0
      %v1110 = vadd.f32 0.0, %v1109
      %v1111 = vpop.f32.mrf.mxu0
      %v1112 = vadd.f32 0.0, %v1111
      %1113 = vmatmul.bf16.gmra.mxu0 %v1030
      %v1114 = vpop.f32.mrf.mxu0
      %v1115 = vadd.f32 0.0, %v1114
      %v1116 = vpop.f32.mrf.mxu0
      %v1117 = vadd.f32 0.0, %v1116
      %1118 = vmatmul.bf16.gmra.mxu0 %v1033
      %v1119 = vpop.f32.mrf.mxu0
      %v1120 = vadd.f32 0.0, %v1119
      %v1121 = vpop.f32.mrf.mxu0
      %v1122 = vadd.f32 0.0, %v1121
      %1123 = vdwg.mxu0
      %v1124 = vld [vmem:[%s313] sm:$0xf]
      %v1125 = vld [vmem:[%s313 + $0x4] sm:$0xf]
      %v1126 = vld [vmem:[%s313 + $0x8] sm:$0xf]
      %v1127 = vld [vmem:[%s313 + $0xc] sm:$0xf]
      %v1128 = vld [vmem:[%s313 + $0x10] sm:$0xf]
      %v1129 = vld [vmem:[%s313 + $0x14] sm:$0xf]
      %v1130 = vld [vmem:[%s313 + $0x18] sm:$0xf]
      %v1131 = vld [vmem:[%s313 + $0x1c] sm:$0xf]
      %v1132 = vld [vmem:[%s313 + $0x20] sm:$0xf]
      %v1133 = vld [vmem:[%s313 + $0x24] sm:$0xf]
      %v1134 = vld [vmem:[%s313 + $0x28] sm:$0xf]
      %v1135 = vld [vmem:[%s313 + $0x2c] sm:$0xf]
      %v1136 = vld [vmem:[%s313 + $0x30] sm:$0xf]
      %v1137 = vld [vmem:[%s313 + $0x34] sm:$0xf]
      %v1138 = vld [vmem:[%s313 + $0x38] sm:$0xf]
      %v1139 = vld [vmem:[%s313 + $0x3c] sm:$0xf]
      %v1140 = vld [vmem:[%s313 + $0x40] sm:$0xf]
      %v1141 = vld [vmem:[%s313 + $0x44] sm:$0xf]
      %v1142 = vld [vmem:[%s313 + $0x48] sm:$0xf]
      %v1143 = vld [vmem:[%s313 + $0x4c] sm:$0xf]
      %v1144 = vld [vmem:[%s313 + $0x50] sm:$0xf]
      %v1145 = vld [vmem:[%s313 + $0x54] sm:$0xf]
      %v1146 = vld [vmem:[%s313 + $0x58] sm:$0xf]
      %v1147 = vld [vmem:[%s313 + $0x5c] sm:$0xf]
      %v1148 = vld [vmem:[%s313 + $0x60] sm:$0xf]
      %v1149 = vld [vmem:[%s313 + $0x64] sm:$0xf]
      %v1150 = vld [vmem:[%s313 + $0x68] sm:$0xf]
      %v1151 = vld [vmem:[%s313 + $0x6c] sm:$0xf]
      %v1152 = vld [vmem:[%s313 + $0x70] sm:$0xf]
      %v1153 = vld [vmem:[%s313 + $0x74] sm:$0xf]
      %v1154 = vld [vmem:[%s313 + $0x78] sm:$0xf]
      %v1155 = vld [vmem:[%s313 + $0x7c] sm:$0xf]
      %v1188 = vunpack.c.l.b16 %v1124
      %v1189 = vunpack.c.l.b16 %v1125
      %v1190 = vunpack.c.l.b16 %v1126
      %v1191 = vunpack.c.l.b16 %v1127
      %v1192 = vunpack.c.l.b16 %v1128
      %v1193 = vunpack.c.l.b16 %v1129
      %v1194 = vunpack.c.l.b16 %v1130
      %v1195 = vunpack.c.l.b16 %v1131
      %v1196 = vunpack.c.l.b16 %v1132
      %v1197 = vunpack.c.l.b16 %v1133
      %v1198 = vunpack.c.l.b16 %v1134
      %v1199 = vunpack.c.l.b16 %v1135
      %v1200 = vunpack.c.l.b16 %v1136
      %v1201 = vunpack.c.l.b16 %v1137
      %v1202 = vunpack.c.l.b16 %v1138
      %v1203 = vunpack.c.l.b16 %v1139
      %v1204 = vunpack.c.l.b16 %v1140
      %v1205 = vunpack.c.l.b16 %v1141
      %v1206 = vunpack.c.l.b16 %v1142
      %v1207 = vunpack.c.l.b16 %v1143
      %v1208 = vunpack.c.l.b16 %v1144
      %v1209 = vunpack.c.l.b16 %v1145
      %v1210 = vunpack.c.l.b16 %v1146
      %v1211 = vunpack.c.l.b16 %v1147
      %v1212 = vunpack.c.l.b16 %v1148
      %v1213 = vunpack.c.l.b16 %v1149
      %v1214 = vunpack.c.l.b16 %v1150
      %v1215 = vunpack.c.l.b16 %v1151
      %v1216 = vunpack.c.l.b16 %v1152
      %v1217 = vunpack.c.l.b16 %v1153
      %v1218 = vunpack.c.l.b16 %v1154
      %v1219 = vunpack.c.l.b16 %v1155
      %v1220 = vpack.c.b16 %v1189, %v1188
      %v1221 = vpack.c.b16 %v1191, %v1190
      %v1222 = vpack.c.b16 %v1193, %v1192
      %v1223 = vpack.c.b16 %v1195, %v1194
      %v1224 = vpack.c.b16 %v1197, %v1196
      %v1225 = vpack.c.b16 %v1199, %v1198
      %v1226 = vpack.c.b16 %v1201, %v1200
      %v1227 = vpack.c.b16 %v1203, %v1202
      %v1228 = vpack.c.b16 %v1205, %v1204
      %v1229 = vpack.c.b16 %v1207, %v1206
      %v1230 = vpack.c.b16 %v1209, %v1208
      %v1231 = vpack.c.b16 %v1211, %v1210
      %v1232 = vpack.c.b16 %v1213, %v1212
      %v1233 = vpack.c.b16 %v1215, %v1214
      %v1234 = vpack.c.b16 %v1217, %v1216
      %v1235 = vpack.c.b16 %v1219, %v1218
      %v1237 = vsel %vm449, %v1220, 0
      %v1240 = vsel %vm449, %v1221, 0
      %v1243 = vsel %vm449, %v1222, 0
      %v1246 = vsel %vm449, %v1223, 0
      %v1249 = vsel %vm449, %v1224, 0
      %v1252 = vsel %vm449, %v1225, 0
      %v1255 = vsel %vm449, %v1226, 0
      %v1258 = vsel %vm449, %v1227, 0
      %v1261 = vsel %vm449, %v1228, 0
      %v1264 = vsel %vm449, %v1229, 0
      %v1267 = vsel %vm449, %v1230, 0
      %v1270 = vsel %vm449, %v1231, 0
      %v1273 = vsel %vm449, %v1232, 0
      %v1276 = vsel %vm449, %v1233, 0
      %v1279 = vsel %vm449, %v1234, 0
      %v1282 = vsel %vm449, %v1235, 0
      %1284 = vmatpush.bf16.msra.mxu0 0
      %1285 = vmatpush.bf16.msra.mxu0 0
      %1286 = vmatpush.bf16.msra.mxu0 0
      %1287 = vmatpush.bf16.msra.mxu0 0
      %1288 = vmatpush.bf16.msra.mxu0 0
      %1289 = vmatpush.bf16.msra.mxu0 0
      %1290 = vmatpush.bf16.msra.mxu0 %v503
      %1291 = vmatpush.bf16.msra.mxu0 %v446
      %1292 = vmatmul.bf16.gmra.mxu0 %v1237
      %v1293 = vpop.f32.mrf.mxu0
      %v1294 = vadd.f32 0.0, %v1293
      %v1295 = vpop.f32.mrf.mxu0
      %v1296 = vadd.f32 0.0, %v1295
      %1297 = vmatmul.bf16.gmra.mxu0 %v1240
      %v1298 = vpop.f32.mrf.mxu0
      %v1299 = vadd.f32 0.0, %v1298
      %v1300 = vpop.f32.mrf.mxu0
      %v1301 = vadd.f32 0.0, %v1300
      %1302 = vmatmul.bf16.gmra.mxu0 %v1243
      %v1303 = vpop.f32.mrf.mxu0
      %v1304 = vadd.f32 0.0, %v1303
      %v1305 = vpop.f32.mrf.mxu0
      %v1306 = vadd.f32 0.0, %v1305
      %1307 = vmatmul.bf16.gmra.mxu0 %v1246
      %v1308 = vpop.f32.mrf.mxu0
      %v1309 = vadd.f32 0.0, %v1308
      %v1310 = vpop.f32.mrf.mxu0
      %v1311 = vadd.f32 0.0, %v1310
      %1312 = vmatmul.bf16.gmra.mxu0 %v1249
      %v1313 = vpop.f32.mrf.mxu0
      %v1314 = vadd.f32 0.0, %v1313
      %v1315 = vpop.f32.mrf.mxu0
      %v1316 = vadd.f32 0.0, %v1315
      %1317 = vmatmul.bf16.gmra.mxu0 %v1252
      %v1318 = vpop.f32.mrf.mxu0
      %v1319 = vadd.f32 0.0, %v1318
      %v1320 = vpop.f32.mrf.mxu0
      %v1321 = vadd.f32 0.0, %v1320
      %1322 = vmatmul.bf16.gmra.mxu0 %v1255
      %v1323 = vpop.f32.mrf.mxu0
      %v1324 = vadd.f32 0.0, %v1323
      %v1325 = vpop.f32.mrf.mxu0
      %v1326 = vadd.f32 0.0, %v1325
      %1327 = vmatmul.bf16.gmra.mxu0 %v1258
      %v1328 = vpop.f32.mrf.mxu0
      %v1329 = vadd.f32 0.0, %v1328
      %v1330 = vpop.f32.mrf.mxu0
      %v1331 = vadd.f32 0.0, %v1330
      %1332 = vmatmul.bf16.gmra.mxu0 %v1261
      %v1333 = vpop.f32.mrf.mxu0
      %v1334 = vadd.f32 0.0, %v1333
      %v1335 = vpop.f32.mrf.mxu0
      %v1336 = vadd.f32 0.0, %v1335
      %1337 = vmatmul.bf16.gmra.mxu0 %v1264
      %v1338 = vpop.f32.mrf.mxu0
      %v1339 = vadd.f32 0.0, %v1338
      %v1340 = vpop.f32.mrf.mxu0
      %v1341 = vadd.f32 0.0, %v1340
      %1342 = vmatmul.bf16.gmra.mxu0 %v1267
      %v1343 = vpop.f32.mrf.mxu0
      %v1344 = vadd.f32 0.0, %v1343
      %v1345 = vpop.f32.mrf.mxu0
      %v1346 = vadd.f32 0.0, %v1345
      %1347 = vmatmul.bf16.gmra.mxu0 %v1270
      %v1348 = vpop.f32.mrf.mxu0
      %v1349 = vadd.f32 0.0, %v1348
      %v1350 = vpop.f32.mrf.mxu0
      %v1351 = vadd.f32 0.0, %v1350
      %1352 = vmatmul.bf16.gmra.mxu0 %v1273
      %v1353 = vpop.f32.mrf.mxu0
      %v1354 = vadd.f32 0.0, %v1353
      %v1355 = vpop.f32.mrf.mxu0
      %v1356 = vadd.f32 0.0, %v1355
      %1357 = vmatmul.bf16.gmra.mxu0 %v1276
      %v1358 = vpop.f32.mrf.mxu0
      %v1359 = vadd.f32 0.0, %v1358
      %v1360 = vpop.f32.mrf.mxu0
      %v1361 = vadd.f32 0.0, %v1360
      %1362 = vmatmul.bf16.gmra.mxu0 %v1279
      %v1363 = vpop.f32.mrf.mxu0
      %v1364 = vadd.f32 0.0, %v1363
      %v1365 = vpop.f32.mrf.mxu0
      %v1366 = vadd.f32 0.0, %v1365
      %1367 = vmatmul.bf16.gmra.mxu0 %v1282
      %v1368 = vpop.f32.mrf.mxu0
      %v1369 = vadd.f32 0.0, %v1368
      %v1370 = vpop.f32.mrf.mxu0
      %v1371 = vadd.f32 0.0, %v1370
      %1372 = vdwg.mxu0
      %v1373 = vmax.f32 %v1045, %v1294
      %v1374 = vmax.f32 %v1047, %v1296
      %v1375 = vmax.f32 %v1050, %v1299
      %v1376 = vmax.f32 %v1052, %v1301
      %v1377 = vmax.f32 %v1055, %v1304
      %v1378 = vmax.f32 %v1057, %v1306
      %v1379 = vmax.f32 %v1060, %v1309
      %v1380 = vmax.f32 %v1062, %v1311
      %v1381 = vmax.f32 %v1065, %v1314
      %v1382 = vmax.f32 %v1067, %v1316
      %v1383 = vmax.f32 %v1070, %v1319
      %v1384 = vmax.f32 %v1072, %v1321
      %v1385 = vmax.f32 %v1075, %v1324
      %v1386 = vmax.f32 %v1077, %v1326
      %v1387 = vmax.f32 %v1080, %v1329
      %v1388 = vmax.f32 %v1082, %v1331
      %v1389 = vmax.f32 %v1085, %v1334
      %v1390 = vmax.f32 %v1087, %v1336
      %v1391 = vmax.f32 %v1090, %v1339
      %v1392 = vmax.f32 %v1092, %v1341
      %v1393 = vmax.f32 %v1095, %v1344
      %v1394 = vmax.f32 %v1097, %v1346
      %v1395 = vmax.f32 %v1100, %v1349
      %v1396 = vmax.f32 %v1102, %v1351
      %v1397 = vmax.f32 %v1105, %v1354
      %v1398 = vmax.f32 %v1107, %v1356
      %v1399 = vmax.f32 %v1110, %v1359
      %v1400 = vmax.f32 %v1112, %v1361
      %v1401 = vmax.f32 %v1115, %v1364
      %v1402 = vmax.f32 %v1117, %v1366
      %v1403 = vmax.f32 %v1120, %v1369
      %v1404 = vmax.f32 %v1122, %v1371
      %v1405 = vmax.f32 %v843, %v1373
      %v1406 = vmax.f32 %v844, %v1374
      %v1407 = vmax.f32 %v845, %v1375
      %v1408 = vmax.f32 %v846, %v1376
      %v1409 = vmax.f32 %v847, %v1377
      %v1410 = vmax.f32 %v848, %v1378
      %v1411 = vmax.f32 %v849, %v1379
      %v1412 = vmax.f32 %v850, %v1380
      %v1413 = vmax.f32 %v851, %v1381
      %v1414 = vmax.f32 %v852, %v1382
      %v1415 = vmax.f32 %v853, %v1383
      %v1416 = vmax.f32 %v854, %v1384
      %v1417 = vmax.f32 %v855, %v1385
      %v1418 = vmax.f32 %v856, %v1386
      %v1419 = vmax.f32 %v857, %v1387
      %v1420 = vmax.f32 %v858, %v1388
      %v1421 = vmax.f32 %v859, %v1389
      %v1422 = vmax.f32 %v860, %v1390
      %v1423 = vmax.f32 %v861, %v1391
      %v1424 = vmax.f32 %v862, %v1392
      %v1425 = vmax.f32 %v863, %v1393
      %v1426 = vmax.f32 %v864, %v1394
      %v1427 = vmax.f32 %v865, %v1395
      %v1428 = vmax.f32 %v866, %v1396
      %v1429 = vmax.f32 %v867, %v1397
      %v1430 = vmax.f32 %v868, %v1398
      %v1431 = vmax.f32 %v869, %v1399
      %v1432 = vmax.f32 %v870, %v1400
      %v1433 = vmax.f32 %v871, %v1401
      %v1434 = vmax.f32 %v872, %v1402
      %v1435 = vmax.f32 %v873, %v1403
      %v1436 = vmax.f32 %v874, %v1404
      %v1437 = vld [vmem:[%s5] sm:$0x1]
      %v1439 = vperm.slane %v1437, 0
      %v1441 = vadd.f32 %v1405, %v1439
      %v1442 = vadd.f32 %v1406, %v1439
      %v1443 = vadd.f32 %v1407, %v1439
      %v1444 = vadd.f32 %v1408, %v1439
      %v1445 = vadd.f32 %v1409, %v1439
      %v1446 = vadd.f32 %v1410, %v1439
      %v1447 = vadd.f32 %v1411, %v1439
      %v1448 = vadd.f32 %v1412, %v1439
      %v1449 = vadd.f32 %v1413, %v1439
      %v1450 = vadd.f32 %v1414, %v1439
      %v1451 = vadd.f32 %v1415, %v1439
      %v1452 = vadd.f32 %v1416, %v1439
      %v1453 = vadd.f32 %v1417, %v1439
      %v1454 = vadd.f32 %v1418, %v1439
      %v1455 = vadd.f32 %v1419, %v1439
      %v1456 = vadd.f32 %v1420, %v1439
      %v1457 = vadd.f32 %v1421, %v1439
      %v1458 = vadd.f32 %v1422, %v1439
      %v1459 = vadd.f32 %v1423, %v1439
      %v1460 = vadd.f32 %v1424, %v1439
      %v1461 = vadd.f32 %v1425, %v1439
      %v1462 = vadd.f32 %v1426, %v1439
      %v1463 = vadd.f32 %v1427, %v1439
      %v1464 = vadd.f32 %v1428, %v1439
      %v1465 = vadd.f32 %v1429, %v1439
      %v1466 = vadd.f32 %v1430, %v1439
      %v1467 = vadd.f32 %v1431, %v1439
      %v1468 = vadd.f32 %v1432, %v1439
      %v1469 = vadd.f32 %v1433, %v1439
      %v1470 = vadd.f32 %v1434, %v1439
      %v1471 = vadd.f32 %v1435, %v1439
      %v1472 = vadd.f32 %v1436, %v1439
      %v1473 = vmax.f32 %v1441, 0.0
      %v1474 = vmax.f32 %v1442, 0.0
      %v1475 = vmax.f32 %v1443, 0.0
      %v1476 = vmax.f32 %v1444, 0.0
      %v1477 = vmax.f32 %v1445, 0.0
      %v1478 = vmax.f32 %v1446, 0.0
      %v1479 = vmax.f32 %v1447, 0.0
      %v1480 = vmax.f32 %v1448, 0.0
      %v1481 = vmax.f32 %v1449, 0.0
      %v1482 = vmax.f32 %v1450, 0.0
      %v1483 = vmax.f32 %v1451, 0.0
      %v1484 = vmax.f32 %v1452, 0.0
      %v1485 = vmax.f32 %v1453, 0.0
      %v1486 = vmax.f32 %v1454, 0.0
      %v1487 = vmax.f32 %v1455, 0.0
      %v1488 = vmax.f32 %v1456, 0.0
      %v1489 = vmax.f32 %v1457, 0.0
      %v1490 = vmax.f32 %v1458, 0.0
      %v1491 = vmax.f32 %v1459, 0.0
      %v1492 = vmax.f32 %v1460, 0.0
      %v1493 = vmax.f32 %v1461, 0.0
      %v1494 = vmax.f32 %v1462, 0.0
      %v1495 = vmax.f32 %v1463, 0.0
      %v1496 = vmax.f32 %v1464, 0.0
      %v1497 = vmax.f32 %v1465, 0.0
      %v1498 = vmax.f32 %v1466, 0.0
      %v1499 = vmax.f32 %v1467, 0.0
      %v1500 = vmax.f32 %v1468, 0.0
      %v1501 = vmax.f32 %v1469, 0.0
      %v1502 = vmax.f32 %v1470, 0.0
      %v1503 = vmax.f32 %v1471, 0.0
      %v1504 = vmax.f32 %v1472, 0.0
      %v1505 = vpack.c.bf16 %v1473, %v1473
      %v1506 = vpack.c.bf16 %v1474, %v1474
      %v1507 = vpack.c.bf16 %v1475, %v1475
      %v1508 = vpack.c.bf16 %v1476, %v1476
      %v1509 = vpack.c.bf16 %v1477, %v1477
      %v1510 = vpack.c.bf16 %v1478, %v1478
      %v1511 = vpack.c.bf16 %v1479, %v1479
      %v1512 = vpack.c.bf16 %v1480, %v1480
      %v1513 = vpack.c.bf16 %v1481, %v1481
      %v1514 = vpack.c.bf16 %v1482, %v1482
      %v1515 = vpack.c.bf16 %v1483, %v1483
      %v1516 = vpack.c.bf16 %v1484, %v1484
      %v1517 = vpack.c.bf16 %v1485, %v1485
      %v1518 = vpack.c.bf16 %v1486, %v1486
      %v1519 = vpack.c.bf16 %v1487, %v1487
      %v1520 = vpack.c.bf16 %v1488, %v1488
      %v1521 = vpack.c.bf16 %v1489, %v1489
      %v1522 = vpack.c.bf16 %v1490, %v1490
      %v1523 = vpack.c.bf16 %v1491, %v1491
      %v1524 = vpack.c.bf16 %v1492, %v1492
      %v1525 = vpack.c.bf16 %v1493, %v1493
      %v1526 = vpack.c.bf16 %v1494, %v1494
      %v1527 = vpack.c.bf16 %v1495, %v1495
      %v1528 = vpack.c.bf16 %v1496, %v1496
      %v1529 = vpack.c.bf16 %v1497, %v1497
      %v1530 = vpack.c.bf16 %v1498, %v1498
      %v1531 = vpack.c.bf16 %v1499, %v1499
      %v1532 = vpack.c.bf16 %v1500, %v1500
      %v1533 = vpack.c.bf16 %v1501, %v1501
      %v1534 = vpack.c.bf16 %v1502, %v1502
      %v1535 = vpack.c.bf16 %v1503, %v1503
      %v1536 = vpack.c.bf16 %v1504, %v1504
      %vm1537 = vcmask 257024
      %1538 = vst.msk [vmem:[%s319] sm:$0xf] %vm1537, %v1505
      %1539 = vst.msk [vmem:[%s319 + $0x4] sm:$0xf] %vm1537, %v1506
      %1540 = vst.msk [vmem:[%s319 + $0x8] sm:$0xf] %vm1537, %v1507
      %1541 = vst.msk [vmem:[%s319 + $0xc] sm:$0xf] %vm1537, %v1508
      %1542 = vst.msk [vmem:[%s319 + $0x10] sm:$0xf] %vm1537, %v1509
      %1543 = vst.msk [vmem:[%s319 + $0x14] sm:$0xf] %vm1537, %v1510
      %1544 = vst.msk [vmem:[%s319 + $0x18] sm:$0xf] %vm1537, %v1511
      %1545 = vst.msk [vmem:[%s319 + $0x1c] sm:$0xf] %vm1537, %v1512
      %1546 = vst.msk [vmem:[%s319 + $0x20] sm:$0xf] %vm1537, %v1513
      %1547 = vst.msk [vmem:[%s319 + $0x24] sm:$0xf] %vm1537, %v1514
      %1548 = vst.msk [vmem:[%s319 + $0x28] sm:$0xf] %vm1537, %v1515
      %1549 = vst.msk [vmem:[%s319 + $0x2c] sm:$0xf] %vm1537, %v1516
      %1550 = vst.msk [vmem:[%s319 + $0x30] sm:$0xf] %vm1537, %v1517
      %1551 = vst.msk [vmem:[%s319 + $0x34] sm:$0xf] %vm1537, %v1518
      %1552 = vst.msk [vmem:[%s319 + $0x38] sm:$0xf] %vm1537, %v1519
      %1553 = vst.msk [vmem:[%s319 + $0x3c] sm:$0xf] %vm1537, %v1520
      %1554 = vst.msk [vmem:[%s319 + $0x40] sm:$0xf] %vm1537, %v1521
      %1555 = vst.msk [vmem:[%s319 + $0x44] sm:$0xf] %vm1537, %v1522
      %1556 = vst.msk [vmem:[%s319 + $0x48] sm:$0xf] %vm1537, %v1523
      %1557 = vst.msk [vmem:[%s319 + $0x4c] sm:$0xf] %vm1537, %v1524
      %1558 = vst.msk [vmem:[%s319 + $0x50] sm:$0xf] %vm1537, %v1525
      %1559 = vst.msk [vmem:[%s319 + $0x54] sm:$0xf] %vm1537, %v1526
      %1560 = vst.msk [vmem:[%s319 + $0x58] sm:$0xf] %vm1537, %v1527
      %1561 = vst.msk [vmem:[%s319 + $0x5c] sm:$0xf] %vm1537, %v1528
      %1562 = vst.msk [vmem:[%s319 + $0x60] sm:$0xf] %vm1537, %v1529
      %1563 = vst.msk [vmem:[%s319 + $0x64] sm:$0xf] %vm1537, %v1530
      %1564 = vst.msk [vmem:[%s319 + $0x68] sm:$0xf] %vm1537, %v1531
      %1565 = vst.msk [vmem:[%s319 + $0x6c] sm:$0xf] %vm1537, %v1532
      %1566 = vst.msk [vmem:[%s319 + $0x70] sm:$0xf] %vm1537, %v1533
      %1567 = vst.msk [vmem:[%s319 + $0x74] sm:$0xf] %vm1537, %v1534
      %1568 = vst.msk [vmem:[%s319 + $0x78] sm:$0xf] %vm1537, %v1535
      %1569 = vst.msk [vmem:[%s319 + $0x7c] sm:$0xf] %vm1537, %v1536
      %s1570 = smul.u32 32, %s17
      %p1571 = scmp.lt.s32.totalorder %s1570, 63
      %s1572 = scalar_select %p1571, %s1570, 63
      %s1573 = smul.addr %s1572, 4
      %s1574 = scalar_lea.vmem %s6, %s1573
      // Predicated region
      $region45: #{complex_cnn_forward.3} parent=43 // pred_check
        %p1575 = pneg %p181
      $region46: #{complex_cnn_forward.3} parent=43 // pred_check_branch
        %1577 = sbr.rel (%p1575) target = $region48
      $region47: #{complex_cnn_forward.3} parent=43 // pred_region
        %s1578 = smul.u32 32, %s17
      $region48: #{complex_cnn_forward.3} parent=43 // pred_fallthru
        _
    $region44: #{complex_cnn_forward.3} parent=5 // pred_fallthru
      _
    %p1579 = scmp.le.s32.totalorder 2, %s12
    // Predicated region
    $region49: #{complex_cnn_forward.3} parent=5 // pred_check
      %p1580 = pneg %p1579
    $region50: #{complex_cnn_forward.3} parent=5 // pred_check_branch
      %1582 = sbr.rel (%p1580) target = $region52
    $region51: #{complex_cnn_forward.3} parent=5 // pred_region
      %s1583 = ssub.s32 %s12, 2
      // Predicated region
      $region53: #{complex_cnn_forward.3} parent=51 // pred_check
        %p1584 = pneg %p187
      $region54: #{complex_cnn_forward.3} parent=51 // pred_check_branch
        %1586 = sbr.rel (%p1584) target = $region56
      $region55: #{complex_cnn_forward.3} parent=51 // pred_region
        %s1587 = smul.u32 32, %s18
        %p1588 = scmp.lt.s32.totalorder %s1587, 63
        %s1589 = scalar_select %p1588, %s1587, 63
        %s1590 = smul.addr %s1589, 4
        %s1591 = scalar_lea.vmem %s6, %s1590
      $region56: #{complex_cnn_forward.3} parent=51 // pred_fallthru
        _
    $region52: #{complex_cnn_forward.3} parent=5 // pred_fallthru
      _
  $region6: #{complex_cnn_forward.3} parent=0 // loop_footer
    %s16 = sadd.s32 1, %s12
  $region7: #{complex_cnn_forward.3} parent=0 // loop_footer_branch
    %11 = sbr.rel target = $region3
  $region8: #{complex_cnn_forward.3} parent=0 // loop_exit
    _

// kernel: complex_cnn_forward.4
$region0: #{complex_cnn_forward.4}
  #allocation0 [shape = 'u32[]', space=smem, size = 0x4, offset = 0x4, fixed_abs, tag = 'smem constant byte address 0x4 - core index']
  #allocation1 [shape = 'u32[72,128]{1,0:T(1,128)}', space=vmem, size = 0x9000, scoped, tag = 'internal scratch']
  %s0 = inlined_call_operand.vmem [shape: bf16[128,288], index: 0, kind: input, shape index: {}]
  %s1 = inlined_call_operand.vmem [shape: bf16[128,288], index: 1, kind: input, shape index: {}]
  %s2 = inlined_call_operand.vmem [shape: bf16[128,288], index: 2, kind: input, shape index: {}]
  %s3 = inlined_call_operand.vmem [shape: bf16[128,288], index: 3, kind: input, shape index: {}]
  %s4 = inlined_call_operand.vmem [shape: bf16[288,64], index: 4, kind: input, shape index: {}]
  %s5 = inlined_call_operand.vmem [shape: f32[1,64], index: 5, kind: input, shape index: {}]
  %s6 = inlined_call_operand.vmem [shape: bf16[128,64], index: 6, kind: output, shape index: {}]
  %s7 = sld [smem:[#allocation0]]
  $region57: #{complex_cnn_forward.4} parent=0
    _
  %s9 = ssub.s32 1, %s7
  %s10 = scalar_select 0, %s9, %s7
  loop: start=0, step=1, limit=4
  $region2: #{complex_cnn_forward.4} parent=0 // loop_pre_header
    _
  $region3: #{complex_cnn_forward.4} parent=0 // loop_header
    %s12 = sphi 0, %s16
    %p13 = scmp.ge.s32.totalorder %s12, 4
    %s22 = sphi 0, %s24
    %s25 = sphi 0, %s22
    %s26 = sphi 0, %s25
    %s42 = sphi 0, %s26
    %s48 = sphi 0, %s50
    %s51 = sphi 0, %s48
    %s52 = sphi 0, %s51
    %s68 = sphi 0, %s52
    %s74 = sphi 0, %s76
    %s77 = sphi 0, %s74
    %s78 = sphi 0, %s77
    %s94 = sphi 0, %s78
    %s100 = sphi 0, %s102
    %s103 = sphi 0, %s100
    %s104 = sphi 0, %s103
    %s120 = sphi 0, %s104
    %s124 = sphi 0, %s124
    %s126 = sphi 0, %s124
    %s127 = sphi 0, %s126
    %s141 = sphi 0, %s127
    %s145 = sphi 0, %s145
    %s147 = sphi 0, %s145
    %s148 = sphi 0, %s147
    %s162 = sphi 0, %s148
    %s168 = sphi 0, %s170
    %s171 = sphi 0, %s168
    %s172 = sphi 0, %s171
    %s188 = sphi 0, %s172
  $region4: #{complex_cnn_forward.4} parent=0 // loop_header_branch
    %15 = sbr.rel (%p13) target = $region8
  $region5: #{complex_cnn_forward.4} parent=0 // loop_body
    %s17 = ssub.s32 %s12, 1
    %s18 = ssub.s32 %s12, 2
    %s19 = sadd.s32 %s12, 1
    %s20 = ssub.s32 %s12, %s19
    %p21 = scmp.eq.s32.totalorder %s20, 0
    %s23 = sadd.s32 %s22, 1
    %s24 = scalar_select %p21, %s22, %s23
    %p27 = pneg %p21
    %p28 = scmp.eq.s32.totalorder %s12, 1
    %p29 = por %p27, %p28
    %p30 = scmp.ne.s32.totalorder %s22, %s25
    %p31 = scmp.eq.s32.totalorder %s12, 0
    %p32 = por %p30, %p31
    %p33 = scmp.ne.s32.totalorder %s22, %s25
    %p34 = scmp.eq.s32.totalorder %s17, 1
    %p35 = por %p33, %p34
    %p36 = scmp.ne.s32.totalorder %s25, %s26
    %p37 = scmp.eq.s32.totalorder %s17, 0
    %p38 = por %p36, %p37
    %p39 = scmp.ne.s32.totalorder %s25, %s26
    %p40 = scmp.eq.s32.totalorder %s18, 1
    %p41 = por %p39, %p40
    %p43 = scmp.ne.s32.totalorder %s26, %s42
    %p44 = scmp.eq.s32.totalorder %s18, 0
    %p45 = por %p43, %p44
    %s46 = ssub.s32 %s12, %s19
    %p47 = scmp.eq.s32.totalorder %s46, 0
    %s49 = sadd.s32 %s48, 1
    %s50 = scalar_select %p47, %s48, %s49
    %p53 = pneg %p47
    %p54 = scmp.eq.s32.totalorder %s12, 1
    %p55 = por %p53, %p54
    %p56 = scmp.ne.s32.totalorder %s48, %s51
    %p57 = scmp.eq.s32.totalorder %s12, 0
    %p58 = por %p56, %p57
    %p59 = scmp.ne.s32.totalorder %s48, %s51
    %p60 = scmp.eq.s32.totalorder %s17, 1
    %p61 = por %p59, %p60
    %p62 = scmp.ne.s32.totalorder %s51, %s52
    %p63 = scmp.eq.s32.totalorder %s17, 0
    %p64 = por %p62, %p63
    %p65 = scmp.ne.s32.totalorder %s51, %s52
    %p66 = scmp.eq.s32.totalorder %s18, 1
    %p67 = por %p65, %p66
    %p69 = scmp.ne.s32.totalorder %s52, %s68
    %p70 = scmp.eq.s32.totalorder %s18, 0
    %p71 = por %p69, %p70
    %s72 = ssub.s32 %s12, %s19
    %p73 = scmp.eq.s32.totalorder %s72, 0
    %s75 = sadd.s32 %s74, 1
    %s76 = scalar_select %p73, %s74, %s75
    %p79 = pneg %p73
    %p80 = scmp.eq.s32.totalorder %s12, 1
    %p81 = por %p79, %p80
    %p82 = scmp.ne.s32.totalorder %s74, %s77
    %p83 = scmp.eq.s32.totalorder %s12, 0
    %p84 = por %p82, %p83
    %p85 = scmp.ne.s32.totalorder %s74, %s77
    %p86 = scmp.eq.s32.totalorder %s17, 1
    %p87 = por %p85, %p86
    %p88 = scmp.ne.s32.totalorder %s77, %s78
    %p89 = scmp.eq.s32.totalorder %s17, 0
    %p90 = por %p88, %p89
    %p91 = scmp.ne.s32.totalorder %s77, %s78
    %p92 = scmp.eq.s32.totalorder %s18, 1
    %p93 = por %p91, %p92
    %p95 = scmp.ne.s32.totalorder %s78, %s94
    %p96 = scmp.eq.s32.totalorder %s18, 0
    %p97 = por %p95, %p96
    %s98 = ssub.s32 %s12, %s19
    %p99 = scmp.eq.s32.totalorder %s98, 0
    %s101 = sadd.s32 %s100, 1
    %s102 = scalar_select %p99, %s100, %s101
    %p105 = pneg %p99
    %p106 = scmp.eq.s32.totalorder %s12, 1
    %p107 = por %p105, %p106
    %p108 = scmp.ne.s32.totalorder %s100, %s103
    %p109 = scmp.eq.s32.totalorder %s12, 0
    %p110 = por %p108, %p109
    %p111 = scmp.ne.s32.totalorder %s100, %s103
    %p112 = scmp.eq.s32.totalorder %s17, 1
    %p113 = por %p111, %p112
    %p114 = scmp.ne.s32.totalorder %s103, %s104
    %p115 = scmp.eq.s32.totalorder %s17, 0
    %p116 = por %p114, %p115
    %p117 = scmp.ne.s32.totalorder %s103, %s104
    %p118 = scmp.eq.s32.totalorder %s18, 1
    %p119 = por %p117, %p118
    %p121 = scmp.ne.s32.totalorder %s104, %s120
    %p122 = scmp.eq.s32.totalorder %s18, 0
    %p123 = por %p121, %p122
    %s125 = sadd.s32 %s124, 1
    %p128 = scmp.eq.s32.totalorder %s12, 1
    %p129 = scmp.ne.s32.totalorder %s124, %s126
    %p130 = scmp.eq.s32.totalorder %s12, 0
    %p131 = por %p129, %p130
    %p132 = scmp.ne.s32.totalorder %s124, %s126
    %p133 = scmp.eq.s32.totalorder %s17, 1
    %p134 = por %p132, %p133
    %p135 = scmp.ne.s32.totalorder %s126, %s127
    %p136 = scmp.eq.s32.totalorder %s17, 0
    %p137 = por %p135, %p136
    %p138 = scmp.ne.s32.totalorder %s126, %s127
    %p139 = scmp.eq.s32.totalorder %s18, 1
    %p140 = por %p138, %p139
    %p142 = scmp.ne.s32.totalorder %s127, %s141
    %p143 = scmp.eq.s32.totalorder %s18, 0
    %p144 = por %p142, %p143
    %s146 = sadd.s32 %s145, 1
    %p149 = scmp.eq.s32.totalorder %s12, 1
    %p150 = scmp.ne.s32.totalorder %s145, %s147
    %p151 = scmp.eq.s32.totalorder %s12, 0
    %p152 = por %p150, %p151
    %p153 = scmp.ne.s32.totalorder %s145, %s147
    %p154 = scmp.eq.s32.totalorder %s17, 1
    %p155 = por %p153, %p154
    %p156 = scmp.ne.s32.totalorder %s147, %s148
    %p157 = scmp.eq.s32.totalorder %s17, 0
    %p158 = por %p156, %p157
    %p159 = scmp.ne.s32.totalorder %s147, %s148
    %p160 = scmp.eq.s32.totalorder %s18, 1
    %p161 = por %p159, %p160
    %p163 = scmp.ne.s32.totalorder %s148, %s162
    %p164 = scmp.eq.s32.totalorder %s18, 0
    %p165 = por %p163, %p164
    %s166 = ssub.s32 %s12, %s19
    %p167 = scmp.eq.s32.totalorder %s166, 0
    %s169 = sadd.s32 %s168, 1
    %s170 = scalar_select %p167, %s168, %s169
    %p173 = pneg %p167
    %p174 = scmp.eq.s32.totalorder %s12, 1
    %p175 = por %p173, %p174
    %p176 = scmp.ne.s32.totalorder %s168, %s171
    %p177 = scmp.eq.s32.totalorder %s12, 0
    %p178 = por %p176, %p177
    %p179 = scmp.ne.s32.totalorder %s168, %s171
    %p180 = scmp.eq.s32.totalorder %s17, 1
    %p181 = por %p179, %p180
    %p182 = scmp.ne.s32.totalorder %s171, %s172
    %p183 = scmp.eq.s32.totalorder %s17, 0
    %p184 = por %p182, %p183
    %p185 = scmp.ne.s32.totalorder %s171, %s172
    %p186 = scmp.eq.s32.totalorder %s18, 1
    %p187 = por %p185, %p186
    %p189 = scmp.ne.s32.totalorder %s172, %s188
    %p190 = scmp.eq.s32.totalorder %s18, 0
    %p191 = por %p189, %p190
    %p192 = scmp.le.s32.totalorder 1, %s12
    %p193 = scmp.lt.s32.totalorder %s12, 3
    %p194 = pnand %p192, %p193
    %p195 = pneg %p194
    // Predicated region
    $region9: #{complex_cnn_forward.4} parent=5 // pred_check
      _
    $region10: #{complex_cnn_forward.4} parent=5 // pred_check_branch
      %197 = sbr.rel (%p194) target = $region12
    $region11: #{complex_cnn_forward.4} parent=5 // pred_region
      %s198 = ssub.s32 %s12, 1
      // Predicated region
      $region13: #{complex_cnn_forward.4} parent=11 // pred_check
        %p199 = pneg %p137
      $region14: #{complex_cnn_forward.4} parent=11 // pred_check_branch
        %201 = sbr.rel (%p199) target = $region16
      $region15: #{complex_cnn_forward.4} parent=11 // pred_region
        _
      $region16: #{complex_cnn_forward.4} parent=11 // pred_fallthru
        _
      // Predicated region
      $region17: #{complex_cnn_forward.4} parent=11 // pred_check
        %p202 = pneg %p158
      $region18: #{complex_cnn_forward.4} parent=11 // pred_check_branch
        %204 = sbr.rel (%p202) target = $region20
      $region19: #{complex_cnn_forward.4} parent=11 // pred_region
        _
      $region20: #{complex_cnn_forward.4} parent=11 // pred_fallthru
        _
    $region12: #{complex_cnn_forward.4} parent=5 // pred_fallthru
      _
    %p205 = scmp.lt.s32.totalorder %s12, 2
    // Predicated region
    $region21: #{complex_cnn_forward.4} parent=5 // pred_check
      %p206 = pneg %p205
    $region22: #{complex_cnn_forward.4} parent=5 // pred_check_branch
      %208 = sbr.rel (%p206) target = $region24
    $region23: #{complex_cnn_forward.4} parent=5 // pred_region
      // Predicated region
      $region25: #{complex_cnn_forward.4} parent=23 // pred_check
        %p209 = pneg %p32
      $region26: #{complex_cnn_forward.4} parent=23 // pred_check_branch
        %211 = sbr.rel (%p209) target = $region28
      $region27: #{complex_cnn_forward.4} parent=23 // pred_region
        %s212 = smul.u32 8, %s12
        %p213 = scmp.lt.s32.totalorder %s212, 15
        %s214 = scalar_select %p213, %s212, 15
        %s215 = smul.addr %s214, 3
        %s216 = smul.addr %s215, 4
        %s217 = scalar_lea.vmem %s0, %s216
        %s218 = smul.u32 8, %s12
      $region28: #{complex_cnn_forward.4} parent=23 // pred_fallthru
        _
      // Predicated region
      $region29: #{complex_cnn_forward.4} parent=23 // pred_check
        %p219 = pneg %p58
      $region30: #{complex_cnn_forward.4} parent=23 // pred_check_branch
        %221 = sbr.rel (%p219) target = $region32
      $region31: #{complex_cnn_forward.4} parent=23 // pred_region
        %s222 = smul.u32 8, %s12
        %p223 = scmp.lt.s32.totalorder %s222, 15
        %s224 = scalar_select %p223, %s222, 15
        %s225 = smul.addr %s224, 3
        %s226 = smul.addr %s225, 4
        %s227 = scalar_lea.vmem %s1, %s226
        %s228 = smul.u32 8, %s12
      $region32: #{complex_cnn_forward.4} parent=23 // pred_fallthru
        _
      // Predicated region
      $region33: #{complex_cnn_forward.4} parent=23 // pred_check
        %p229 = pneg %p84
      $region34: #{complex_cnn_forward.4} parent=23 // pred_check_branch
        %231 = sbr.rel (%p229) target = $region36
      $region35: #{complex_cnn_forward.4} parent=23 // pred_region
        %s232 = smul.u32 8, %s12
        %p233 = scmp.lt.s32.totalorder %s232, 15
        %s234 = scalar_select %p233, %s232, 15
        %s235 = smul.addr %s234, 3
        %s236 = smul.addr %s235, 4
        %s237 = scalar_lea.vmem %s2, %s236
        %s238 = smul.u32 8, %s12
      $region36: #{complex_cnn_forward.4} parent=23 // pred_fallthru
        _
      // Predicated region
      $region37: #{complex_cnn_forward.4} parent=23 // pred_check
        %p239 = pneg %p110
      $region38: #{complex_cnn_forward.4} parent=23 // pred_check_branch
        %241 = sbr.rel (%p239) target = $region40
      $region39: #{complex_cnn_forward.4} parent=23 // pred_region
        %s242 = smul.u32 8, %s12
        %p243 = scmp.lt.s32.totalorder %s242, 15
        %s244 = scalar_select %p243, %s242, 15
        %s245 = smul.addr %s244, 3
        %s246 = smul.addr %s245, 4
        %s247 = scalar_lea.vmem %s3, %s246
        %s248 = smul.u32 8, %s12
      $region40: #{complex_cnn_forward.4} parent=23 // pred_fallthru
        _
    $region24: #{complex_cnn_forward.4} parent=5 // pred_fallthru
      _
    %p249 = scmp.le.s32.totalorder 1, %s12
    %p250 = scmp.lt.s32.totalorder %s12, 3
    %p251 = pnand %p249, %p250
    %p252 = pneg %p251
    // Predicated region
    $region41: #{complex_cnn_forward.4} parent=5 // pred_check
      _
    $region42: #{complex_cnn_forward.4} parent=5 // pred_check_branch
      %254 = sbr.rel (%p251) target = $region44
    $region43: #{complex_cnn_forward.4} parent=5 // pred_region
      %s255 = ssub.s32 %s12, 1
      %s256 = smul.u32 8, %s17
      %p257 = scmp.lt.s32.totalorder %s256, 15
      %s258 = scalar_select %p257, %s256, 15
      %s259 = smul.addr %s258, 3
      %s260 = smul.addr %s259, 4
      %s261 = scalar_lea.vmem %s0, %s260
      %p262 = pneg %p38
      %p263 = pneg %p35
      %s264 = smul.u32 8, %s17
      %p265 = scmp.lt.s32.totalorder %s264, 15
      %s266 = scalar_select %p265, %s264, 15
      %s267 = smul.addr %s266, 3
      %s268 = smul.addr %s267, 4
      %s269 = scalar_lea.vmem %s1, %s268
      %p270 = pneg %p64
      %p271 = pneg %p61
      %s272 = smul.u32 8, %s17
      %p273 = scmp.lt.s32.totalorder %s272, 15
      %s274 = scalar_select %p273, %s272, 15
      %s275 = smul.addr %s274, 3
      %s276 = smul.addr %s275, 4
      %s277 = scalar_lea.vmem %s2, %s276
      %p278 = pneg %p90
      %p279 = pneg %p87
      %s280 = smul.u32 8, %s17
      %p281 = scmp.lt.s32.totalorder %s280, 15
      %s282 = scalar_select %p281, %s280, 15
      %s283 = smul.addr %s282, 3
      %s284 = smul.addr %s283, 4
      %s285 = scalar_lea.vmem %s3, %s284
      %p286 = pneg %p116
      %p287 = pneg %p113
      %p288 = pneg %p137
      %p289 = pneg %p134
      %p290 = pneg %p158
      %p291 = pneg %p155
      %p292 = pneg %p184
      %p293 = pneg %p181
      %s294 = smul.u32 8, %s17
      %p295 = scmp.lt.s32.totalorder %s294, 15
      %s296 = scalar_select %p295, %s294, 15
      %s297 = smul.addr %s296, 4
      %s298 = scalar_lea.vmem %s6, %s297
      %s299 = smul.u32 8, %s17
      %p300 = scmp.lt.s32.totalorder %s299, 15
      %s301 = scalar_select %p300, %s299, 15
      %s302 = smul.addr %s301, 3
      %s303 = smul.addr %s302, 4
      %s304 = scalar_lea.vmem %s0, %s303
      %s305 = smul.u32 8, %s17
      %s306 = smul.u32 8, %s17
      %p307 = scmp.lt.s32.totalorder %s306, 15
      %s308 = scalar_select %p307, %s306, 15
      %s309 = smul.addr %s308, 3
      %s310 = smul.addr %s309, 4
      %s311 = scalar_lea.vmem %s1, %s310
      %s312 = smul.u32 8, %s17
      %s313 = smul.u32 8, %s17
      %p314 = scmp.lt.s32.totalorder %s313, 15
      %s315 = scalar_select %p314, %s313, 15
      %s316 = smul.addr %s315, 3
      %s317 = smul.addr %s316, 4
      %s318 = scalar_lea.vmem %s2, %s317
      %s319 = smul.u32 8, %s17
      %s320 = smul.u32 8, %s17
      %p321 = scmp.lt.s32.totalorder %s320, 15
      %s322 = scalar_select %p321, %s320, 15
      %s323 = smul.addr %s322, 3
      %s324 = smul.addr %s323, 4
      %s325 = scalar_lea.vmem %s3, %s324
      %s326 = smul.u32 8, %s17
      %s327 = smul.u32 8, %s17
      %p328 = scmp.lt.s32.totalorder %s327, 15
      %s329 = scalar_select %p328, %s327, 15
      %s330 = smul.addr %s329, 4
      %s331 = scalar_lea.vmem %s6, %s330
      %s332 = smul.u32 8, %s17
      %v334 = vld [vmem:[%s4] sm:$0xf]
      %v335 = vld [vmem:[%s4 + $0x4] sm:$0xf]
      %v336 = vld [vmem:[%s4 + $0x8] sm:$0xf]
      %v337 = vld [vmem:[%s4 + $0xc] sm:$0xf]
      %v338 = vld [vmem:[%s4 + $0x10] sm:$0xf]
      %v339 = vld [vmem:[%s4 + $0x14] sm:$0xf]
      %v340 = vld [vmem:[%s4 + $0x18] sm:$0xf]
      %v341 = vld [vmem:[%s4 + $0x1c] sm:$0xf]
      %v342 = vld [vmem:[%s4 + $0x20] sm:$0xf]
      %v343 = vld [vmem:[%s4 + $0x24] sm:$0xf]
      %v344 = vld [vmem:[%s4 + $0x28] sm:$0xf]
      %v345 = vld [vmem:[%s4 + $0x2c] sm:$0xf]
      %v346 = vld [vmem:[%s4 + $0x30] sm:$0xf]
      %v347 = vld [vmem:[%s4 + $0x34] sm:$0xf]
      %v348 = vld [vmem:[%s4 + $0x38] sm:$0xf]
      %v349 = vld [vmem:[%s4 + $0x3c] sm:$0xf]
      %v350 = vld [vmem:[%s4 + $0x40] sm:$0xf]
      %v351 = vld [vmem:[%s4 + $0x44] sm:$0xf]
      %v352 = vld [vmem:[%s4 + $0x48] sm:$0xf]
      %v353 = vld [vmem:[%s4 + $0x4c] sm:$0xf]
      %v354 = vld [vmem:[%s4 + $0x50] sm:$0xf]
      %v355 = vld [vmem:[%s4 + $0x54] sm:$0xf]
      %v356 = vld [vmem:[%s4 + $0x58] sm:$0xf]
      %v357 = vld [vmem:[%s4 + $0x5c] sm:$0xf]
      %v358 = vld [vmem:[%s4 + $0x60] sm:$0xf]
      %v359 = vld [vmem:[%s4 + $0x64] sm:$0xf]
      %v360 = vld [vmem:[%s4 + $0x68] sm:$0xf]
      %v361 = vld [vmem:[%s4 + $0x6c] sm:$0xf]
      %v362 = vld [vmem:[%s4 + $0x70] sm:$0xf]
      %v363 = vld [vmem:[%s4 + $0x74] sm:$0xf]
      %v364 = vld [vmem:[%s4 + $0x78] sm:$0xf]
      %v365 = vld [vmem:[%s4 + $0x7c] sm:$0xf]
      %v366 = vld [vmem:[%s4 + $0x80] sm:$0xf]
      %v367 = vld [vmem:[%s4 + $0x84] sm:$0xf]
      %v368 = vld [vmem:[%s4 + $0x88] sm:$0xf]
      %v369 = vld [vmem:[%s4 + $0x8c] sm:$0xf]
      %v370 = vld [vmem:[%s304] sm:$0xff]
      %v371 = vld [vmem:[%s304 + $0x8] sm:$0xf]
      %v372 = vld [vmem:[%s304 + $0xc] sm:$0xff]
      %v373 = vld [vmem:[%s304 + $0x14] sm:$0xf]
      %v374 = vld [vmem:[%s304 + $0x18] sm:$0xff]
      %v375 = vld [vmem:[%s304 + $0x20] sm:$0xf]
      %v376 = vld [vmem:[%s304 + $0x24] sm:$0xff]
      %v377 = vld [vmem:[%s304 + $0x2c] sm:$0xf]
      %v378 = vld [vmem:[%s304 + $0x30] sm:$0xff]
      %v379 = vld [vmem:[%s304 + $0x38] sm:$0xf]
      %v380 = vld [vmem:[%s304 + $0x3c] sm:$0xff]
      %v381 = vld [vmem:[%s304 + $0x44] sm:$0xf]
      %v382 = vld [vmem:[%s304 + $0x48] sm:$0xff]
      %v383 = vld [vmem:[%s304 + $0x50] sm:$0xf]
      %v384 = vld [vmem:[%s304 + $0x54] sm:$0xff]
      %v385 = vld [vmem:[%s304 + $0x5c] sm:$0xf]
      %v402 = vunpack.c.l.b16 %v370
      %v403 = vunpack.c.h.b16 %v370
      %v404 = vunpack.c.l.b16 %v371
      %v405 = vunpack.c.l.b16 %v372
      %v406 = vunpack.c.h.b16 %v372
      %v407 = vunpack.c.l.b16 %v373
      %v408 = vunpack.c.l.b16 %v374
      %v409 = vunpack.c.h.b16 %v374
      %v410 = vunpack.c.l.b16 %v375
      %v411 = vunpack.c.l.b16 %v376
      %v412 = vunpack.c.h.b16 %v376
      %v413 = vunpack.c.l.b16 %v377
      %v414 = vunpack.c.l.b16 %v378
      %v415 = vunpack.c.h.b16 %v378
      %v416 = vunpack.c.l.b16 %v379
      %v417 = vunpack.c.l.b16 %v380
      %v418 = vunpack.c.h.b16 %v380
      %v419 = vunpack.c.l.b16 %v381
      %v420 = vunpack.c.l.b16 %v382
      %v421 = vunpack.c.h.b16 %v382
      %v422 = vunpack.c.l.b16 %v383
      %v423 = vunpack.c.l.b16 %v384
      %v424 = vunpack.c.h.b16 %v384
      %v425 = vunpack.c.l.b16 %v385
      %v426 = vpack.c.b16 %v405, %v402
      %v427 = vpack.c.b16 %v406, %v403
      %v428 = vpack.c.b16 %v407, %v404
      %v429 = vpack.c.b16 %v411, %v408
      %v430 = vpack.c.b16 %v412, %v409
      %v431 = vpack.c.b16 %v413, %v410
      %v432 = vpack.c.b16 %v417, %v414
      %v433 = vpack.c.b16 %v418, %v415
      %v434 = vpack.c.b16 %v419, %v416
      %v435 = vpack.c.b16 %v423, %v420
      %v436 = vpack.c.b16 %v424, %v421
      %v437 = vpack.c.b16 %v425, %v422
      %v482 = vunpack.c.l.b16 %v334
      %v483 = vunpack.c.l.b16 %v335
      %v484 = vunpack.c.l.b16 %v336
      %v485 = vunpack.c.l.b16 %v337
      %v486 = vunpack.c.l.b16 %v338
      %v487 = vunpack.c.l.b16 %v339
      %v488 = vunpack.c.l.b16 %v340
      %v489 = vunpack.c.l.b16 %v341
      %v490 = vunpack.c.l.b16 %v342
      %v491 = vunpack.c.l.b16 %v343
      %v492 = vunpack.c.l.b16 %v344
      %v493 = vunpack.c.l.b16 %v345
      %v494 = vunpack.c.l.b16 %v346
      %v495 = vunpack.c.l.b16 %v347
      %v496 = vunpack.c.l.b16 %v348
      %v497 = vunpack.c.l.b16 %v349
      %v498 = vunpack.c.l.b16 %v350
      %v499 = vunpack.c.l.b16 %v351
      %v500 = vunpack.c.l.b16 %v352
      %v501 = vunpack.c.l.b16 %v353
      %v502 = vunpack.c.l.b16 %v354
      %v503 = vunpack.c.l.b16 %v355
      %v504 = vunpack.c.l.b16 %v356
      %v505 = vunpack.c.l.b16 %v357
      %v506 = vunpack.c.l.b16 %v358
      %v507 = vunpack.c.l.b16 %v359
      %v508 = vunpack.c.l.b16 %v360
      %v509 = vunpack.c.l.b16 %v361
      %v510 = vunpack.c.l.b16 %v362
      %v511 = vunpack.c.l.b16 %v363
      %v512 = vunpack.c.l.b16 %v364
      %v513 = vunpack.c.l.b16 %v365
      %v514 = vunpack.c.l.b16 %v366
      %v515 = vunpack.c.l.b16 %v367
      %v516 = vunpack.c.l.b16 %v368
      %v517 = vunpack.c.l.b16 %v369
      %v518 = vpack.c.b16 %v483, %v482
      %v519 = vpack.c.b16 %v485, %v484
      %v520 = vpack.c.b16 %v487, %v486
      %v521 = vpack.c.b16 %v489, %v488
      %v522 = vpack.c.b16 %v491, %v490
      %v523 = vpack.c.b16 %v493, %v492
      %v524 = vpack.c.b16 %v495, %v494
      %v525 = vpack.c.b16 %v497, %v496
      %v526 = vpack.c.b16 %v499, %v498
      %v527 = vpack.c.b16 %v501, %v500
      %v528 = vpack.c.b16 %v503, %v502
      %v529 = vpack.c.b16 %v505, %v504
      %v530 = vpack.c.b16 %v507, %v506
      %v531 = vpack.c.b16 %v509, %v508
      %v532 = vpack.c.b16 %v511, %v510
      %v533 = vpack.c.b16 %v513, %v512
      %v534 = vpack.c.b16 %v515, %v514
      %v535 = vpack.c.b16 %v517, %v516
      %vm554 = vcmask 261120
      %v556 = vsel %vm554, %v428, 0
      %v559 = vsel %vm554, %v431, 0
      %v562 = vsel %vm554, %v434, 0
      %v565 = vsel %vm554, %v437, 0
      %567 = vmatpush.bf16.msra.mxu0 %v525
      %568 = vmatpush.bf16.msra.mxu0 %v524
      %569 = vmatpush.bf16.msra.mxu0 %v523
      %570 = vmatpush.bf16.msra.mxu0 %v522
      %571 = vmatpush.bf16.msra.mxu0 %v521
      %572 = vmatpush.bf16.msra.mxu0 %v520
      %573 = vmatpush.bf16.msra.mxu0 %v519
      %574 = vmatpush.bf16.msra.mxu0 %v518
      %575 = vmatmul.bf16.gmra.mxu0 %v426
      %v576 = vpop.f32.mrf.mxu0
      %v577 = vadd.f32 0.0, %v576
      %v578 = vpop.f32.mrf.mxu0
      %v579 = vadd.f32 0.0, %v578
      %580 = vmatmul.bf16.gmra.mxu0 %v429
      %v581 = vpop.f32.mrf.mxu0
      %v582 = vadd.f32 0.0, %v581
      %v583 = vpop.f32.mrf.mxu0
      %v584 = vadd.f32 0.0, %v583
      %585 = vmatmul.bf16.gmra.mxu0 %v432
      %v586 = vpop.f32.mrf.mxu0
      %v587 = vadd.f32 0.0, %v586
      %v588 = vpop.f32.mrf.mxu0
      %v589 = vadd.f32 0.0, %v588
      %590 = vmatmul.bf16.gmra.mxu0 %v435
      %v591 = vpop.f32.mrf.mxu0
      %v592 = vadd.f32 0.0, %v591
      %v593 = vpop.f32.mrf.mxu0
      %v594 = vadd.f32 0.0, %v593
      %595 = vdwg.mxu0
      %596 = vmatpush.bf16.msra.mxu0 %v533
      %597 = vmatpush.bf16.msra.mxu0 %v532
      %598 = vmatpush.bf16.msra.mxu0 %v531
      %599 = vmatpush.bf16.msra.mxu0 %v530
      %600 = vmatpush.bf16.msra.mxu0 %v529
      %601 = vmatpush.bf16.msra.mxu0 %v528
      %602 = vmatpush.bf16.msra.mxu0 %v527
      %603 = vmatpush.bf16.msra.mxu0 %v526
      %604 = vmatmul.bf16.gmra.mxu0 %v427
      %v605 = vpop.f32.mrf.mxu0
      %v606 = vadd.f32 %v577, %v605
      %v607 = vpop.f32.mrf.mxu0
      %v608 = vadd.f32 %v579, %v607
      %609 = vmatmul.bf16.gmra.mxu0 %v430
      %v610 = vpop.f32.mrf.mxu0
      %v611 = vadd.f32 %v582, %v610
      %v612 = vpop.f32.mrf.mxu0
      %v613 = vadd.f32 %v584, %v612
      %614 = vmatmul.bf16.gmra.mxu0 %v433
      %v615 = vpop.f32.mrf.mxu0
      %v616 = vadd.f32 %v587, %v615
      %v617 = vpop.f32.mrf.mxu0
      %v618 = vadd.f32 %v589, %v617
      %619 = vmatmul.bf16.gmra.mxu0 %v436
      %v620 = vpop.f32.mrf.mxu0
      %v621 = vadd.f32 %v592, %v620
      %v622 = vpop.f32.mrf.mxu0
      %v623 = vadd.f32 %v594, %v622
      %624 = vdwg.mxu0
      %625 = vmatpush.bf16.msra.mxu0 0
      %626 = vmatpush.bf16.msra.mxu0 0
      %627 = vmatpush.bf16.msra.mxu0 0
      %628 = vmatpush.bf16.msra.mxu0 0
      %629 = vmatpush.bf16.msra.mxu0 0
      %630 = vmatpush.bf16.msra.mxu0 0
      %631 = vmatpush.bf16.msra.mxu0 %v535
      %632 = vmatpush.bf16.msra.mxu0 %v534
      %633 = vmatmul.bf16.gmra.mxu0 %v556
      %v634 = vpop.f32.mrf.mxu0
      %v635 = vadd.f32 %v606, %v634
      %v636 = vpop.f32.mrf.mxu0
      %v637 = vadd.f32 %v608, %v636
      %638 = vmatmul.bf16.gmra.mxu0 %v559
      %v639 = vpop.f32.mrf.mxu0
      %v640 = vadd.f32 %v611, %v639
      %v641 = vpop.f32.mrf.mxu0
      %v642 = vadd.f32 %v613, %v641
      %643 = vmatmul.bf16.gmra.mxu0 %v562
      %v644 = vpop.f32.mrf.mxu0
      %v645 = vadd.f32 %v616, %v644
      %v646 = vpop.f32.mrf.mxu0
      %v647 = vadd.f32 %v618, %v646
      %648 = vmatmul.bf16.gmra.mxu0 %v565
      %v649 = vpop.f32.mrf.mxu0
      %v650 = vadd.f32 %v621, %v649
      %v651 = vpop.f32.mrf.mxu0
      %v652 = vadd.f32 %v623, %v651
      %653 = vdwg.mxu0
      %v654 = vld [vmem:[%s311] sm:$0xff]
      %v655 = vld [vmem:[%s311 + $0x8] sm:$0xf]
      %v656 = vld [vmem:[%s311 + $0xc] sm:$0xff]
      %v657 = vld [vmem:[%s311 + $0x14] sm:$0xf]
      %v658 = vld [vmem:[%s311 + $0x18] sm:$0xff]
      %v659 = vld [vmem:[%s311 + $0x20] sm:$0xf]
      %v660 = vld [vmem:[%s311 + $0x24] sm:$0xff]
      %v661 = vld [vmem:[%s311 + $0x2c] sm:$0xf]
      %v662 = vld [vmem:[%s311 + $0x30] sm:$0xff]
      %v663 = vld [vmem:[%s311 + $0x38] sm:$0xf]
      %v664 = vld [vmem:[%s311 + $0x3c] sm:$0xff]
      %v665 = vld [vmem:[%s311 + $0x44] sm:$0xf]
      %v666 = vld [vmem:[%s311 + $0x48] sm:$0xff]
      %v667 = vld [vmem:[%s311 + $0x50] sm:$0xf]
      %v668 = vld [vmem:[%s311 + $0x54] sm:$0xff]
      %v669 = vld [vmem:[%s311 + $0x5c] sm:$0xf]
      %v686 = vunpack.c.l.b16 %v654
      %v687 = vunpack.c.h.b16 %v654
      %v688 = vunpack.c.l.b16 %v655
      %v689 = vunpack.c.l.b16 %v656
      %v690 = vunpack.c.h.b16 %v656
      %v691 = vunpack.c.l.b16 %v657
      %v692 = vunpack.c.l.b16 %v658
      %v693 = vunpack.c.h.b16 %v658
      %v694 = vunpack.c.l.b16 %v659
      %v695 = vunpack.c.l.b16 %v660
      %v696 = vunpack.c.h.b16 %v660
      %v697 = vunpack.c.l.b16 %v661
      %v698 = vunpack.c.l.b16 %v662
      %v699 = vunpack.c.h.b16 %v662
      %v700 = vunpack.c.l.b16 %v663
      %v701 = vunpack.c.l.b16 %v664
      %v702 = vunpack.c.h.b16 %v664
      %v703 = vunpack.c.l.b16 %v665
      %v704 = vunpack.c.l.b16 %v666
      %v705 = vunpack.c.h.b16 %v666
      %v706 = vunpack.c.l.b16 %v667
      %v707 = vunpack.c.l.b16 %v668
      %v708 = vunpack.c.h.b16 %v668
      %v709 = vunpack.c.l.b16 %v669
      %v710 = vpack.c.b16 %v689, %v686
      %v711 = vpack.c.b16 %v690, %v687
      %v712 = vpack.c.b16 %v691, %v688
      %v713 = vpack.c.b16 %v695, %v692
      %v714 = vpack.c.b16 %v696, %v693
      %v715 = vpack.c.b16 %v697, %v694
      %v716 = vpack.c.b16 %v701, %v698
      %v717 = vpack.c.b16 %v702, %v699
      %v718 = vpack.c.b16 %v703, %v700
      %v719 = vpack.c.b16 %v707, %v704
      %v720 = vpack.c.b16 %v708, %v705
      %v721 = vpack.c.b16 %v709, %v706
      %v731 = vsel %vm554, %v712, 0
      %v734 = vsel %vm554, %v715, 0
      %v737 = vsel %vm554, %v718, 0
      %v740 = vsel %vm554, %v721, 0
      %742 = vmatpush.bf16.msra.mxu0 %v525
      %743 = vmatpush.bf16.msra.mxu0 %v524
      %744 = vmatpush.bf16.msra.mxu0 %v523
      %745 = vmatpush.bf16.msra.mxu0 %v522
      %746 = vmatpush.bf16.msra.mxu0 %v521
      %747 = vmatpush.bf16.msra.mxu0 %v520
      %748 = vmatpush.bf16.msra.mxu0 %v519
      %749 = vmatpush.bf16.msra.mxu0 %v518
      %750 = vmatmul.bf16.gmra.mxu0 %v710
      %v751 = vpop.f32.mrf.mxu0
      %v752 = vadd.f32 0.0, %v751
      %v753 = vpop.f32.mrf.mxu0
      %v754 = vadd.f32 0.0, %v753
      %755 = vmatmul.bf16.gmra.mxu0 %v713
      %v756 = vpop.f32.mrf.mxu0
      %v757 = vadd.f32 0.0, %v756
      %v758 = vpop.f32.mrf.mxu0
      %v759 = vadd.f32 0.0, %v758
      %760 = vmatmul.bf16.gmra.mxu0 %v716
      %v761 = vpop.f32.mrf.mxu0
      %v762 = vadd.f32 0.0, %v761
      %v763 = vpop.f32.mrf.mxu0
      %v764 = vadd.f32 0.0, %v763
      %765 = vmatmul.bf16.gmra.mxu0 %v719
      %v766 = vpop.f32.mrf.mxu0
      %v767 = vadd.f32 0.0, %v766
      %v768 = vpop.f32.mrf.mxu0
      %v769 = vadd.f32 0.0, %v768
      %770 = vdwg.mxu0
      %771 = vmatpush.bf16.msra.mxu0 %v533
      %772 = vmatpush.bf16.msra.mxu0 %v532
      %773 = vmatpush.bf16.msra.mxu0 %v531
      %774 = vmatpush.bf16.msra.mxu0 %v530
      %775 = vmatpush.bf16.msra.mxu0 %v529
      %776 = vmatpush.bf16.msra.mxu0 %v528
      %777 = vmatpush.bf16.msra.mxu0 %v527
      %778 = vmatpush.bf16.msra.mxu0 %v526
      %779 = vmatmul.bf16.gmra.mxu0 %v711
      %v780 = vpop.f32.mrf.mxu0
      %v781 = vadd.f32 %v752, %v780
      %v782 = vpop.f32.mrf.mxu0
      %v783 = vadd.f32 %v754, %v782
      %784 = vmatmul.bf16.gmra.mxu0 %v714
      %v785 = vpop.f32.mrf.mxu0
      %v786 = vadd.f32 %v757, %v785
      %v787 = vpop.f32.mrf.mxu0
      %v788 = vadd.f32 %v759, %v787
      %789 = vmatmul.bf16.gmra.mxu0 %v717
      %v790 = vpop.f32.mrf.mxu0
      %v791 = vadd.f32 %v762, %v790
      %v792 = vpop.f32.mrf.mxu0
      %v793 = vadd.f32 %v764, %v792
      %794 = vmatmul.bf16.gmra.mxu0 %v720
      %v795 = vpop.f32.mrf.mxu0
      %v796 = vadd.f32 %v767, %v795
      %v797 = vpop.f32.mrf.mxu0
      %v798 = vadd.f32 %v769, %v797
      %799 = vdwg.mxu0
      %800 = vmatpush.bf16.msra.mxu0 0
      %801 = vmatpush.bf16.msra.mxu0 0
      %802 = vmatpush.bf16.msra.mxu0 0
      %803 = vmatpush.bf16.msra.mxu0 0
      %804 = vmatpush.bf16.msra.mxu0 0
      %805 = vmatpush.bf16.msra.mxu0 0
      %806 = vmatpush.bf16.msra.mxu0 %v535
      %807 = vmatpush.bf16.msra.mxu0 %v534
      %808 = vmatmul.bf16.gmra.mxu0 %v731
      %v809 = vpop.f32.mrf.mxu0
      %v810 = vadd.f32 %v781, %v809
      %v811 = vpop.f32.mrf.mxu0
      %v812 = vadd.f32 %v783, %v811
      %813 = vmatmul.bf16.gmra.mxu0 %v734
      %v814 = vpop.f32.mrf.mxu0
      %v815 = vadd.f32 %v786, %v814
      %v816 = vpop.f32.mrf.mxu0
      %v817 = vadd.f32 %v788, %v816
      %818 = vmatmul.bf16.gmra.mxu0 %v737
      %v819 = vpop.f32.mrf.mxu0
      %v820 = vadd.f32 %v791, %v819
      %v821 = vpop.f32.mrf.mxu0
      %v822 = vadd.f32 %v793, %v821
      %823 = vmatmul.bf16.gmra.mxu0 %v740
      %v824 = vpop.f32.mrf.mxu0
      %v825 = vadd.f32 %v796, %v824
      %v826 = vpop.f32.mrf.mxu0
      %v827 = vadd.f32 %v798, %v826
      %828 = vdwg.mxu0
      %v829 = vmax.f32 %v635, %v810
      %v830 = vmax.f32 %v637, %v812
      %v831 = vmax.f32 %v640, %v815
      %v832 = vmax.f32 %v642, %v817
      %v833 = vmax.f32 %v645, %v820
      %v834 = vmax.f32 %v647, %v822
      %v835 = vmax.f32 %v650, %v825
      %v836 = vmax.f32 %v652, %v827
      %v837 = vld [vmem:[%s318] sm:$0xff]
      %v838 = vld [vmem:[%s318 + $0x8] sm:$0xf]
      %v839 = vld [vmem:[%s318 + $0xc] sm:$0xff]
      %v840 = vld [vmem:[%s318 + $0x14] sm:$0xf]
      %v841 = vld [vmem:[%s318 + $0x18] sm:$0xff]
      %v842 = vld [vmem:[%s318 + $0x20] sm:$0xf]
      %v843 = vld [vmem:[%s318 + $0x24] sm:$0xff]
      %v844 = vld [vmem:[%s318 + $0x2c] sm:$0xf]
      %v845 = vld [vmem:[%s318 + $0x30] sm:$0xff]
      %v846 = vld [vmem:[%s318 + $0x38] sm:$0xf]
      %v847 = vld [vmem:[%s318 + $0x3c] sm:$0xff]
      %v848 = vld [vmem:[%s318 + $0x44] sm:$0xf]
      %v849 = vld [vmem:[%s318 + $0x48] sm:$0xff]
      %v850 = vld [vmem:[%s318 + $0x50] sm:$0xf]
      %v851 = vld [vmem:[%s318 + $0x54] sm:$0xff]
      %v852 = vld [vmem:[%s318 + $0x5c] sm:$0xf]
      %v869 = vunpack.c.l.b16 %v837
      %v870 = vunpack.c.h.b16 %v837
      %v871 = vunpack.c.l.b16 %v838
      %v872 = vunpack.c.l.b16 %v839
      %v873 = vunpack.c.h.b16 %v839
      %v874 = vunpack.c.l.b16 %v840
      %v875 = vunpack.c.l.b16 %v841
      %v876 = vunpack.c.h.b16 %v841
      %v877 = vunpack.c.l.b16 %v842
      %v878 = vunpack.c.l.b16 %v843
      %v879 = vunpack.c.h.b16 %v843
      %v880 = vunpack.c.l.b16 %v844
      %v881 = vunpack.c.l.b16 %v845
      %v882 = vunpack.c.h.b16 %v845
      %v883 = vunpack.c.l.b16 %v846
      %v884 = vunpack.c.l.b16 %v847
      %v885 = vunpack.c.h.b16 %v847
      %v886 = vunpack.c.l.b16 %v848
      %v887 = vunpack.c.l.b16 %v849
      %v888 = vunpack.c.h.b16 %v849
      %v889 = vunpack.c.l.b16 %v850
      %v890 = vunpack.c.l.b16 %v851
      %v891 = vunpack.c.h.b16 %v851
      %v892 = vunpack.c.l.b16 %v852
      %v893 = vpack.c.b16 %v872, %v869
      %v894 = vpack.c.b16 %v873, %v870
      %v895 = vpack.c.b16 %v874, %v871
      %v896 = vpack.c.b16 %v878, %v875
      %v897 = vpack.c.b16 %v879, %v876
      %v898 = vpack.c.b16 %v880, %v877
      %v899 = vpack.c.b16 %v884, %v881
      %v900 = vpack.c.b16 %v885, %v882
      %v901 = vpack.c.b16 %v886, %v883
      %v902 = vpack.c.b16 %v890, %v887
      %v903 = vpack.c.b16 %v891, %v888
      %v904 = vpack.c.b16 %v892, %v889
      %v914 = vsel %vm554, %v895, 0
      %v917 = vsel %vm554, %v898, 0
      %v920 = vsel %vm554, %v901, 0
      %v923 = vsel %vm554, %v904, 0
      %925 = vmatpush.bf16.msra.mxu0 %v525
      %926 = vmatpush.bf16.msra.mxu0 %v524
      %927 = vmatpush.bf16.msra.mxu0 %v523
      %928 = vmatpush.bf16.msra.mxu0 %v522
      %929 = vmatpush.bf16.msra.mxu0 %v521
      %930 = vmatpush.bf16.msra.mxu0 %v520
      %931 = vmatpush.bf16.msra.mxu0 %v519
      %932 = vmatpush.bf16.msra.mxu0 %v518
      %933 = vmatmul.bf16.gmra.mxu0 %v893
      %v934 = vpop.f32.mrf.mxu0
      %v935 = vadd.f32 0.0, %v934
      %v936 = vpop.f32.mrf.mxu0
      %v937 = vadd.f32 0.0, %v936
      %938 = vmatmul.bf16.gmra.mxu0 %v896
      %v939 = vpop.f32.mrf.mxu0
      %v940 = vadd.f32 0.0, %v939
      %v941 = vpop.f32.mrf.mxu0
      %v942 = vadd.f32 0.0, %v941
      %943 = vmatmul.bf16.gmra.mxu0 %v899
      %v944 = vpop.f32.mrf.mxu0
      %v945 = vadd.f32 0.0, %v944
      %v946 = vpop.f32.mrf.mxu0
      %v947 = vadd.f32 0.0, %v946
      %948 = vmatmul.bf16.gmra.mxu0 %v902
      %v949 = vpop.f32.mrf.mxu0
      %v950 = vadd.f32 0.0, %v949
      %v951 = vpop.f32.mrf.mxu0
      %v952 = vadd.f32 0.0, %v951
      %953 = vdwg.mxu0
      %954 = vmatpush.bf16.msra.mxu0 %v533
      %955 = vmatpush.bf16.msra.mxu0 %v532
      %956 = vmatpush.bf16.msra.mxu0 %v531
      %957 = vmatpush.bf16.msra.mxu0 %v530
      %958 = vmatpush.bf16.msra.mxu0 %v529
      %959 = vmatpush.bf16.msra.mxu0 %v528
      %960 = vmatpush.bf16.msra.mxu0 %v527
      %961 = vmatpush.bf16.msra.mxu0 %v526
      %962 = vmatmul.bf16.gmra.mxu0 %v894
      %v963 = vpop.f32.mrf.mxu0
      %v964 = vadd.f32 %v935, %v963
      %v965 = vpop.f32.mrf.mxu0
      %v966 = vadd.f32 %v937, %v965
      %967 = vmatmul.bf16.gmra.mxu0 %v897
      %v968 = vpop.f32.mrf.mxu0
      %v969 = vadd.f32 %v940, %v968
      %v970 = vpop.f32.mrf.mxu0
      %v971 = vadd.f32 %v942, %v970
      %972 = vmatmul.bf16.gmra.mxu0 %v900
      %v973 = vpop.f32.mrf.mxu0
      %v974 = vadd.f32 %v945, %v973
      %v975 = vpop.f32.mrf.mxu0
      %v976 = vadd.f32 %v947, %v975
      %977 = vmatmul.bf16.gmra.mxu0 %v903
      %v978 = vpop.f32.mrf.mxu0
      %v979 = vadd.f32 %v950, %v978
      %v980 = vpop.f32.mrf.mxu0
      %v981 = vadd.f32 %v952, %v980
      %982 = vdwg.mxu0
      %983 = vmatpush.bf16.msra.mxu0 0
      %984 = vmatpush.bf16.msra.mxu0 0
      %985 = vmatpush.bf16.msra.mxu0 0
      %986 = vmatpush.bf16.msra.mxu0 0
      %987 = vmatpush.bf16.msra.mxu0 0
      %988 = vmatpush.bf16.msra.mxu0 0
      %989 = vmatpush.bf16.msra.mxu0 %v535
      %990 = vmatpush.bf16.msra.mxu0 %v534
      %991 = vmatmul.bf16.gmra.mxu0 %v914
      %v992 = vpop.f32.mrf.mxu0
      %v993 = vadd.f32 %v964, %v992
      %v994 = vpop.f32.mrf.mxu0
      %v995 = vadd.f32 %v966, %v994
      %996 = vmatmul.bf16.gmra.mxu0 %v917
      %v997 = vpop.f32.mrf.mxu0
      %v998 = vadd.f32 %v969, %v997
      %v999 = vpop.f32.mrf.mxu0
      %v1000 = vadd.f32 %v971, %v999
      %1001 = vmatmul.bf16.gmra.mxu0 %v920
      %v1002 = vpop.f32.mrf.mxu0
      %v1003 = vadd.f32 %v974, %v1002
      %v1004 = vpop.f32.mrf.mxu0
      %v1005 = vadd.f32 %v976, %v1004
      %1006 = vmatmul.bf16.gmra.mxu0 %v923
      %v1007 = vpop.f32.mrf.mxu0
      %v1008 = vadd.f32 %v979, %v1007
      %v1009 = vpop.f32.mrf.mxu0
      %v1010 = vadd.f32 %v981, %v1009
      %1011 = vdwg.mxu0
      %v1012 = vld [vmem:[%s325] sm:$0xff]
      %v1013 = vld [vmem:[%s325 + $0x8] sm:$0xf]
      %v1014 = vld [vmem:[%s325 + $0xc] sm:$0xff]
      %v1015 = vld [vmem:[%s325 + $0x14] sm:$0xf]
      %v1016 = vld [vmem:[%s325 + $0x18] sm:$0xff]
      %v1017 = vld [vmem:[%s325 + $0x20] sm:$0xf]
      %v1018 = vld [vmem:[%s325 + $0x24] sm:$0xff]
      %v1019 = vld [vmem:[%s325 + $0x2c] sm:$0xf]
      %v1020 = vld [vmem:[%s325 + $0x30] sm:$0xff]
      %v1021 = vld [vmem:[%s325 + $0x38] sm:$0xf]
      %v1022 = vld [vmem:[%s325 + $0x3c] sm:$0xff]
      %v1023 = vld [vmem:[%s325 + $0x44] sm:$0xf]
      %v1024 = vld [vmem:[%s325 + $0x48] sm:$0xff]
      %v1025 = vld [vmem:[%s325 + $0x50] sm:$0xf]
      %v1026 = vld [vmem:[%s325 + $0x54] sm:$0xff]
      %v1027 = vld [vmem:[%s325 + $0x5c] sm:$0xf]
      %v1044 = vunpack.c.l.b16 %v1012
      %v1045 = vunpack.c.h.b16 %v1012
      %v1046 = vunpack.c.l.b16 %v1013
      %v1047 = vunpack.c.l.b16 %v1014
      %v1048 = vunpack.c.h.b16 %v1014
      %v1049 = vunpack.c.l.b16 %v1015
      %v1050 = vunpack.c.l.b16 %v1016
      %v1051 = vunpack.c.h.b16 %v1016
      %v1052 = vunpack.c.l.b16 %v1017
      %v1053 = vunpack.c.l.b16 %v1018
      %v1054 = vunpack.c.h.b16 %v1018
      %v1055 = vunpack.c.l.b16 %v1019
      %v1056 = vunpack.c.l.b16 %v1020
      %v1057 = vunpack.c.h.b16 %v1020
      %v1058 = vunpack.c.l.b16 %v1021
      %v1059 = vunpack.c.l.b16 %v1022
      %v1060 = vunpack.c.h.b16 %v1022
      %v1061 = vunpack.c.l.b16 %v1023
      %v1062 = vunpack.c.l.b16 %v1024
      %v1063 = vunpack.c.h.b16 %v1024
      %v1064 = vunpack.c.l.b16 %v1025
      %v1065 = vunpack.c.l.b16 %v1026
      %v1066 = vunpack.c.h.b16 %v1026
      %v1067 = vunpack.c.l.b16 %v1027
      %v1068 = vpack.c.b16 %v1047, %v1044
      %v1069 = vpack.c.b16 %v1048, %v1045
      %v1070 = vpack.c.b16 %v1049, %v1046
      %v1071 = vpack.c.b16 %v1053, %v1050
      %v1072 = vpack.c.b16 %v1054, %v1051
      %v1073 = vpack.c.b16 %v1055, %v1052
      %v1074 = vpack.c.b16 %v1059, %v1056
      %v1075 = vpack.c.b16 %v1060, %v1057
      %v1076 = vpack.c.b16 %v1061, %v1058
      %v1077 = vpack.c.b16 %v1065, %v1062
      %v1078 = vpack.c.b16 %v1066, %v1063
      %v1079 = vpack.c.b16 %v1067, %v1064
      %v1089 = vsel %vm554, %v1070, 0
      %v1092 = vsel %vm554, %v1073, 0
      %v1095 = vsel %vm554, %v1076, 0
      %v1098 = vsel %vm554, %v1079, 0
      %1100 = vmatpush.bf16.msra.mxu0 %v525
      %1101 = vmatpush.bf16.msra.mxu0 %v524
      %1102 = vmatpush.bf16.msra.mxu0 %v523
      %1103 = vmatpush.bf16.msra.mxu0 %v522
      %1104 = vmatpush.bf16.msra.mxu0 %v521
      %1105 = vmatpush.bf16.msra.mxu0 %v520
      %1106 = vmatpush.bf16.msra.mxu0 %v519
      %1107 = vmatpush.bf16.msra.mxu0 %v518
      %1108 = vmatmul.bf16.gmra.mxu0 %v1068
      %v1109 = vpop.f32.mrf.mxu0
      %v1110 = vadd.f32 0.0, %v1109
      %v1111 = vpop.f32.mrf.mxu0
      %v1112 = vadd.f32 0.0, %v1111
      %1113 = vmatmul.bf16.gmra.mxu0 %v1071
      %v1114 = vpop.f32.mrf.mxu0
      %v1115 = vadd.f32 0.0, %v1114
      %v1116 = vpop.f32.mrf.mxu0
      %v1117 = vadd.f32 0.0, %v1116
      %1118 = vmatmul.bf16.gmra.mxu0 %v1074
      %v1119 = vpop.f32.mrf.mxu0
      %v1120 = vadd.f32 0.0, %v1119
      %v1121 = vpop.f32.mrf.mxu0
      %v1122 = vadd.f32 0.0, %v1121
      %1123 = vmatmul.bf16.gmra.mxu0 %v1077
      %v1124 = vpop.f32.mrf.mxu0
      %v1125 = vadd.f32 0.0, %v1124
      %v1126 = vpop.f32.mrf.mxu0
      %v1127 = vadd.f32 0.0, %v1126
      %1128 = vdwg.mxu0
      %1129 = vmatpush.bf16.msra.mxu0 %v533
      %1130 = vmatpush.bf16.msra.mxu0 %v532
      %1131 = vmatpush.bf16.msra.mxu0 %v531
      %1132 = vmatpush.bf16.msra.mxu0 %v530
      %1133 = vmatpush.bf16.msra.mxu0 %v529
      %1134 = vmatpush.bf16.msra.mxu0 %v528
      %1135 = vmatpush.bf16.msra.mxu0 %v527
      %1136 = vmatpush.bf16.msra.mxu0 %v526
      %1137 = vmatmul.bf16.gmra.mxu0 %v1069
      %v1138 = vpop.f32.mrf.mxu0
      %v1139 = vadd.f32 %v1110, %v1138
      %v1140 = vpop.f32.mrf.mxu0
      %v1141 = vadd.f32 %v1112, %v1140
      %1142 = vmatmul.bf16.gmra.mxu0 %v1072
      %v1143 = vpop.f32.mrf.mxu0
      %v1144 = vadd.f32 %v1115, %v1143
      %v1145 = vpop.f32.mrf.mxu0
      %v1146 = vadd.f32 %v1117, %v1145
      %1147 = vmatmul.bf16.gmra.mxu0 %v1075
      %v1148 = vpop.f32.mrf.mxu0
      %v1149 = vadd.f32 %v1120, %v1148
      %v1150 = vpop.f32.mrf.mxu0
      %v1151 = vadd.f32 %v1122, %v1150
      %1152 = vmatmul.bf16.gmra.mxu0 %v1078
      %v1153 = vpop.f32.mrf.mxu0
      %v1154 = vadd.f32 %v1125, %v1153
      %v1155 = vpop.f32.mrf.mxu0
      %v1156 = vadd.f32 %v1127, %v1155
      %1157 = vdwg.mxu0
      %1158 = vmatpush.bf16.msra.mxu0 0
      %1159 = vmatpush.bf16.msra.mxu0 0
      %1160 = vmatpush.bf16.msra.mxu0 0
      %1161 = vmatpush.bf16.msra.mxu0 0
      %1162 = vmatpush.bf16.msra.mxu0 0
      %1163 = vmatpush.bf16.msra.mxu0 0
      %1164 = vmatpush.bf16.msra.mxu0 %v535
      %1165 = vmatpush.bf16.msra.mxu0 %v534
      %1166 = vmatmul.bf16.gmra.mxu0 %v1089
      %v1167 = vpop.f32.mrf.mxu0
      %v1168 = vadd.f32 %v1139, %v1167
      %v1169 = vpop.f32.mrf.mxu0
      %v1170 = vadd.f32 %v1141, %v1169
      %1171 = vmatmul.bf16.gmra.mxu0 %v1092
      %v1172 = vpop.f32.mrf.mxu0
      %v1173 = vadd.f32 %v1144, %v1172
      %v1174 = vpop.f32.mrf.mxu0
      %v1175 = vadd.f32 %v1146, %v1174
      %1176 = vmatmul.bf16.gmra.mxu0 %v1095
      %v1177 = vpop.f32.mrf.mxu0
      %v1178 = vadd.f32 %v1149, %v1177
      %v1179 = vpop.f32.mrf.mxu0
      %v1180 = vadd.f32 %v1151, %v1179
      %1181 = vmatmul.bf16.gmra.mxu0 %v1098
      %v1182 = vpop.f32.mrf.mxu0
      %v1183 = vadd.f32 %v1154, %v1182
      %v1184 = vpop.f32.mrf.mxu0
      %v1185 = vadd.f32 %v1156, %v1184
      %1186 = vdwg.mxu0
      %v1187 = vmax.f32 %v993, %v1168
      %v1188 = vmax.f32 %v995, %v1170
      %v1189 = vmax.f32 %v998, %v1173
      %v1190 = vmax.f32 %v1000, %v1175
      %v1191 = vmax.f32 %v1003, %v1178
      %v1192 = vmax.f32 %v1005, %v1180
      %v1193 = vmax.f32 %v1008, %v1183
      %v1194 = vmax.f32 %v1010, %v1185
      %v1195 = vmax.f32 %v829, %v1187
      %v1196 = vmax.f32 %v830, %v1188
      %v1197 = vmax.f32 %v831, %v1189
      %v1198 = vmax.f32 %v832, %v1190
      %v1199 = vmax.f32 %v833, %v1191
      %v1200 = vmax.f32 %v834, %v1192
      %v1201 = vmax.f32 %v835, %v1193
      %v1202 = vmax.f32 %v836, %v1194
      %v1203 = vld [vmem:[%s5] sm:$0x1]
      %v1205 = vperm.slane %v1203, 0
      %v1207 = vadd.f32 %v1195, %v1205
      %v1208 = vadd.f32 %v1196, %v1205
      %v1209 = vadd.f32 %v1197, %v1205
      %v1210 = vadd.f32 %v1198, %v1205
      %v1211 = vadd.f32 %v1199, %v1205
      %v1212 = vadd.f32 %v1200, %v1205
      %v1213 = vadd.f32 %v1201, %v1205
      %v1214 = vadd.f32 %v1202, %v1205
      %v1215 = vmax.f32 %v1207, 0.0
      %v1216 = vmax.f32 %v1208, 0.0
      %v1217 = vmax.f32 %v1209, 0.0
      %v1218 = vmax.f32 %v1210, 0.0
      %v1219 = vmax.f32 %v1211, 0.0
      %v1220 = vmax.f32 %v1212, 0.0
      %v1221 = vmax.f32 %v1213, 0.0
      %v1222 = vmax.f32 %v1214, 0.0
      %v1223 = vpack.c.bf16 %v1215, %v1215
      %v1224 = vpack.c.bf16 %v1216, %v1216
      %v1225 = vpack.c.bf16 %v1217, %v1217
      %v1226 = vpack.c.bf16 %v1218, %v1218
      %v1227 = vpack.c.bf16 %v1219, %v1219
      %v1228 = vpack.c.bf16 %v1220, %v1220
      %v1229 = vpack.c.bf16 %v1221, %v1221
      %v1230 = vpack.c.bf16 %v1222, %v1222
      %vm1231 = vcmask 519168
      %1232 = vst.msk [vmem:[%s331] sm:$0xf] %vm1231, %v1223
      %1233 = vst.msk [vmem:[%s331 + $0x4] sm:$0xf] %vm1231, %v1224
      %1234 = vst.msk [vmem:[%s331 + $0x8] sm:$0xf] %vm1231, %v1225
      %1235 = vst.msk [vmem:[%s331 + $0xc] sm:$0xf] %vm1231, %v1226
      %1236 = vst.msk [vmem:[%s331 + $0x10] sm:$0xf] %vm1231, %v1227
      %1237 = vst.msk [vmem:[%s331 + $0x14] sm:$0xf] %vm1231, %v1228
      %1238 = vst.msk [vmem:[%s331 + $0x18] sm:$0xf] %vm1231, %v1229
      %1239 = vst.msk [vmem:[%s331 + $0x1c] sm:$0xf] %vm1231, %v1230
      %s1240 = smul.u32 8, %s17
      %p1241 = scmp.lt.s32.totalorder %s1240, 15
      %s1242 = scalar_select %p1241, %s1240, 15
      %s1243 = smul.addr %s1242, 4
      %s1244 = scalar_lea.vmem %s6, %s1243
      // Predicated region
      $region45: #{complex_cnn_forward.4} parent=43 // pred_check
        %p1245 = pneg %p181
      $region46: #{complex_cnn_forward.4} parent=43 // pred_check_branch
        %1247 = sbr.rel (%p1245) target = $region48
      $region47: #{complex_cnn_forward.4} parent=43 // pred_region
        %s1248 = smul.u32 8, %s17
      $region48: #{complex_cnn_forward.4} parent=43 // pred_fallthru
        _
    $region44: #{complex_cnn_forward.4} parent=5 // pred_fallthru
      _
    %p1249 = scmp.le.s32.totalorder 2, %s12
    // Predicated region
    $region49: #{complex_cnn_forward.4} parent=5 // pred_check
      %p1250 = pneg %p1249
    $region50: #{complex_cnn_forward.4} parent=5 // pred_check_branch
      %1252 = sbr.rel (%p1250) target = $region52
    $region51: #{complex_cnn_forward.4} parent=5 // pred_region
      %s1253 = ssub.s32 %s12, 2
      // Predicated region
      $region53: #{complex_cnn_forward.4} parent=51 // pred_check
        %p1254 = pneg %p187
      $region54: #{complex_cnn_forward.4} parent=51 // pred_check_branch
        %1256 = sbr.rel (%p1254) target = $region56
      $region55: #{complex_cnn_forward.4} parent=51 // pred_region
        %s1257 = smul.u32 8, %s18
        %p1258 = scmp.lt.s32.totalorder %s1257, 15
        %s1259 = scalar_select %p1258, %s1257, 15
        %s1260 = smul.addr %s1259, 4
        %s1261 = scalar_lea.vmem %s6, %s1260
      $region56: #{complex_cnn_forward.4} parent=51 // pred_fallthru
        _
    $region52: #{complex_cnn_forward.4} parent=5 // pred_fallthru
      _
  $region6: #{complex_cnn_forward.4} parent=0 // loop_footer
    %s16 = sadd.s32 1, %s12
  $region7: #{complex_cnn_forward.4} parent=0 // loop_footer_branch
    %11 = sbr.rel target = $region3
  $region8: #{complex_cnn_forward.4} parent=0 // loop_exit
    _

// kernel: complex_cnn_forward.5
$region0: #{complex_cnn_forward.5}
  #allocation0 [shape = 'u32[]', space=smem, size = 0x4, offset = 0x4, fixed_abs, tag = 'smem constant byte address 0x4 - core index']
  #allocation1 [shape = 'u32[72,128]{1,0:T(1,128)}', space=vmem, size = 0x9000, scoped, tag = 'internal scratch']
  %s0 = inlined_call_operand.vmem [shape: bf16[2,4096], index: 0, kind: input, shape index: {}]
  %s1 = inlined_call_operand.vmem [shape: bf16[4096,64], index: 1, kind: input, shape index: {}]
  %s2 = inlined_call_operand.vmem [shape: f32[1,64], index: 2, kind: input, shape index: {}]
  %s3 = inlined_call_operand.vmem [shape: bf16[64,10], index: 3, kind: input, shape index: {}]
  %s4 = inlined_call_operand.vmem [shape: f32[1,10], index: 4, kind: input, shape index: {}]
  %s5 = inlined_call_operand.hbm [shape: f32[2,10], index: 5, kind: output, shape index: {}]
  %s6 = sld [smem:[#allocation0]]
  $region30: #{complex_cnn_forward.5} parent=0
    _
  %s8 = ssub.s32 1, %s6
  %s9 = scalar_select 0, %s8, %s6
  $region1: #{complex_cnn_forward.5} parent=0
    #allocation2 [shape = 'u8[1024]{0}', space=vmem, size = 0x400, scoped, tag = 'output window, operand 0, single buffered']
    #allocation3 [shape = 's32[1]{0}', space=sflag, size = 0x4, scoped, tag = 'scoped memory for complex_cnn_forward.5']
    %10 = vsyncpa [#allocation3], 0
    // Predicated region
    $region2: #{complex_cnn_forward.5} parent=1 // pred_check
      _
    $region3: #{complex_cnn_forward.5} parent=1 // pred_check_branch
      %12 = sbr.rel (0) target = $region5
    $region4: #{complex_cnn_forward.5} parent=1 // pred_region
      _
    $region5: #{complex_cnn_forward.5} parent=1 // pred_fallthru
      _
    // Predicated region
    $region6: #{complex_cnn_forward.5} parent=1 // pred_check
      _
    $region7: #{complex_cnn_forward.5} parent=1 // pred_check_branch
      %14 = sbr.rel (0) target = $region9
    $region8: #{complex_cnn_forward.5} parent=1 // pred_region
      _
    $region9: #{complex_cnn_forward.5} parent=1 // pred_fallthru
      _
    // Predicated region
    $region10: #{complex_cnn_forward.5} parent=1 // pred_check
      _
    $region11: #{complex_cnn_forward.5} parent=1 // pred_check_branch
      %16 = sbr.rel (0) target = $region13
    $region12: #{complex_cnn_forward.5} parent=1 // pred_region
      _
    $region13: #{complex_cnn_forward.5} parent=1 // pred_fallthru
      _
    // Predicated region
    $region14: #{complex_cnn_forward.5} parent=1 // pred_check
      _
    $region15: #{complex_cnn_forward.5} parent=1 // pred_check_branch
      %18 = sbr.rel (0) target = $region17
    $region16: #{complex_cnn_forward.5} parent=1 // pred_region
      _
    $region17: #{complex_cnn_forward.5} parent=1 // pred_fallthru
      _
    // Predicated region
    $region18: #{complex_cnn_forward.5} parent=1 // pred_check
      _
    $region19: #{complex_cnn_forward.5} parent=1 // pred_check_branch
      %20 = sbr.rel (0) target = $region21
    $region20: #{complex_cnn_forward.5} parent=1 // pred_region
      _
    $region21: #{complex_cnn_forward.5} parent=1 // pred_fallthru
      _
    %v22 = vld [vmem:[%s0] sm:$0xff]
    %v23 = vld [vmem:[%s0 + $0x8] sm:$0xff]
    %v24 = vld [vmem:[%s0 + $0x10] sm:$0xff]
    %v25 = vld [vmem:[%s0 + $0x18] sm:$0xff]
    %v26 = vld [vmem:[%s1] sm:$0xf]
    %v27 = vld [vmem:[%s1 + $0x4] sm:$0xf]
    %v28 = vld [vmem:[%s1 + $0x8] sm:$0xf]
    %v29 = vld [vmem:[%s1 + $0xc] sm:$0xf]
    %v30 = vld [vmem:[%s1 + $0x10] sm:$0xf]
    %v31 = vld [vmem:[%s1 + $0x14] sm:$0xf]
    %v32 = vld [vmem:[%s1 + $0x18] sm:$0xf]
    %v33 = vld [vmem:[%s1 + $0x1c] sm:$0xf]
    %v34 = vld [vmem:[%s1 + $0x20] sm:$0xf]
    %v35 = vld [vmem:[%s1 + $0x24] sm:$0xf]
    %v36 = vld [vmem:[%s1 + $0x28] sm:$0xf]
    %v37 = vld [vmem:[%s1 + $0x2c] sm:$0xf]
    %v38 = vld [vmem:[%s1 + $0x30] sm:$0xf]
    %v39 = vld [vmem:[%s1 + $0x34] sm:$0xf]
    %v40 = vld [vmem:[%s1 + $0x38] sm:$0xf]
    %v41 = vld [vmem:[%s1 + $0x3c] sm:$0xf]
    %v42 = vld [vmem:[%s1 + $0x40] sm:$0xf]
    %v43 = vld [vmem:[%s1 + $0x44] sm:$0xf]
    %v44 = vld [vmem:[%s1 + $0x48] sm:$0xf]
    %v45 = vld [vmem:[%s1 + $0x4c] sm:$0xf]
    %v46 = vld [vmem:[%s1 + $0x50] sm:$0xf]
    %v47 = vld [vmem:[%s1 + $0x54] sm:$0xf]
    %v48 = vld [vmem:[%s1 + $0x58] sm:$0xf]
    %v49 = vld [vmem:[%s1 + $0x5c] sm:$0xf]
    %v50 = vld [vmem:[%s1 + $0x60] sm:$0xf]
    %v51 = vld [vmem:[%s1 + $0x64] sm:$0xf]
    %v52 = vld [vmem:[%s1 + $0x68] sm:$0xf]
    %v53 = vld [vmem:[%s1 + $0x6c] sm:$0xf]
    %v54 = vld [vmem:[%s1 + $0x70] sm:$0xf]
    %v55 = vld [vmem:[%s1 + $0x74] sm:$0xf]
    %v56 = vld [vmem:[%s1 + $0x78] sm:$0xf]
    %v57 = vld [vmem:[%s1 + $0x7c] sm:$0xf]
    %v58 = vld [vmem:[%s1 + $0x80] sm:$0xf]
    %v59 = vld [vmem:[%s1 + $0x84] sm:$0xf]
    %v60 = vld [vmem:[%s1 + $0x88] sm:$0xf]
    %v61 = vld [vmem:[%s1 + $0x8c] sm:$0xf]
    %v62 = vld [vmem:[%s1 + $0x90] sm:$0xf]
    %v63 = vld [vmem:[%s1 + $0x94] sm:$0xf]
    %v64 = vld [vmem:[%s1 + $0x98] sm:$0xf]
    %v65 = vld [vmem:[%s1 + $0x9c] sm:$0xf]
    %v66 = vld [vmem:[%s1 + $0xa0] sm:$0xf]
    %v67 = vld [vmem:[%s1 + $0xa4] sm:$0xf]
    %v68 = vld [vmem:[%s1 + $0xa8] sm:$0xf]
    %v69 = vld [vmem:[%s1 + $0xac] sm:$0xf]
    %v70 = vld [vmem:[%s1 + $0xb0] sm:$0xf]
    %v71 = vld [vmem:[%s1 + $0xb4] sm:$0xf]
    %v72 = vld [vmem:[%s1 + $0xb8] sm:$0xf]
    %v73 = vld [vmem:[%s1 + $0xbc] sm:$0xf]
    %v74 = vld [vmem:[%s1 + $0xc0] sm:$0xf]
    %v75 = vld [vmem:[%s1 + $0xc4] sm:$0xf]
    %v76 = vld [vmem:[%s1 + $0xc8] sm:$0xf]
    %v77 = vld [vmem:[%s1 + $0xcc] sm:$0xf]
    %v78 = vld [vmem:[%s1 + $0xd0] sm:$0xf]
    %v79 = vld [vmem:[%s1 + $0xd4] sm:$0xf]
    %v80 = vld [vmem:[%s1 + $0xd8] sm:$0xf]
    %v81 = vld [vmem:[%s1 + $0xdc] sm:$0xf]
    %v82 = vld [vmem:[%s1 + $0xe0] sm:$0xf]
    %v83 = vld [vmem:[%s1 + $0xe4] sm:$0xf]
    %v84 = vld [vmem:[%s1 + $0xe8] sm:$0xf]
    %v85 = vld [vmem:[%s1 + $0xec] sm:$0xf]
    %v86 = vld [vmem:[%s1 + $0xf0] sm:$0xf]
    %v87 = vld [vmem:[%s1 + $0xf4] sm:$0xf]
    %v88 = vld [vmem:[%s1 + $0xf8] sm:$0xf]
    %v89 = vld [vmem:[%s1 + $0xfc] sm:$0xf]
    %v90 = vld [vmem:[%s1 + $0x100] sm:$0xf]
    %v91 = vld [vmem:[%s1 + $0x104] sm:$0xf]
    %v92 = vld [vmem:[%s1 + $0x108] sm:$0xf]
    %v93 = vld [vmem:[%s1 + $0x10c] sm:$0xf]
    %v94 = vld [vmem:[%s1 + $0x110] sm:$0xf]
    %v95 = vld [vmem:[%s1 + $0x114] sm:$0xf]
    %v96 = vld [vmem:[%s1 + $0x118] sm:$0xf]
    %v97 = vld [vmem:[%s1 + $0x11c] sm:$0xf]
    %v98 = vld [vmem:[%s1 + $0x120] sm:$0xf]
    %v99 = vld [vmem:[%s1 + $0x124] sm:$0xf]
    %v100 = vld [vmem:[%s1 + $0x128] sm:$0xf]
    %v101 = vld [vmem:[%s1 + $0x12c] sm:$0xf]
    %v102 = vld [vmem:[%s1 + $0x130] sm:$0xf]
    %v103 = vld [vmem:[%s1 + $0x134] sm:$0xf]
    %v104 = vld [vmem:[%s1 + $0x138] sm:$0xf]
    %v105 = vld [vmem:[%s1 + $0x13c] sm:$0xf]
    %v106 = vld [vmem:[%s1 + $0x140] sm:$0xf]
    %v107 = vld [vmem:[%s1 + $0x144] sm:$0xf]
    %v108 = vld [vmem:[%s1 + $0x148] sm:$0xf]
    %v109 = vld [vmem:[%s1 + $0x14c] sm:$0xf]
    %v110 = vld [vmem:[%s1 + $0x150] sm:$0xf]
    %v111 = vld [vmem:[%s1 + $0x154] sm:$0xf]
    %v112 = vld [vmem:[%s1 + $0x158] sm:$0xf]
    %v113 = vld [vmem:[%s1 + $0x15c] sm:$0xf]
    %v114 = vld [vmem:[%s1 + $0x160] sm:$0xf]
    %v115 = vld [vmem:[%s1 + $0x164] sm:$0xf]
    %v116 = vld [vmem:[%s1 + $0x168] sm:$0xf]
    %v117 = vld [vmem:[%s1 + $0x16c] sm:$0xf]
    %v118 = vld [vmem:[%s1 + $0x170] sm:$0xf]
    %v119 = vld [vmem:[%s1 + $0x174] sm:$0xf]
    %v120 = vld [vmem:[%s1 + $0x178] sm:$0xf]
    %v121 = vld [vmem:[%s1 + $0x17c] sm:$0xf]
    %v122 = vld [vmem:[%s1 + $0x180] sm:$0xf]
    %v123 = vld [vmem:[%s1 + $0x184] sm:$0xf]
    %v124 = vld [vmem:[%s1 + $0x188] sm:$0xf]
    %v125 = vld [vmem:[%s1 + $0x18c] sm:$0xf]
    %v126 = vld [vmem:[%s1 + $0x190] sm:$0xf]
    %v127 = vld [vmem:[%s1 + $0x194] sm:$0xf]
    %v128 = vld [vmem:[%s1 + $0x198] sm:$0xf]
    %v129 = vld [vmem:[%s1 + $0x19c] sm:$0xf]
    %v130 = vld [vmem:[%s1 + $0x1a0] sm:$0xf]
    %v131 = vld [vmem:[%s1 + $0x1a4] sm:$0xf]
    %v132 = vld [vmem:[%s1 + $0x1a8] sm:$0xf]
    %v133 = vld [vmem:[%s1 + $0x1ac] sm:$0xf]
    %v134 = vld [vmem:[%s1 + $0x1b0] sm:$0xf]
    %v135 = vld [vmem:[%s1 + $0x1b4] sm:$0xf]
    %v136 = vld [vmem:[%s1 + $0x1b8] sm:$0xf]
    %v137 = vld [vmem:[%s1 + $0x1bc] sm:$0xf]
    %v138 = vld [vmem:[%s1 + $0x1c0] sm:$0xf]
    %v139 = vld [vmem:[%s1 + $0x1c4] sm:$0xf]
    %v140 = vld [vmem:[%s1 + $0x1c8] sm:$0xf]
    %v141 = vld [vmem:[%s1 + $0x1cc] sm:$0xf]
    %v142 = vld [vmem:[%s1 + $0x1d0] sm:$0xf]
    %v143 = vld [vmem:[%s1 + $0x1d4] sm:$0xf]
    %v144 = vld [vmem:[%s1 + $0x1d8] sm:$0xf]
    %v145 = vld [vmem:[%s1 + $0x1dc] sm:$0xf]
    %v146 = vld [vmem:[%s1 + $0x1e0] sm:$0xf]
    %v147 = vld [vmem:[%s1 + $0x1e4] sm:$0xf]
    %v148 = vld [vmem:[%s1 + $0x1e8] sm:$0xf]
    %v149 = vld [vmem:[%s1 + $0x1ec] sm:$0xf]
    %v150 = vld [vmem:[%s1 + $0x1f0] sm:$0xf]
    %v151 = vld [vmem:[%s1 + $0x1f4] sm:$0xf]
    %v152 = vld [vmem:[%s1 + $0x1f8] sm:$0xf]
    %v153 = vld [vmem:[%s1 + $0x1fc] sm:$0xf]
    %v154 = vld [vmem:[%s1 + $0x200] sm:$0xf]
    %v155 = vld [vmem:[%s1 + $0x204] sm:$0xf]
    %v156 = vld [vmem:[%s1 + $0x208] sm:$0xf]
    %v157 = vld [vmem:[%s1 + $0x20c] sm:$0xf]
    %v158 = vld [vmem:[%s1 + $0x210] sm:$0xf]
    %v159 = vld [vmem:[%s1 + $0x214] sm:$0xf]
    %v160 = vld [vmem:[%s1 + $0x218] sm:$0xf]
    %v161 = vld [vmem:[%s1 + $0x21c] sm:$0xf]
    %v162 = vld [vmem:[%s1 + $0x220] sm:$0xf]
    %v163 = vld [vmem:[%s1 + $0x224] sm:$0xf]
    %v164 = vld [vmem:[%s1 + $0x228] sm:$0xf]
    %v165 = vld [vmem:[%s1 + $0x22c] sm:$0xf]
    %v166 = vld [vmem:[%s1 + $0x230] sm:$0xf]
    %v167 = vld [vmem:[%s1 + $0x234] sm:$0xf]
    %v168 = vld [vmem:[%s1 + $0x238] sm:$0xf]
    %v169 = vld [vmem:[%s1 + $0x23c] sm:$0xf]
    %v170 = vld [vmem:[%s1 + $0x240] sm:$0xf]
    %v171 = vld [vmem:[%s1 + $0x244] sm:$0xf]
    %v172 = vld [vmem:[%s1 + $0x248] sm:$0xf]
    %v173 = vld [vmem:[%s1 + $0x24c] sm:$0xf]
    %v174 = vld [vmem:[%s1 + $0x250] sm:$0xf]
    %v175 = vld [vmem:[%s1 + $0x254] sm:$0xf]
    %v176 = vld [vmem:[%s1 + $0x258] sm:$0xf]
    %v177 = vld [vmem:[%s1 + $0x25c] sm:$0xf]
    %v178 = vld [vmem:[%s1 + $0x260] sm:$0xf]
    %v179 = vld [vmem:[%s1 + $0x264] sm:$0xf]
    %v180 = vld [vmem:[%s1 + $0x268] sm:$0xf]
    %v181 = vld [vmem:[%s1 + $0x26c] sm:$0xf]
    %v182 = vld [vmem:[%s1 + $0x270] sm:$0xf]
    %v183 = vld [vmem:[%s1 + $0x274] sm:$0xf]
    %v184 = vld [vmem:[%s1 + $0x278] sm:$0xf]
    %v185 = vld [vmem:[%s1 + $0x27c] sm:$0xf]
    %v186 = vld [vmem:[%s1 + $0x280] sm:$0xf]
    %v187 = vld [vmem:[%s1 + $0x284] sm:$0xf]
    %v188 = vld [vmem:[%s1 + $0x288] sm:$0xf]
    %v189 = vld [vmem:[%s1 + $0x28c] sm:$0xf]
    %v190 = vld [vmem:[%s1 + $0x290] sm:$0xf]
    %v191 = vld [vmem:[%s1 + $0x294] sm:$0xf]
    %v192 = vld [vmem:[%s1 + $0x298] sm:$0xf]
    %v193 = vld [vmem:[%s1 + $0x29c] sm:$0xf]
    %v194 = vld [vmem:[%s1 + $0x2a0] sm:$0xf]
    %v195 = vld [vmem:[%s1 + $0x2a4] sm:$0xf]
    %v196 = vld [vmem:[%s1 + $0x2a8] sm:$0xf]
    %v197 = vld [vmem:[%s1 + $0x2ac] sm:$0xf]
    %v198 = vld [vmem:[%s1 + $0x2b0] sm:$0xf]
    %v199 = vld [vmem:[%s1 + $0x2b4] sm:$0xf]
    %v200 = vld [vmem:[%s1 + $0x2b8] sm:$0xf]
    %v201 = vld [vmem:[%s1 + $0x2bc] sm:$0xf]
    %v202 = vld [vmem:[%s1 + $0x2c0] sm:$0xf]
    %v203 = vld [vmem:[%s1 + $0x2c4] sm:$0xf]
    %v204 = vld [vmem:[%s1 + $0x2c8] sm:$0xf]
    %v205 = vld [vmem:[%s1 + $0x2cc] sm:$0xf]
    %v206 = vld [vmem:[%s1 + $0x2d0] sm:$0xf]
    %v207 = vld [vmem:[%s1 + $0x2d4] sm:$0xf]
    %v208 = vld [vmem:[%s1 + $0x2d8] sm:$0xf]
    %v209 = vld [vmem:[%s1 + $0x2dc] sm:$0xf]
    %v210 = vld [vmem:[%s1 + $0x2e0] sm:$0xf]
    %v211 = vld [vmem:[%s1 + $0x2e4] sm:$0xf]
    %v212 = vld [vmem:[%s1 + $0x2e8] sm:$0xf]
    %v213 = vld [vmem:[%s1 + $0x2ec] sm:$0xf]
    %v214 = vld [vmem:[%s1 + $0x2f0] sm:$0xf]
    %v215 = vld [vmem:[%s1 + $0x2f4] sm:$0xf]
    %v216 = vld [vmem:[%s1 + $0x2f8] sm:$0xf]
    %v217 = vld [vmem:[%s1 + $0x2fc] sm:$0xf]
    %v218 = vld [vmem:[%s1 + $0x300] sm:$0xf]
    %v219 = vld [vmem:[%s1 + $0x304] sm:$0xf]
    %v220 = vld [vmem:[%s1 + $0x308] sm:$0xf]
    %v221 = vld [vmem:[%s1 + $0x30c] sm:$0xf]
    %v222 = vld [vmem:[%s1 + $0x310] sm:$0xf]
    %v223 = vld [vmem:[%s1 + $0x314] sm:$0xf]
    %v224 = vld [vmem:[%s1 + $0x318] sm:$0xf]
    %v225 = vld [vmem:[%s1 + $0x31c] sm:$0xf]
    %v226 = vld [vmem:[%s1 + $0x320] sm:$0xf]
    %v227 = vld [vmem:[%s1 + $0x324] sm:$0xf]
    %v228 = vld [vmem:[%s1 + $0x328] sm:$0xf]
    %v229 = vld [vmem:[%s1 + $0x32c] sm:$0xf]
    %v230 = vld [vmem:[%s1 + $0x330] sm:$0xf]
    %v231 = vld [vmem:[%s1 + $0x334] sm:$0xf]
    %v232 = vld [vmem:[%s1 + $0x338] sm:$0xf]
    %v233 = vld [vmem:[%s1 + $0x33c] sm:$0xf]
    %v234 = vld [vmem:[%s1 + $0x340] sm:$0xf]
    %v235 = vld [vmem:[%s1 + $0x344] sm:$0xf]
    %v236 = vld [vmem:[%s1 + $0x348] sm:$0xf]
    %v237 = vld [vmem:[%s1 + $0x34c] sm:$0xf]
    %v238 = vld [vmem:[%s1 + $0x350] sm:$0xf]
    %v239 = vld [vmem:[%s1 + $0x354] sm:$0xf]
    %v240 = vld [vmem:[%s1 + $0x358] sm:$0xf]
    %v241 = vld [vmem:[%s1 + $0x35c] sm:$0xf]
    %v242 = vld [vmem:[%s1 + $0x360] sm:$0xf]
    %v243 = vld [vmem:[%s1 + $0x364] sm:$0xf]
    %v244 = vld [vmem:[%s1 + $0x368] sm:$0xf]
    %v245 = vld [vmem:[%s1 + $0x36c] sm:$0xf]
    %v246 = vld [vmem:[%s1 + $0x370] sm:$0xf]
    %v247 = vld [vmem:[%s1 + $0x374] sm:$0xf]
    %v248 = vld [vmem:[%s1 + $0x378] sm:$0xf]
    %v249 = vld [vmem:[%s1 + $0x37c] sm:$0xf]
    %v250 = vld [vmem:[%s1 + $0x380] sm:$0xf]
    %v251 = vld [vmem:[%s1 + $0x384] sm:$0xf]
    %v252 = vld [vmem:[%s1 + $0x388] sm:$0xf]
    %v253 = vld [vmem:[%s1 + $0x38c] sm:$0xf]
    %v254 = vld [vmem:[%s1 + $0x390] sm:$0xf]
    %v255 = vld [vmem:[%s1 + $0x394] sm:$0xf]
    %v256 = vld [vmem:[%s1 + $0x398] sm:$0xf]
    %v257 = vld [vmem:[%s1 + $0x39c] sm:$0xf]
    %v258 = vld [vmem:[%s1 + $0x3a0] sm:$0xf]
    %v259 = vld [vmem:[%s1 + $0x3a4] sm:$0xf]
    %v260 = vld [vmem:[%s1 + $0x3a8] sm:$0xf]
    %v261 = vld [vmem:[%s1 + $0x3ac] sm:$0xf]
    %v262 = vld [vmem:[%s1 + $0x3b0] sm:$0xf]
    %v263 = vld [vmem:[%s1 + $0x3b4] sm:$0xf]
    %v264 = vld [vmem:[%s1 + $0x3b8] sm:$0xf]
    %v265 = vld [vmem:[%s1 + $0x3bc] sm:$0xf]
    %v266 = vld [vmem:[%s1 + $0x3c0] sm:$0xf]
    %v267 = vld [vmem:[%s1 + $0x3c4] sm:$0xf]
    %v268 = vld [vmem:[%s1 + $0x3c8] sm:$0xf]
    %v269 = vld [vmem:[%s1 + $0x3cc] sm:$0xf]
    %v270 = vld [vmem:[%s1 + $0x3d0] sm:$0xf]
    %v271 = vld [vmem:[%s1 + $0x3d4] sm:$0xf]
    %v272 = vld [vmem:[%s1 + $0x3d8] sm:$0xf]
    %v273 = vld [vmem:[%s1 + $0x3dc] sm:$0xf]
    %v274 = vld [vmem:[%s1 + $0x3e0] sm:$0xf]
    %v275 = vld [vmem:[%s1 + $0x3e4] sm:$0xf]
    %v276 = vld [vmem:[%s1 + $0x3e8] sm:$0xf]
    %v277 = vld [vmem:[%s1 + $0x3ec] sm:$0xf]
    %v278 = vld [vmem:[%s1 + $0x3f0] sm:$0xf]
    %v279 = vld [vmem:[%s1 + $0x3f4] sm:$0xf]
    %v280 = vld [vmem:[%s1 + $0x3f8] sm:$0xf]
    %v281 = vld [vmem:[%s1 + $0x3fc] sm:$0xf]
    %v282 = vld [vmem:[%s1 + $0x400] sm:$0xf]
    %v283 = vld [vmem:[%s1 + $0x404] sm:$0xf]
    %v284 = vld [vmem:[%s1 + $0x408] sm:$0xf]
    %v285 = vld [vmem:[%s1 + $0x40c] sm:$0xf]
    %v286 = vld [vmem:[%s1 + $0x410] sm:$0xf]
    %v287 = vld [vmem:[%s1 + $0x414] sm:$0xf]
    %v288 = vld [vmem:[%s1 + $0x418] sm:$0xf]
    %v289 = vld [vmem:[%s1 + $0x41c] sm:$0xf]
    %v290 = vld [vmem:[%s1 + $0x420] sm:$0xf]
    %v291 = vld [vmem:[%s1 + $0x424] sm:$0xf]
    %v292 = vld [vmem:[%s1 + $0x428] sm:$0xf]
    %v293 = vld [vmem:[%s1 + $0x42c] sm:$0xf]
    %v294 = vld [vmem:[%s1 + $0x430] sm:$0xf]
    %v295 = vld [vmem:[%s1 + $0x434] sm:$0xf]
    %v296 = vld [vmem:[%s1 + $0x438] sm:$0xf]
    %v297 = vld [vmem:[%s1 + $0x43c] sm:$0xf]
    %v298 = vld [vmem:[%s1 + $0x440] sm:$0xf]
    %v299 = vld [vmem:[%s1 + $0x444] sm:$0xf]
    %v300 = vld [vmem:[%s1 + $0x448] sm:$0xf]
    %v301 = vld [vmem:[%s1 + $0x44c] sm:$0xf]
    %v302 = vld [vmem:[%s1 + $0x450] sm:$0xf]
    %v303 = vld [vmem:[%s1 + $0x454] sm:$0xf]
    %v304 = vld [vmem:[%s1 + $0x458] sm:$0xf]
    %v305 = vld [vmem:[%s1 + $0x45c] sm:$0xf]
    %v306 = vld [vmem:[%s1 + $0x460] sm:$0xf]
    %v307 = vld [vmem:[%s1 + $0x464] sm:$0xf]
    %v308 = vld [vmem:[%s1 + $0x468] sm:$0xf]
    %v309 = vld [vmem:[%s1 + $0x46c] sm:$0xf]
    %v310 = vld [vmem:[%s1 + $0x470] sm:$0xf]
    %v311 = vld [vmem:[%s1 + $0x474] sm:$0xf]
    %v312 = vld [vmem:[%s1 + $0x478] sm:$0xf]
    %v313 = vld [vmem:[%s1 + $0x47c] sm:$0xf]
    %v314 = vld [vmem:[%s1 + $0x480] sm:$0xf]
    %v315 = vld [vmem:[%s1 + $0x484] sm:$0xf]
    %v316 = vld [vmem:[%s1 + $0x488] sm:$0xf]
    %v317 = vld [vmem:[%s1 + $0x48c] sm:$0xf]
    %v318 = vld [vmem:[%s1 + $0x490] sm:$0xf]
    %v319 = vld [vmem:[%s1 + $0x494] sm:$0xf]
    %v320 = vld [vmem:[%s1 + $0x498] sm:$0xf]
    %v321 = vld [vmem:[%s1 + $0x49c] sm:$0xf]
    %v322 = vld [vmem:[%s1 + $0x4a0] sm:$0xf]
    %v323 = vld [vmem:[%s1 + $0x4a4] sm:$0xf]
    %v324 = vld [vmem:[%s1 + $0x4a8] sm:$0xf]
    %v325 = vld [vmem:[%s1 + $0x4ac] sm:$0xf]
    %v326 = vld [vmem:[%s1 + $0x4b0] sm:$0xf]
    %v327 = vld [vmem:[%s1 + $0x4b4] sm:$0xf]
    %v328 = vld [vmem:[%s1 + $0x4b8] sm:$0xf]
    %v329 = vld [vmem:[%s1 + $0x4bc] sm:$0xf]
    %v330 = vld [vmem:[%s1 + $0x4c0] sm:$0xf]
    %v331 = vld [vmem:[%s1 + $0x4c4] sm:$0xf]
    %v332 = vld [vmem:[%s1 + $0x4c8] sm:$0xf]
    %v333 = vld [vmem:[%s1 + $0x4cc] sm:$0xf]
    %v334 = vld [vmem:[%s1 + $0x4d0] sm:$0xf]
    %v335 = vld [vmem:[%s1 + $0x4d4] sm:$0xf]
    %v336 = vld [vmem:[%s1 + $0x4d8] sm:$0xf]
    %v337 = vld [vmem:[%s1 + $0x4dc] sm:$0xf]
    %v338 = vld [vmem:[%s1 + $0x4e0] sm:$0xf]
    %v339 = vld [vmem:[%s1 + $0x4e4] sm:$0xf]
    %v340 = vld [vmem:[%s1 + $0x4e8] sm:$0xf]
    %v341 = vld [vmem:[%s1 + $0x4ec] sm:$0xf]
    %v342 = vld [vmem:[%s1 + $0x4f0] sm:$0xf]
    %v343 = vld [vmem:[%s1 + $0x4f4] sm:$0xf]
    %v344 = vld [vmem:[%s1 + $0x4f8] sm:$0xf]
    %v345 = vld [vmem:[%s1 + $0x4fc] sm:$0xf]
    %v346 = vld [vmem:[%s1 + $0x500] sm:$0xf]
    %v347 = vld [vmem:[%s1 + $0x504] sm:$0xf]
    %v348 = vld [vmem:[%s1 + $0x508] sm:$0xf]
    %v349 = vld [vmem:[%s1 + $0x50c] sm:$0xf]
    %v350 = vld [vmem:[%s1 + $0x510] sm:$0xf]
    %v351 = vld [vmem:[%s1 + $0x514] sm:$0xf]
    %v352 = vld [vmem:[%s1 + $0x518] sm:$0xf]
    %v353 = vld [vmem:[%s1 + $0x51c] sm:$0xf]
    %v354 = vld [vmem:[%s1 + $0x520] sm:$0xf]
    %v355 = vld [vmem:[%s1 + $0x524] sm:$0xf]
    %v356 = vld [vmem:[%s1 + $0x528] sm:$0xf]
    %v357 = vld [vmem:[%s1 + $0x52c] sm:$0xf]
    %v358 = vld [vmem:[%s1 + $0x530] sm:$0xf]
    %v359 = vld [vmem:[%s1 + $0x534] sm:$0xf]
    %v360 = vld [vmem:[%s1 + $0x538] sm:$0xf]
    %v361 = vld [vmem:[%s1 + $0x53c] sm:$0xf]
    %v362 = vld [vmem:[%s1 + $0x540] sm:$0xf]
    %v363 = vld [vmem:[%s1 + $0x544] sm:$0xf]
    %v364 = vld [vmem:[%s1 + $0x548] sm:$0xf]
    %v365 = vld [vmem:[%s1 + $0x54c] sm:$0xf]
    %v366 = vld [vmem:[%s1 + $0x550] sm:$0xf]
    %v367 = vld [vmem:[%s1 + $0x554] sm:$0xf]
    %v368 = vld [vmem:[%s1 + $0x558] sm:$0xf]
    %v369 = vld [vmem:[%s1 + $0x55c] sm:$0xf]
    %v370 = vld [vmem:[%s1 + $0x560] sm:$0xf]
    %v371 = vld [vmem:[%s1 + $0x564] sm:$0xf]
    %v372 = vld [vmem:[%s1 + $0x568] sm:$0xf]
    %v373 = vld [vmem:[%s1 + $0x56c] sm:$0xf]
    %v374 = vld [vmem:[%s1 + $0x570] sm:$0xf]
    %v375 = vld [vmem:[%s1 + $0x574] sm:$0xf]
    %v376 = vld [vmem:[%s1 + $0x578] sm:$0xf]
    %v377 = vld [vmem:[%s1 + $0x57c] sm:$0xf]
    %v378 = vld [vmem:[%s1 + $0x580] sm:$0xf]
    %v379 = vld [vmem:[%s1 + $0x584] sm:$0xf]
    %v380 = vld [vmem:[%s1 + $0x588] sm:$0xf]
    %v381 = vld [vmem:[%s1 + $0x58c] sm:$0xf]
    %v382 = vld [vmem:[%s1 + $0x590] sm:$0xf]
    %v383 = vld [vmem:[%s1 + $0x594] sm:$0xf]
    %v384 = vld [vmem:[%s1 + $0x598] sm:$0xf]
    %v385 = vld [vmem:[%s1 + $0x59c] sm:$0xf]
    %v386 = vld [vmem:[%s1 + $0x5a0] sm:$0xf]
    %v387 = vld [vmem:[%s1 + $0x5a4] sm:$0xf]
    %v388 = vld [vmem:[%s1 + $0x5a8] sm:$0xf]
    %v389 = vld [vmem:[%s1 + $0x5ac] sm:$0xf]
    %v390 = vld [vmem:[%s1 + $0x5b0] sm:$0xf]
    %v391 = vld [vmem:[%s1 + $0x5b4] sm:$0xf]
    %v392 = vld [vmem:[%s1 + $0x5b8] sm:$0xf]
    %v393 = vld [vmem:[%s1 + $0x5bc] sm:$0xf]
    %v394 = vld [vmem:[%s1 + $0x5c0] sm:$0xf]
    %v395 = vld [vmem:[%s1 + $0x5c4] sm:$0xf]
    %v396 = vld [vmem:[%s1 + $0x5c8] sm:$0xf]
    %v397 = vld [vmem:[%s1 + $0x5cc] sm:$0xf]
    %v398 = vld [vmem:[%s1 + $0x5d0] sm:$0xf]
    %v399 = vld [vmem:[%s1 + $0x5d4] sm:$0xf]
    %v400 = vld [vmem:[%s1 + $0x5d8] sm:$0xf]
    %v401 = vld [vmem:[%s1 + $0x5dc] sm:$0xf]
    %v402 = vld [vmem:[%s1 + $0x5e0] sm:$0xf]
    %v403 = vld [vmem:[%s1 + $0x5e4] sm:$0xf]
    %v404 = vld [vmem:[%s1 + $0x5e8] sm:$0xf]
    %v405 = vld [vmem:[%s1 + $0x5ec] sm:$0xf]
    %v406 = vld [vmem:[%s1 + $0x5f0] sm:$0xf]
    %v407 = vld [vmem:[%s1 + $0x5f4] sm:$0xf]
    %v408 = vld [vmem:[%s1 + $0x5f8] sm:$0xf]
    %v409 = vld [vmem:[%s1 + $0x5fc] sm:$0xf]
    %v410 = vld [vmem:[%s1 + $0x600] sm:$0xf]
    %v411 = vld [vmem:[%s1 + $0x604] sm:$0xf]
    %v412 = vld [vmem:[%s1 + $0x608] sm:$0xf]
    %v413 = vld [vmem:[%s1 + $0x60c] sm:$0xf]
    %v414 = vld [vmem:[%s1 + $0x610] sm:$0xf]
    %v415 = vld [vmem:[%s1 + $0x614] sm:$0xf]
    %v416 = vld [vmem:[%s1 + $0x618] sm:$0xf]
    %v417 = vld [vmem:[%s1 + $0x61c] sm:$0xf]
    %v418 = vld [vmem:[%s1 + $0x620] sm:$0xf]
    %v419 = vld [vmem:[%s1 + $0x624] sm:$0xf]
    %v420 = vld [vmem:[%s1 + $0x628] sm:$0xf]
    %v421 = vld [vmem:[%s1 + $0x62c] sm:$0xf]
    %v422 = vld [vmem:[%s1 + $0x630] sm:$0xf]
    %v423 = vld [vmem:[%s1 + $0x634] sm:$0xf]
    %v424 = vld [vmem:[%s1 + $0x638] sm:$0xf]
    %v425 = vld [vmem:[%s1 + $0x63c] sm:$0xf]
    %v426 = vld [vmem:[%s1 + $0x640] sm:$0xf]
    %v427 = vld [vmem:[%s1 + $0x644] sm:$0xf]
    %v428 = vld [vmem:[%s1 + $0x648] sm:$0xf]
    %v429 = vld [vmem:[%s1 + $0x64c] sm:$0xf]
    %v430 = vld [vmem:[%s1 + $0x650] sm:$0xf]
    %v431 = vld [vmem:[%s1 + $0x654] sm:$0xf]
    %v432 = vld [vmem:[%s1 + $0x658] sm:$0xf]
    %v433 = vld [vmem:[%s1 + $0x65c] sm:$0xf]
    %v434 = vld [vmem:[%s1 + $0x660] sm:$0xf]
    %v435 = vld [vmem:[%s1 + $0x664] sm:$0xf]
    %v436 = vld [vmem:[%s1 + $0x668] sm:$0xf]
    %v437 = vld [vmem:[%s1 + $0x66c] sm:$0xf]
    %v438 = vld [vmem:[%s1 + $0x670] sm:$0xf]
    %v439 = vld [vmem:[%s1 + $0x674] sm:$0xf]
    %v440 = vld [vmem:[%s1 + $0x678] sm:$0xf]
    %v441 = vld [vmem:[%s1 + $0x67c] sm:$0xf]
    %v442 = vld [vmem:[%s1 + $0x680] sm:$0xf]
    %v443 = vld [vmem:[%s1 + $0x684] sm:$0xf]
    %v444 = vld [vmem:[%s1 + $0x688] sm:$0xf]
    %v445 = vld [vmem:[%s1 + $0x68c] sm:$0xf]
    %v446 = vld [vmem:[%s1 + $0x690] sm:$0xf]
    %v447 = vld [vmem:[%s1 + $0x694] sm:$0xf]
    %v448 = vld [vmem:[%s1 + $0x698] sm:$0xf]
    %v449 = vld [vmem:[%s1 + $0x69c] sm:$0xf]
    %v450 = vld [vmem:[%s1 + $0x6a0] sm:$0xf]
    %v451 = vld [vmem:[%s1 + $0x6a4] sm:$0xf]
    %v452 = vld [vmem:[%s1 + $0x6a8] sm:$0xf]
    %v453 = vld [vmem:[%s1 + $0x6ac] sm:$0xf]
    %v454 = vld [vmem:[%s1 + $0x6b0] sm:$0xf]
    %v455 = vld [vmem:[%s1 + $0x6b4] sm:$0xf]
    %v456 = vld [vmem:[%s1 + $0x6b8] sm:$0xf]
    %v457 = vld [vmem:[%s1 + $0x6bc] sm:$0xf]
    %v458 = vld [vmem:[%s1 + $0x6c0] sm:$0xf]
    %v459 = vld [vmem:[%s1 + $0x6c4] sm:$0xf]
    %v460 = vld [vmem:[%s1 + $0x6c8] sm:$0xf]
    %v461 = vld [vmem:[%s1 + $0x6cc] sm:$0xf]
    %v462 = vld [vmem:[%s1 + $0x6d0] sm:$0xf]
    %v463 = vld [vmem:[%s1 + $0x6d4] sm:$0xf]
    %v464 = vld [vmem:[%s1 + $0x6d8] sm:$0xf]
    %v465 = vld [vmem:[%s1 + $0x6dc] sm:$0xf]
    %v466 = vld [vmem:[%s1 + $0x6e0] sm:$0xf]
    %v467 = vld [vmem:[%s1 + $0x6e4] sm:$0xf]
    %v468 = vld [vmem:[%s1 + $0x6e8] sm:$0xf]
    %v469 = vld [vmem:[%s1 + $0x6ec] sm:$0xf]
    %v470 = vld [vmem:[%s1 + $0x6f0] sm:$0xf]
    %v471 = vld [vmem:[%s1 + $0x6f4] sm:$0xf]
    %v472 = vld [vmem:[%s1 + $0x6f8] sm:$0xf]
    %v473 = vld [vmem:[%s1 + $0x6fc] sm:$0xf]
    %v474 = vld [vmem:[%s1 + $0x700] sm:$0xf]
    %v475 = vld [vmem:[%s1 + $0x704] sm:$0xf]
    %v476 = vld [vmem:[%s1 + $0x708] sm:$0xf]
    %v477 = vld [vmem:[%s1 + $0x70c] sm:$0xf]
    %v478 = vld [vmem:[%s1 + $0x710] sm:$0xf]
    %v479 = vld [vmem:[%s1 + $0x714] sm:$0xf]
    %v480 = vld [vmem:[%s1 + $0x718] sm:$0xf]
    %v481 = vld [vmem:[%s1 + $0x71c] sm:$0xf]
    %v482 = vld [vmem:[%s1 + $0x720] sm:$0xf]
    %v483 = vld [vmem:[%s1 + $0x724] sm:$0xf]
    %v484 = vld [vmem:[%s1 + $0x728] sm:$0xf]
    %v485 = vld [vmem:[%s1 + $0x72c] sm:$0xf]
    %v486 = vld [vmem:[%s1 + $0x730] sm:$0xf]
    %v487 = vld [vmem:[%s1 + $0x734] sm:$0xf]
    %v488 = vld [vmem:[%s1 + $0x738] sm:$0xf]
    %v489 = vld [vmem:[%s1 + $0x73c] sm:$0xf]
    %v490 = vld [vmem:[%s1 + $0x740] sm:$0xf]
    %v491 = vld [vmem:[%s1 + $0x744] sm:$0xf]
    %v492 = vld [vmem:[%s1 + $0x748] sm:$0xf]
    %v493 = vld [vmem:[%s1 + $0x74c] sm:$0xf]
    %v494 = vld [vmem:[%s1 + $0x750] sm:$0xf]
    %v495 = vld [vmem:[%s1 + $0x754] sm:$0xf]
    %v496 = vld [vmem:[%s1 + $0x758] sm:$0xf]
    %v497 = vld [vmem:[%s1 + $0x75c] sm:$0xf]
    %v498 = vld [vmem:[%s1 + $0x760] sm:$0xf]
    %v499 = vld [vmem:[%s1 + $0x764] sm:$0xf]
    %v500 = vld [vmem:[%s1 + $0x768] sm:$0xf]
    %v501 = vld [vmem:[%s1 + $0x76c] sm:$0xf]
    %v502 = vld [vmem:[%s1 + $0x770] sm:$0xf]
    %v503 = vld [vmem:[%s1 + $0x774] sm:$0xf]
    %v504 = vld [vmem:[%s1 + $0x778] sm:$0xf]
    %v505 = vld [vmem:[%s1 + $0x77c] sm:$0xf]
    %v506 = vld [vmem:[%s1 + $0x780] sm:$0xf]
    %v507 = vld [vmem:[%s1 + $0x784] sm:$0xf]
    %v508 = vld [vmem:[%s1 + $0x788] sm:$0xf]
    %v509 = vld [vmem:[%s1 + $0x78c] sm:$0xf]
    %v510 = vld [vmem:[%s1 + $0x790] sm:$0xf]
    %v511 = vld [vmem:[%s1 + $0x794] sm:$0xf]
    %v512 = vld [vmem:[%s1 + $0x798] sm:$0xf]
    %v513 = vld [vmem:[%s1 + $0x79c] sm:$0xf]
    %v514 = vld [vmem:[%s1 + $0x7a0] sm:$0xf]
    %v515 = vld [vmem:[%s1 + $0x7a4] sm:$0xf]
    %v516 = vld [vmem:[%s1 + $0x7a8] sm:$0xf]
    %v517 = vld [vmem:[%s1 + $0x7ac] sm:$0xf]
    %v518 = vld [vmem:[%s1 + $0x7b0] sm:$0xf]
    %v519 = vld [vmem:[%s1 + $0x7b4] sm:$0xf]
    %v520 = vld [vmem:[%s1 + $0x7b8] sm:$0xf]
    %v521 = vld [vmem:[%s1 + $0x7bc] sm:$0xf]
    %v522 = vld [vmem:[%s1 + $0x7c0] sm:$0xf]
    %v523 = vld [vmem:[%s1 + $0x7c4] sm:$0xf]
    %v524 = vld [vmem:[%s1 + $0x7c8] sm:$0xf]
    %v525 = vld [vmem:[%s1 + $0x7cc] sm:$0xf]
    %v526 = vld [vmem:[%s1 + $0x7d0] sm:$0xf]
    %v527 = vld [vmem:[%s1 + $0x7d4] sm:$0xf]
    %v528 = vld [vmem:[%s1 + $0x7d8] sm:$0xf]
    %v529 = vld [vmem:[%s1 + $0x7dc] sm:$0xf]
    %v530 = vld [vmem:[%s1 + $0x7e0] sm:$0xf]
    %v531 = vld [vmem:[%s1 + $0x7e4] sm:$0xf]
    %v532 = vld [vmem:[%s1 + $0x7e8] sm:$0xf]
    %v533 = vld [vmem:[%s1 + $0x7ec] sm:$0xf]
    %v534 = vld [vmem:[%s1 + $0x7f0] sm:$0xf]
    %v535 = vld [vmem:[%s1 + $0x7f4] sm:$0xf]
    %v536 = vld [vmem:[%s1 + $0x7f8] sm:$0xf]
    %v537 = vld [vmem:[%s1 + $0x7fc] sm:$0xf]
    %v538 = vld [vmem:[%s2] sm:$0x1]
    %v540 = vperm.slane %v538, 0
    %543 = vst [vmem:[#allocation1] ss:$9 sm:$0xff] %v22
    %v544 = vld [vmem:[#allocation1] sm:$0xff]
    %v545 = vld [vmem:[#allocation1 + $0x9] sm:$0xff]
    %v546 = vld [vmem:[#allocation1 + $0x12] sm:$0xff]
    %v547 = vld [vmem:[#allocation1 + $0x1b] sm:$0xff]
    %v548 = vld [vmem:[#allocation1 + $0x24] sm:$0xff]
    %v549 = vld [vmem:[#allocation1 + $0x2d] sm:$0xff]
    %v550 = vld [vmem:[#allocation1 + $0x36] sm:$0xff]
    %v551 = vld [vmem:[#allocation1 + $0x3f] sm:$0xff]
    %553 = vst [vmem:[#allocation1] ss:$9 sm:$0xff] %v23
    %v554 = vld [vmem:[#allocation1] sm:$0xff]
    %v555 = vld [vmem:[#allocation1 + $0x9] sm:$0xff]
    %v556 = vld [vmem:[#allocation1 + $0x12] sm:$0xff]
    %v557 = vld [vmem:[#allocation1 + $0x1b] sm:$0xff]
    %v558 = vld [vmem:[#allocation1 + $0x24] sm:$0xff]
    %v559 = vld [vmem:[#allocation1 + $0x2d] sm:$0xff]
    %v560 = vld [vmem:[#allocation1 + $0x36] sm:$0xff]
    %v561 = vld [vmem:[#allocation1 + $0x3f] sm:$0xff]
    %563 = vst [vmem:[#allocation1] ss:$9 sm:$0xff] %v24
    %v564 = vld [vmem:[#allocation1] sm:$0xff]
    %v565 = vld [vmem:[#allocation1 + $0x9] sm:$0xff]
    %v566 = vld [vmem:[#allocation1 + $0x12] sm:$0xff]
    %v567 = vld [vmem:[#allocation1 + $0x1b] sm:$0xff]
    %v568 = vld [vmem:[#allocation1 + $0x24] sm:$0xff]
    %v569 = vld [vmem:[#allocation1 + $0x2d] sm:$0xff]
    %v570 = vld [vmem:[#allocation1 + $0x36] sm:$0xff]
    %v571 = vld [vmem:[#allocation1 + $0x3f] sm:$0xff]
    %573 = vst [vmem:[#allocation1] ss:$9 sm:$0xff] %v25
    %v574 = vld [vmem:[#allocation1] sm:$0xff]
    %v575 = vld [vmem:[#allocation1 + $0x9] sm:$0xff]
    %v576 = vld [vmem:[#allocation1 + $0x12] sm:$0xff]
    %v577 = vld [vmem:[#allocation1 + $0x1b] sm:$0xff]
    %v578 = vld [vmem:[#allocation1 + $0x24] sm:$0xff]
    %v579 = vld [vmem:[#allocation1 + $0x2d] sm:$0xff]
    %v580 = vld [vmem:[#allocation1 + $0x36] sm:$0xff]
    %v581 = vld [vmem:[#allocation1 + $0x3f] sm:$0xff]
    %v1126 = vunpack.c.l.b16 %v26
    %v1127 = vunpack.c.l.b16 %v27
    %v1128 = vunpack.c.l.b16 %v28
    %v1129 = vunpack.c.l.b16 %v29
    %v1130 = vunpack.c.l.b16 %v30
    %v1131 = vunpack.c.l.b16 %v31
    %v1132 = vunpack.c.l.b16 %v32
    %v1133 = vunpack.c.l.b16 %v33
    %v1134 = vunpack.c.l.b16 %v34
    %v1135 = vunpack.c.l.b16 %v35
    %v1136 = vunpack.c.l.b16 %v36
    %v1137 = vunpack.c.l.b16 %v37
    %v1138 = vunpack.c.l.b16 %v38
    %v1139 = vunpack.c.l.b16 %v39
    %v1140 = vunpack.c.l.b16 %v40
    %v1141 = vunpack.c.l.b16 %v41
    %v1142 = vunpack.c.l.b16 %v42
    %v1143 = vunpack.c.l.b16 %v43
    %v1144 = vunpack.c.l.b16 %v44
    %v1145 = vunpack.c.l.b16 %v45
    %v1146 = vunpack.c.l.b16 %v46
    %v1147 = vunpack.c.l.b16 %v47
    %v1148 = vunpack.c.l.b16 %v48
    %v1149 = vunpack.c.l.b16 %v49
    %v1150 = vunpack.c.l.b16 %v50
    %v1151 = vunpack.c.l.b16 %v51
    %v1152 = vunpack.c.l.b16 %v52
    %v1153 = vunpack.c.l.b16 %v53
    %v1154 = vunpack.c.l.b16 %v54
    %v1155 = vunpack.c.l.b16 %v55
    %v1156 = vunpack.c.l.b16 %v56
    %v1157 = vunpack.c.l.b16 %v57
    %v1158 = vunpack.c.l.b16 %v58
    %v1159 = vunpack.c.l.b16 %v59
    %v1160 = vunpack.c.l.b16 %v60
    %v1161 = vunpack.c.l.b16 %v61
    %v1162 = vunpack.c.l.b16 %v62
    %v1163 = vunpack.c.l.b16 %v63
    %v1164 = vunpack.c.l.b16 %v64
    %v1165 = vunpack.c.l.b16 %v65
    %v1166 = vunpack.c.l.b16 %v66
    %v1167 = vunpack.c.l.b16 %v67
    %v1168 = vunpack.c.l.b16 %v68
    %v1169 = vunpack.c.l.b16 %v69
    %v1170 = vunpack.c.l.b16 %v70
    %v1171 = vunpack.c.l.b16 %v71
    %v1172 = vunpack.c.l.b16 %v72
    %v1173 = vunpack.c.l.b16 %v73
    %v1174 = vunpack.c.l.b16 %v74
    %v1175 = vunpack.c.l.b16 %v75
    %v1176 = vunpack.c.l.b16 %v76
    %v1177 = vunpack.c.l.b16 %v77
    %v1178 = vunpack.c.l.b16 %v78
    %v1179 = vunpack.c.l.b16 %v79
    %v1180 = vunpack.c.l.b16 %v80
    %v1181 = vunpack.c.l.b16 %v81
    %v1182 = vunpack.c.l.b16 %v82
    %v1183 = vunpack.c.l.b16 %v83
    %v1184 = vunpack.c.l.b16 %v84
    %v1185 = vunpack.c.l.b16 %v85
    %v1186 = vunpack.c.l.b16 %v86
    %v1187 = vunpack.c.l.b16 %v87
    %v1188 = vunpack.c.l.b16 %v88
    %v1189 = vunpack.c.l.b16 %v89
    %v1190 = vunpack.c.l.b16 %v90
    %v1191 = vunpack.c.l.b16 %v91
    %v1192 = vunpack.c.l.b16 %v92
    %v1193 = vunpack.c.l.b16 %v93
    %v1194 = vunpack.c.l.b16 %v94
    %v1195 = vunpack.c.l.b16 %v95
    %v1196 = vunpack.c.l.b16 %v96
    %v1197 = vunpack.c.l.b16 %v97
    %v1198 = vunpack.c.l.b16 %v98
    %v1199 = vunpack.c.l.b16 %v99
    %v1200 = vunpack.c.l.b16 %v100
    %v1201 = vunpack.c.l.b16 %v101
    %v1202 = vunpack.c.l.b16 %v102
    %v1203 = vunpack.c.l.b16 %v103
    %v1204 = vunpack.c.l.b16 %v104
    %v1205 = vunpack.c.l.b16 %v105
    %v1206 = vunpack.c.l.b16 %v106
    %v1207 = vunpack.c.l.b16 %v107
    %v1208 = vunpack.c.l.b16 %v108
    %v1209 = vunpack.c.l.b16 %v109
    %v1210 = vunpack.c.l.b16 %v110
    %v1211 = vunpack.c.l.b16 %v111
    %v1212 = vunpack.c.l.b16 %v112
    %v1213 = vunpack.c.l.b16 %v113
    %v1214 = vunpack.c.l.b16 %v114
    %v1215 = vunpack.c.l.b16 %v115
    %v1216 = vunpack.c.l.b16 %v116
    %v1217 = vunpack.c.l.b16 %v117
    %v1218 = vunpack.c.l.b16 %v118
    %v1219 = vunpack.c.l.b16 %v119
    %v1220 = vunpack.c.l.b16 %v120
    %v1221 = vunpack.c.l.b16 %v121
    %v1222 = vunpack.c.l.b16 %v122
    %v1223 = vunpack.c.l.b16 %v123
    %v1224 = vunpack.c.l.b16 %v124
    %v1225 = vunpack.c.l.b16 %v125
    %v1226 = vunpack.c.l.b16 %v126
    %v1227 = vunpack.c.l.b16 %v127
    %v1228 = vunpack.c.l.b16 %v128
    %v1229 = vunpack.c.l.b16 %v129
    %v1230 = vunpack.c.l.b16 %v130
    %v1231 = vunpack.c.l.b16 %v131
    %v1232 = vunpack.c.l.b16 %v132
    %v1233 = vunpack.c.l.b16 %v133
    %v1234 = vunpack.c.l.b16 %v134
    %v1235 = vunpack.c.l.b16 %v135
    %v1236 = vunpack.c.l.b16 %v136
    %v1237 = vunpack.c.l.b16 %v137
    %v1238 = vunpack.c.l.b16 %v138
    %v1239 = vunpack.c.l.b16 %v139
    %v1240 = vunpack.c.l.b16 %v140
    %v1241 = vunpack.c.l.b16 %v141
    %v1242 = vunpack.c.l.b16 %v142
    %v1243 = vunpack.c.l.b16 %v143
    %v1244 = vunpack.c.l.b16 %v144
    %v1245 = vunpack.c.l.b16 %v145
    %v1246 = vunpack.c.l.b16 %v146
    %v1247 = vunpack.c.l.b16 %v147
    %v1248 = vunpack.c.l.b16 %v148
    %v1249 = vunpack.c.l.b16 %v149
    %v1250 = vunpack.c.l.b16 %v150
    %v1251 = vunpack.c.l.b16 %v151
    %v1252 = vunpack.c.l.b16 %v152
    %v1253 = vunpack.c.l.b16 %v153
    %v1254 = vunpack.c.l.b16 %v154
    %v1255 = vunpack.c.l.b16 %v155
    %v1256 = vunpack.c.l.b16 %v156
    %v1257 = vunpack.c.l.b16 %v157
    %v1258 = vunpack.c.l.b16 %v158
    %v1259 = vunpack.c.l.b16 %v159
    %v1260 = vunpack.c.l.b16 %v160
    %v1261 = vunpack.c.l.b16 %v161
    %v1262 = vunpack.c.l.b16 %v162
    %v1263 = vunpack.c.l.b16 %v163
    %v1264 = vunpack.c.l.b16 %v164
    %v1265 = vunpack.c.l.b16 %v165
    %v1266 = vunpack.c.l.b16 %v166
    %v1267 = vunpack.c.l.b16 %v167
    %v1268 = vunpack.c.l.b16 %v168
    %v1269 = vunpack.c.l.b16 %v169
    %v1270 = vunpack.c.l.b16 %v170
    %v1271 = vunpack.c.l.b16 %v171
    %v1272 = vunpack.c.l.b16 %v172
    %v1273 = vunpack.c.l.b16 %v173
    %v1274 = vunpack.c.l.b16 %v174
    %v1275 = vunpack.c.l.b16 %v175
    %v1276 = vunpack.c.l.b16 %v176
    %v1277 = vunpack.c.l.b16 %v177
    %v1278 = vunpack.c.l.b16 %v178
    %v1279 = vunpack.c.l.b16 %v179
    %v1280 = vunpack.c.l.b16 %v180
    %v1281 = vunpack.c.l.b16 %v181
    %v1282 = vunpack.c.l.b16 %v182
    %v1283 = vunpack.c.l.b16 %v183
    %v1284 = vunpack.c.l.b16 %v184
    %v1285 = vunpack.c.l.b16 %v185
    %v1286 = vunpack.c.l.b16 %v186
    %v1287 = vunpack.c.l.b16 %v187
    %v1288 = vunpack.c.l.b16 %v188
    %v1289 = vunpack.c.l.b16 %v189
    %v1290 = vunpack.c.l.b16 %v190
    %v1291 = vunpack.c.l.b16 %v191
    %v1292 = vunpack.c.l.b16 %v192
    %v1293 = vunpack.c.l.b16 %v193
    %v1294 = vunpack.c.l.b16 %v194
    %v1295 = vunpack.c.l.b16 %v195
    %v1296 = vunpack.c.l.b16 %v196
    %v1297 = vunpack.c.l.b16 %v197
    %v1298 = vunpack.c.l.b16 %v198
    %v1299 = vunpack.c.l.b16 %v199
    %v1300 = vunpack.c.l.b16 %v200
    %v1301 = vunpack.c.l.b16 %v201
    %v1302 = vunpack.c.l.b16 %v202
    %v1303 = vunpack.c.l.b16 %v203
    %v1304 = vunpack.c.l.b16 %v204
    %v1305 = vunpack.c.l.b16 %v205
    %v1306 = vunpack.c.l.b16 %v206
    %v1307 = vunpack.c.l.b16 %v207
    %v1308 = vunpack.c.l.b16 %v208
    %v1309 = vunpack.c.l.b16 %v209
    %v1310 = vunpack.c.l.b16 %v210
    %v1311 = vunpack.c.l.b16 %v211
    %v1312 = vunpack.c.l.b16 %v212
    %v1313 = vunpack.c.l.b16 %v213
    %v1314 = vunpack.c.l.b16 %v214
    %v1315 = vunpack.c.l.b16 %v215
    %v1316 = vunpack.c.l.b16 %v216
    %v1317 = vunpack.c.l.b16 %v217
    %v1318 = vunpack.c.l.b16 %v218
    %v1319 = vunpack.c.l.b16 %v219
    %v1320 = vunpack.c.l.b16 %v220
    %v1321 = vunpack.c.l.b16 %v221
    %v1322 = vunpack.c.l.b16 %v222
    %v1323 = vunpack.c.l.b16 %v223
    %v1324 = vunpack.c.l.b16 %v224
    %v1325 = vunpack.c.l.b16 %v225
    %v1326 = vunpack.c.l.b16 %v226
    %v1327 = vunpack.c.l.b16 %v227
    %v1328 = vunpack.c.l.b16 %v228
    %v1329 = vunpack.c.l.b16 %v229
    %v1330 = vunpack.c.l.b16 %v230
    %v1331 = vunpack.c.l.b16 %v231
    %v1332 = vunpack.c.l.b16 %v232
    %v1333 = vunpack.c.l.b16 %v233
    %v1334 = vunpack.c.l.b16 %v234
    %v1335 = vunpack.c.l.b16 %v235
    %v1336 = vunpack.c.l.b16 %v236
    %v1337 = vunpack.c.l.b16 %v237
    %v1338 = vunpack.c.l.b16 %v238
    %v1339 = vunpack.c.l.b16 %v239
    %v1340 = vunpack.c.l.b16 %v240
    %v1341 = vunpack.c.l.b16 %v241
    %v1342 = vunpack.c.l.b16 %v242
    %v1343 = vunpack.c.l.b16 %v243
    %v1344 = vunpack.c.l.b16 %v244
    %v1345 = vunpack.c.l.b16 %v245
    %v1346 = vunpack.c.l.b16 %v246
    %v1347 = vunpack.c.l.b16 %v247
    %v1348 = vunpack.c.l.b16 %v248
    %v1349 = vunpack.c.l.b16 %v249
    %v1350 = vunpack.c.l.b16 %v250
    %v1351 = vunpack.c.l.b16 %v251
    %v1352 = vunpack.c.l.b16 %v252
    %v1353 = vunpack.c.l.b16 %v253
    %v1354 = vunpack.c.l.b16 %v254
    %v1355 = vunpack.c.l.b16 %v255
    %v1356 = vunpack.c.l.b16 %v256
    %v1357 = vunpack.c.l.b16 %v257
    %v1358 = vunpack.c.l.b16 %v258
    %v1359 = vunpack.c.l.b16 %v259
    %v1360 = vunpack.c.l.b16 %v260
    %v1361 = vunpack.c.l.b16 %v261
    %v1362 = vunpack.c.l.b16 %v262
    %v1363 = vunpack.c.l.b16 %v263
    %v1364 = vunpack.c.l.b16 %v264
    %v1365 = vunpack.c.l.b16 %v265
    %v1366 = vunpack.c.l.b16 %v266
    %v1367 = vunpack.c.l.b16 %v267
    %v1368 = vunpack.c.l.b16 %v268
    %v1369 = vunpack.c.l.b16 %v269
    %v1370 = vunpack.c.l.b16 %v270
    %v1371 = vunpack.c.l.b16 %v271
    %v1372 = vunpack.c.l.b16 %v272
    %v1373 = vunpack.c.l.b16 %v273
    %v1374 = vunpack.c.l.b16 %v274
    %v1375 = vunpack.c.l.b16 %v275
    %v1376 = vunpack.c.l.b16 %v276
    %v1377 = vunpack.c.l.b16 %v277
    %v1378 = vunpack.c.l.b16 %v278
    %v1379 = vunpack.c.l.b16 %v279
    %v1380 = vunpack.c.l.b16 %v280
    %v1381 = vunpack.c.l.b16 %v281
    %v1382 = vunpack.c.l.b16 %v282
    %v1383 = vunpack.c.l.b16 %v283
    %v1384 = vunpack.c.l.b16 %v284
    %v1385 = vunpack.c.l.b16 %v285
    %v1386 = vunpack.c.l.b16 %v286
    %v1387 = vunpack.c.l.b16 %v287
    %v1388 = vunpack.c.l.b16 %v288
    %v1389 = vunpack.c.l.b16 %v289
    %v1390 = vunpack.c.l.b16 %v290
    %v1391 = vunpack.c.l.b16 %v291
    %v1392 = vunpack.c.l.b16 %v292
    %v1393 = vunpack.c.l.b16 %v293
    %v1394 = vunpack.c.l.b16 %v294
    %v1395 = vunpack.c.l.b16 %v295
    %v1396 = vunpack.c.l.b16 %v296
    %v1397 = vunpack.c.l.b16 %v297
    %v1398 = vunpack.c.l.b16 %v298
    %v1399 = vunpack.c.l.b16 %v299
    %v1400 = vunpack.c.l.b16 %v300
    %v1401 = vunpack.c.l.b16 %v301
    %v1402 = vunpack.c.l.b16 %v302
    %v1403 = vunpack.c.l.b16 %v303
    %v1404 = vunpack.c.l.b16 %v304
    %v1405 = vunpack.c.l.b16 %v305
    %v1406 = vunpack.c.l.b16 %v306
    %v1407 = vunpack.c.l.b16 %v307
    %v1408 = vunpack.c.l.b16 %v308
    %v1409 = vunpack.c.l.b16 %v309
    %v1410 = vunpack.c.l.b16 %v310
    %v1411 = vunpack.c.l.b16 %v311
    %v1412 = vunpack.c.l.b16 %v312
    %v1413 = vunpack.c.l.b16 %v313
    %v1414 = vunpack.c.l.b16 %v314
    %v1415 = vunpack.c.l.b16 %v315
    %v1416 = vunpack.c.l.b16 %v316
    %v1417 = vunpack.c.l.b16 %v317
    %v1418 = vunpack.c.l.b16 %v318
    %v1419 = vunpack.c.l.b16 %v319
    %v1420 = vunpack.c.l.b16 %v320
    %v1421 = vunpack.c.l.b16 %v321
    %v1422 = vunpack.c.l.b16 %v322
    %v1423 = vunpack.c.l.b16 %v323
    %v1424 = vunpack.c.l.b16 %v324
    %v1425 = vunpack.c.l.b16 %v325
    %v1426 = vunpack.c.l.b16 %v326
    %v1427 = vunpack.c.l.b16 %v327
    %v1428 = vunpack.c.l.b16 %v328
    %v1429 = vunpack.c.l.b16 %v329
    %v1430 = vunpack.c.l.b16 %v330
    %v1431 = vunpack.c.l.b16 %v331
    %v1432 = vunpack.c.l.b16 %v332
    %v1433 = vunpack.c.l.b16 %v333
    %v1434 = vunpack.c.l.b16 %v334
    %v1435 = vunpack.c.l.b16 %v335
    %v1436 = vunpack.c.l.b16 %v336
    %v1437 = vunpack.c.l.b16 %v337
    %v1438 = vunpack.c.l.b16 %v338
    %v1439 = vunpack.c.l.b16 %v339
    %v1440 = vunpack.c.l.b16 %v340
    %v1441 = vunpack.c.l.b16 %v341
    %v1442 = vunpack.c.l.b16 %v342
    %v1443 = vunpack.c.l.b16 %v343
    %v1444 = vunpack.c.l.b16 %v344
    %v1445 = vunpack.c.l.b16 %v345
    %v1446 = vunpack.c.l.b16 %v346
    %v1447 = vunpack.c.l.b16 %v347
    %v1448 = vunpack.c.l.b16 %v348
    %v1449 = vunpack.c.l.b16 %v349
    %v1450 = vunpack.c.l.b16 %v350
    %v1451 = vunpack.c.l.b16 %v351
    %v1452 = vunpack.c.l.b16 %v352
    %v1453 = vunpack.c.l.b16 %v353
    %v1454 = vunpack.c.l.b16 %v354
    %v1455 = vunpack.c.l.b16 %v355
    %v1456 = vunpack.c.l.b16 %v356
    %v1457 = vunpack.c.l.b16 %v357
    %v1458 = vunpack.c.l.b16 %v358
    %v1459 = vunpack.c.l.b16 %v359
    %v1460 = vunpack.c.l.b16 %v360
    %v1461 = vunpack.c.l.b16 %v361
    %v1462 = vunpack.c.l.b16 %v362
    %v1463 = vunpack.c.l.b16 %v363
    %v1464 = vunpack.c.l.b16 %v364
    %v1465 = vunpack.c.l.b16 %v365
    %v1466 = vunpack.c.l.b16 %v366
    %v1467 = vunpack.c.l.b16 %v367
    %v1468 = vunpack.c.l.b16 %v368
    %v1469 = vunpack.c.l.b16 %v369
    %v1470 = vunpack.c.l.b16 %v370
    %v1471 = vunpack.c.l.b16 %v371
    %v1472 = vunpack.c.l.b16 %v372
    %v1473 = vunpack.c.l.b16 %v373
    %v1474 = vunpack.c.l.b16 %v374
    %v1475 = vunpack.c.l.b16 %v375
    %v1476 = vunpack.c.l.b16 %v376
    %v1477 = vunpack.c.l.b16 %v377
    %v1478 = vunpack.c.l.b16 %v378
    %v1479 = vunpack.c.l.b16 %v379
    %v1480 = vunpack.c.l.b16 %v380
    %v1481 = vunpack.c.l.b16 %v381
    %v1482 = vunpack.c.l.b16 %v382
    %v1483 = vunpack.c.l.b16 %v383
    %v1484 = vunpack.c.l.b16 %v384
    %v1485 = vunpack.c.l.b16 %v385
    %v1486 = vunpack.c.l.b16 %v386
    %v1487 = vunpack.c.l.b16 %v387
    %v1488 = vunpack.c.l.b16 %v388
    %v1489 = vunpack.c.l.b16 %v389
    %v1490 = vunpack.c.l.b16 %v390
    %v1491 = vunpack.c.l.b16 %v391
    %v1492 = vunpack.c.l.b16 %v392
    %v1493 = vunpack.c.l.b16 %v393
    %v1494 = vunpack.c.l.b16 %v394
    %v1495 = vunpack.c.l.b16 %v395
    %v1496 = vunpack.c.l.b16 %v396
    %v1497 = vunpack.c.l.b16 %v397
    %v1498 = vunpack.c.l.b16 %v398
    %v1499 = vunpack.c.l.b16 %v399
    %v1500 = vunpack.c.l.b16 %v400
    %v1501 = vunpack.c.l.b16 %v401
    %v1502 = vunpack.c.l.b16 %v402
    %v1503 = vunpack.c.l.b16 %v403
    %v1504 = vunpack.c.l.b16 %v404
    %v1505 = vunpack.c.l.b16 %v405
    %v1506 = vunpack.c.l.b16 %v406
    %v1507 = vunpack.c.l.b16 %v407
    %v1508 = vunpack.c.l.b16 %v408
    %v1509 = vunpack.c.l.b16 %v409
    %v1510 = vunpack.c.l.b16 %v410
    %v1511 = vunpack.c.l.b16 %v411
    %v1512 = vunpack.c.l.b16 %v412
    %v1513 = vunpack.c.l.b16 %v413
    %v1514 = vunpack.c.l.b16 %v414
    %v1515 = vunpack.c.l.b16 %v415
    %v1516 = vunpack.c.l.b16 %v416
    %v1517 = vunpack.c.l.b16 %v417
    %v1518 = vunpack.c.l.b16 %v418
    %v1519 = vunpack.c.l.b16 %v419
    %v1520 = vunpack.c.l.b16 %v420
    %v1521 = vunpack.c.l.b16 %v421
    %v1522 = vunpack.c.l.b16 %v422
    %v1523 = vunpack.c.l.b16 %v423
    %v1524 = vunpack.c.l.b16 %v424
    %v1525 = vunpack.c.l.b16 %v425
    %v1526 = vunpack.c.l.b16 %v426
    %v1527 = vunpack.c.l.b16 %v427
    %v1528 = vunpack.c.l.b16 %v428
    %v1529 = vunpack.c.l.b16 %v429
    %v1530 = vunpack.c.l.b16 %v430
    %v1531 = vunpack.c.l.b16 %v431
    %v1532 = vunpack.c.l.b16 %v432
    %v1533 = vunpack.c.l.b16 %v433
    %v1534 = vunpack.c.l.b16 %v434
    %v1535 = vunpack.c.l.b16 %v435
    %v1536 = vunpack.c.l.b16 %v436
    %v1537 = vunpack.c.l.b16 %v437
    %v1538 = vunpack.c.l.b16 %v438
    %v1539 = vunpack.c.l.b16 %v439
    %v1540 = vunpack.c.l.b16 %v440
    %v1541 = vunpack.c.l.b16 %v441
    %v1542 = vunpack.c.l.b16 %v442
    %v1543 = vunpack.c.l.b16 %v443
    %v1544 = vunpack.c.l.b16 %v444
    %v1545 = vunpack.c.l.b16 %v445
    %v1546 = vunpack.c.l.b16 %v446
    %v1547 = vunpack.c.l.b16 %v447
    %v1548 = vunpack.c.l.b16 %v448
    %v1549 = vunpack.c.l.b16 %v449
    %v1550 = vunpack.c.l.b16 %v450
    %v1551 = vunpack.c.l.b16 %v451
    %v1552 = vunpack.c.l.b16 %v452
    %v1553 = vunpack.c.l.b16 %v453
    %v1554 = vunpack.c.l.b16 %v454
    %v1555 = vunpack.c.l.b16 %v455
    %v1556 = vunpack.c.l.b16 %v456
    %v1557 = vunpack.c.l.b16 %v457
    %v1558 = vunpack.c.l.b16 %v458
    %v1559 = vunpack.c.l.b16 %v459
    %v1560 = vunpack.c.l.b16 %v460
    %v1561 = vunpack.c.l.b16 %v461
    %v1562 = vunpack.c.l.b16 %v462
    %v1563 = vunpack.c.l.b16 %v463
    %v1564 = vunpack.c.l.b16 %v464
    %v1565 = vunpack.c.l.b16 %v465
    %v1566 = vunpack.c.l.b16 %v466
    %v1567 = vunpack.c.l.b16 %v467
    %v1568 = vunpack.c.l.b16 %v468
    %v1569 = vunpack.c.l.b16 %v469
    %v1570 = vunpack.c.l.b16 %v470
    %v1571 = vunpack.c.l.b16 %v471
    %v1572 = vunpack.c.l.b16 %v472
    %v1573 = vunpack.c.l.b16 %v473
    %v1574 = vunpack.c.l.b16 %v474
    %v1575 = vunpack.c.l.b16 %v475
    %v1576 = vunpack.c.l.b16 %v476
    %v1577 = vunpack.c.l.b16 %v477
    %v1578 = vunpack.c.l.b16 %v478
    %v1579 = vunpack.c.l.b16 %v479
    %v1580 = vunpack.c.l.b16 %v480
    %v1581 = vunpack.c.l.b16 %v481
    %v1582 = vunpack.c.l.b16 %v482
    %v1583 = vunpack.c.l.b16 %v483
    %v1584 = vunpack.c.l.b16 %v484
    %v1585 = vunpack.c.l.b16 %v485
    %v1586 = vunpack.c.l.b16 %v486
    %v1587 = vunpack.c.l.b16 %v487
    %v1588 = vunpack.c.l.b16 %v488
    %v1589 = vunpack.c.l.b16 %v489
    %v1590 = vunpack.c.l.b16 %v490
    %v1591 = vunpack.c.l.b16 %v491
    %v1592 = vunpack.c.l.b16 %v492
    %v1593 = vunpack.c.l.b16 %v493
    %v1594 = vunpack.c.l.b16 %v494
    %v1595 = vunpack.c.l.b16 %v495
    %v1596 = vunpack.c.l.b16 %v496
    %v1597 = vunpack.c.l.b16 %v497
    %v1598 = vunpack.c.l.b16 %v498
    %v1599 = vunpack.c.l.b16 %v499
    %v1600 = vunpack.c.l.b16 %v500
    %v1601 = vunpack.c.l.b16 %v501
    %v1602 = vunpack.c.l.b16 %v502
    %v1603 = vunpack.c.l.b16 %v503
    %v1604 = vunpack.c.l.b16 %v504
    %v1605 = vunpack.c.l.b16 %v505
    %v1606 = vunpack.c.l.b16 %v506
    %v1607 = vunpack.c.l.b16 %v507
    %v1608 = vunpack.c.l.b16 %v508
    %v1609 = vunpack.c.l.b16 %v509
    %v1610 = vunpack.c.l.b16 %v510
    %v1611 = vunpack.c.l.b16 %v511
    %v1612 = vunpack.c.l.b16 %v512
    %v1613 = vunpack.c.l.b16 %v513
    %v1614 = vunpack.c.l.b16 %v514
    %v1615 = vunpack.c.l.b16 %v515
    %v1616 = vunpack.c.l.b16 %v516
    %v1617 = vunpack.c.l.b16 %v517
    %v1618 = vunpack.c.l.b16 %v518
    %v1619 = vunpack.c.l.b16 %v519
    %v1620 = vunpack.c.l.b16 %v520
    %v1621 = vunpack.c.l.b16 %v521
    %v1622 = vunpack.c.l.b16 %v522
    %v1623 = vunpack.c.l.b16 %v523
    %v1624 = vunpack.c.l.b16 %v524
    %v1625 = vunpack.c.l.b16 %v525
    %v1626 = vunpack.c.l.b16 %v526
    %v1627 = vunpack.c.l.b16 %v527
    %v1628 = vunpack.c.l.b16 %v528
    %v1629 = vunpack.c.l.b16 %v529
    %v1630 = vunpack.c.l.b16 %v530
    %v1631 = vunpack.c.l.b16 %v531
    %v1632 = vunpack.c.l.b16 %v532
    %v1633 = vunpack.c.l.b16 %v533
    %v1634 = vunpack.c.l.b16 %v534
    %v1635 = vunpack.c.l.b16 %v535
    %v1636 = vunpack.c.l.b16 %v536
    %v1637 = vunpack.c.l.b16 %v537
    %v1638 = vpack.c.b16 %v1127, %v1126
    %v1639 = vpack.c.b16 %v1129, %v1128
    %v1640 = vpack.c.b16 %v1131, %v1130
    %v1641 = vpack.c.b16 %v1133, %v1132
    %v1642 = vpack.c.b16 %v1135, %v1134
    %v1643 = vpack.c.b16 %v1137, %v1136
    %v1644 = vpack.c.b16 %v1139, %v1138
    %v1645 = vpack.c.b16 %v1141, %v1140
    %v1646 = vpack.c.b16 %v1143, %v1142
    %v1647 = vpack.c.b16 %v1145, %v1144
    %v1648 = vpack.c.b16 %v1147, %v1146
    %v1649 = vpack.c.b16 %v1149, %v1148
    %v1650 = vpack.c.b16 %v1151, %v1150
    %v1651 = vpack.c.b16 %v1153, %v1152
    %v1652 = vpack.c.b16 %v1155, %v1154
    %v1653 = vpack.c.b16 %v1157, %v1156
    %v1654 = vpack.c.b16 %v1159, %v1158
    %v1655 = vpack.c.b16 %v1161, %v1160
    %v1656 = vpack.c.b16 %v1163, %v1162
    %v1657 = vpack.c.b16 %v1165, %v1164
    %v1658 = vpack.c.b16 %v1167, %v1166
    %v1659 = vpack.c.b16 %v1169, %v1168
    %v1660 = vpack.c.b16 %v1171, %v1170
    %v1661 = vpack.c.b16 %v1173, %v1172
    %v1662 = vpack.c.b16 %v1175, %v1174
    %v1663 = vpack.c.b16 %v1177, %v1176
    %v1664 = vpack.c.b16 %v1179, %v1178
    %v1665 = vpack.c.b16 %v1181, %v1180
    %v1666 = vpack.c.b16 %v1183, %v1182
    %v1667 = vpack.c.b16 %v1185, %v1184
    %v1668 = vpack.c.b16 %v1187, %v1186
    %v1669 = vpack.c.b16 %v1189, %v1188
    %v1670 = vpack.c.b16 %v1191, %v1190
    %v1671 = vpack.c.b16 %v1193, %v1192
    %v1672 = vpack.c.b16 %v1195, %v1194
    %v1673 = vpack.c.b16 %v1197, %v1196
    %v1674 = vpack.c.b16 %v1199, %v1198
    %v1675 = vpack.c.b16 %v1201, %v1200
    %v1676 = vpack.c.b16 %v1203, %v1202
    %v1677 = vpack.c.b16 %v1205, %v1204
    %v1678 = vpack.c.b16 %v1207, %v1206
    %v1679 = vpack.c.b16 %v1209, %v1208
    %v1680 = vpack.c.b16 %v1211, %v1210
    %v1681 = vpack.c.b16 %v1213, %v1212
    %v1682 = vpack.c.b16 %v1215, %v1214
    %v1683 = vpack.c.b16 %v1217, %v1216
    %v1684 = vpack.c.b16 %v1219, %v1218
    %v1685 = vpack.c.b16 %v1221, %v1220
    %v1686 = vpack.c.b16 %v1223, %v1222
    %v1687 = vpack.c.b16 %v1225, %v1224
    %v1688 = vpack.c.b16 %v1227, %v1226
    %v1689 = vpack.c.b16 %v1229, %v1228
    %v1690 = vpack.c.b16 %v1231, %v1230
    %v1691 = vpack.c.b16 %v1233, %v1232
    %v1692 = vpack.c.b16 %v1235, %v1234
    %v1693 = vpack.c.b16 %v1237, %v1236
    %v1694 = vpack.c.b16 %v1239, %v1238
    %v1695 = vpack.c.b16 %v1241, %v1240
    %v1696 = vpack.c.b16 %v1243, %v1242
    %v1697 = vpack.c.b16 %v1245, %v1244
    %v1698 = vpack.c.b16 %v1247, %v1246
    %v1699 = vpack.c.b16 %v1249, %v1248
    %v1700 = vpack.c.b16 %v1251, %v1250
    %v1701 = vpack.c.b16 %v1253, %v1252
    %v1702 = vpack.c.b16 %v1255, %v1254
    %v1703 = vpack.c.b16 %v1257, %v1256
    %v1704 = vpack.c.b16 %v1259, %v1258
    %v1705 = vpack.c.b16 %v1261, %v1260
    %v1706 = vpack.c.b16 %v1263, %v1262
    %v1707 = vpack.c.b16 %v1265, %v1264
    %v1708 = vpack.c.b16 %v1267, %v1266
    %v1709 = vpack.c.b16 %v1269, %v1268
    %v1710 = vpack.c.b16 %v1271, %v1270
    %v1711 = vpack.c.b16 %v1273, %v1272
    %v1712 = vpack.c.b16 %v1275, %v1274
    %v1713 = vpack.c.b16 %v1277, %v1276
    %v1714 = vpack.c.b16 %v1279, %v1278
    %v1715 = vpack.c.b16 %v1281, %v1280
    %v1716 = vpack.c.b16 %v1283, %v1282
    %v1717 = vpack.c.b16 %v1285, %v1284
    %v1718 = vpack.c.b16 %v1287, %v1286
    %v1719 = vpack.c.b16 %v1289, %v1288
    %v1720 = vpack.c.b16 %v1291, %v1290
    %v1721 = vpack.c.b16 %v1293, %v1292
    %v1722 = vpack.c.b16 %v1295, %v1294
    %v1723 = vpack.c.b16 %v1297, %v1296
    %v1724 = vpack.c.b16 %v1299, %v1298
    %v1725 = vpack.c.b16 %v1301, %v1300
    %v1726 = vpack.c.b16 %v1303, %v1302
    %v1727 = vpack.c.b16 %v1305, %v1304
    %v1728 = vpack.c.b16 %v1307, %v1306
    %v1729 = vpack.c.b16 %v1309, %v1308
    %v1730 = vpack.c.b16 %v1311, %v1310
    %v1731 = vpack.c.b16 %v1313, %v1312
    %v1732 = vpack.c.b16 %v1315, %v1314
    %v1733 = vpack.c.b16 %v1317, %v1316
    %v1734 = vpack.c.b16 %v1319, %v1318
    %v1735 = vpack.c.b16 %v1321, %v1320
    %v1736 = vpack.c.b16 %v1323, %v1322
    %v1737 = vpack.c.b16 %v1325, %v1324
    %v1738 = vpack.c.b16 %v1327, %v1326
    %v1739 = vpack.c.b16 %v1329, %v1328
    %v1740 = vpack.c.b16 %v1331, %v1330
    %v1741 = vpack.c.b16 %v1333, %v1332
    %v1742 = vpack.c.b16 %v1335, %v1334
    %v1743 = vpack.c.b16 %v1337, %v1336
    %v1744 = vpack.c.b16 %v1339, %v1338
    %v1745 = vpack.c.b16 %v1341, %v1340
    %v1746 = vpack.c.b16 %v1343, %v1342
    %v1747 = vpack.c.b16 %v1345, %v1344
    %v1748 = vpack.c.b16 %v1347, %v1346
    %v1749 = vpack.c.b16 %v1349, %v1348
    %v1750 = vpack.c.b16 %v1351, %v1350
    %v1751 = vpack.c.b16 %v1353, %v1352
    %v1752 = vpack.c.b16 %v1355, %v1354
    %v1753 = vpack.c.b16 %v1357, %v1356
    %v1754 = vpack.c.b16 %v1359, %v1358
    %v1755 = vpack.c.b16 %v1361, %v1360
    %v1756 = vpack.c.b16 %v1363, %v1362
    %v1757 = vpack.c.b16 %v1365, %v1364
    %v1758 = vpack.c.b16 %v1367, %v1366
    %v1759 = vpack.c.b16 %v1369, %v1368
    %v1760 = vpack.c.b16 %v1371, %v1370
    %v1761 = vpack.c.b16 %v1373, %v1372
    %v1762 = vpack.c.b16 %v1375, %v1374
    %v1763 = vpack.c.b16 %v1377, %v1376
    %v1764 = vpack.c.b16 %v1379, %v1378
    %v1765 = vpack.c.b16 %v1381, %v1380
    %v1766 = vpack.c.b16 %v1383, %v1382
    %v1767 = vpack.c.b16 %v1385, %v1384
    %v1768 = vpack.c.b16 %v1387, %v1386
    %v1769 = vpack.c.b16 %v1389, %v1388
    %v1770 = vpack.c.b16 %v1391, %v1390
    %v1771 = vpack.c.b16 %v1393, %v1392
    %v1772 = vpack.c.b16 %v1395, %v1394
    %v1773 = vpack.c.b16 %v1397, %v1396
    %v1774 = vpack.c.b16 %v1399, %v1398
    %v1775 = vpack.c.b16 %v1401, %v1400
    %v1776 = vpack.c.b16 %v1403, %v1402
    %v1777 = vpack.c.b16 %v1405, %v1404
    %v1778 = vpack.c.b16 %v1407, %v1406
    %v1779 = vpack.c.b16 %v1409, %v1408
    %v1780 = vpack.c.b16 %v1411, %v1410
    %v1781 = vpack.c.b16 %v1413, %v1412
    %v1782 = vpack.c.b16 %v1415, %v1414
    %v1783 = vpack.c.b16 %v1417, %v1416
    %v1784 = vpack.c.b16 %v1419, %v1418
    %v1785 = vpack.c.b16 %v1421, %v1420
    %v1786 = vpack.c.b16 %v1423, %v1422
    %v1787 = vpack.c.b16 %v1425, %v1424
    %v1788 = vpack.c.b16 %v1427, %v1426
    %v1789 = vpack.c.b16 %v1429, %v1428
    %v1790 = vpack.c.b16 %v1431, %v1430
    %v1791 = vpack.c.b16 %v1433, %v1432
    %v1792 = vpack.c.b16 %v1435, %v1434
    %v1793 = vpack.c.b16 %v1437, %v1436
    %v1794 = vpack.c.b16 %v1439, %v1438
    %v1795 = vpack.c.b16 %v1441, %v1440
    %v1796 = vpack.c.b16 %v1443, %v1442
    %v1797 = vpack.c.b16 %v1445, %v1444
    %v1798 = vpack.c.b16 %v1447, %v1446
    %v1799 = vpack.c.b16 %v1449, %v1448
    %v1800 = vpack.c.b16 %v1451, %v1450
    %v1801 = vpack.c.b16 %v1453, %v1452
    %v1802 = vpack.c.b16 %v1455, %v1454
    %v1803 = vpack.c.b16 %v1457, %v1456
    %v1804 = vpack.c.b16 %v1459, %v1458
    %v1805 = vpack.c.b16 %v1461, %v1460
    %v1806 = vpack.c.b16 %v1463, %v1462
    %v1807 = vpack.c.b16 %v1465, %v1464
    %v1808 = vpack.c.b16 %v1467, %v1466
    %v1809 = vpack.c.b16 %v1469, %v1468
    %v1810 = vpack.c.b16 %v1471, %v1470
    %v1811 = vpack.c.b16 %v1473, %v1472
    %v1812 = vpack.c.b16 %v1475, %v1474
    %v1813 = vpack.c.b16 %v1477, %v1476
    %v1814 = vpack.c.b16 %v1479, %v1478
    %v1815 = vpack.c.b16 %v1481, %v1480
    %v1816 = vpack.c.b16 %v1483, %v1482
    %v1817 = vpack.c.b16 %v1485, %v1484
    %v1818 = vpack.c.b16 %v1487, %v1486
    %v1819 = vpack.c.b16 %v1489, %v1488
    %v1820 = vpack.c.b16 %v1491, %v1490
    %v1821 = vpack.c.b16 %v1493, %v1492
    %v1822 = vpack.c.b16 %v1495, %v1494
    %v1823 = vpack.c.b16 %v1497, %v1496
    %v1824 = vpack.c.b16 %v1499, %v1498
    %v1825 = vpack.c.b16 %v1501, %v1500
    %v1826 = vpack.c.b16 %v1503, %v1502
    %v1827 = vpack.c.b16 %v1505, %v1504
    %v1828 = vpack.c.b16 %v1507, %v1506
    %v1829 = vpack.c.b16 %v1509, %v1508
    %v1830 = vpack.c.b16 %v1511, %v1510
    %v1831 = vpack.c.b16 %v1513, %v1512
    %v1832 = vpack.c.b16 %v1515, %v1514
    %v1833 = vpack.c.b16 %v1517, %v1516
    %v1834 = vpack.c.b16 %v1519, %v1518
    %v1835 = vpack.c.b16 %v1521, %v1520
    %v1836 = vpack.c.b16 %v1523, %v1522
    %v1837 = vpack.c.b16 %v1525, %v1524
    %v1838 = vpack.c.b16 %v1527, %v1526
    %v1839 = vpack.c.b16 %v1529, %v1528
    %v1840 = vpack.c.b16 %v1531, %v1530
    %v1841 = vpack.c.b16 %v1533, %v1532
    %v1842 = vpack.c.b16 %v1535, %v1534
    %v1843 = vpack.c.b16 %v1537, %v1536
    %v1844 = vpack.c.b16 %v1539, %v1538
    %v1845 = vpack.c.b16 %v1541, %v1540
    %v1846 = vpack.c.b16 %v1543, %v1542
    %v1847 = vpack.c.b16 %v1545, %v1544
    %v1848 = vpack.c.b16 %v1547, %v1546
    %v1849 = vpack.c.b16 %v1549, %v1548
    %v1850 = vpack.c.b16 %v1551, %v1550
    %v1851 = vpack.c.b16 %v1553, %v1552
    %v1852 = vpack.c.b16 %v1555, %v1554
    %v1853 = vpack.c.b16 %v1557, %v1556
    %v1854 = vpack.c.b16 %v1559, %v1558
    %v1855 = vpack.c.b16 %v1561, %v1560
    %v1856 = vpack.c.b16 %v1563, %v1562
    %v1857 = vpack.c.b16 %v1565, %v1564
    %v1858 = vpack.c.b16 %v1567, %v1566
    %v1859 = vpack.c.b16 %v1569, %v1568
    %v1860 = vpack.c.b16 %v1571, %v1570
    %v1861 = vpack.c.b16 %v1573, %v1572
    %v1862 = vpack.c.b16 %v1575, %v1574
    %v1863 = vpack.c.b16 %v1577, %v1576
    %v1864 = vpack.c.b16 %v1579, %v1578
    %v1865 = vpack.c.b16 %v1581, %v1580
    %v1866 = vpack.c.b16 %v1583, %v1582
    %v1867 = vpack.c.b16 %v1585, %v1584
    %v1868 = vpack.c.b16 %v1587, %v1586
    %v1869 = vpack.c.b16 %v1589, %v1588
    %v1870 = vpack.c.b16 %v1591, %v1590
    %v1871 = vpack.c.b16 %v1593, %v1592
    %v1872 = vpack.c.b16 %v1595, %v1594
    %v1873 = vpack.c.b16 %v1597, %v1596
    %v1874 = vpack.c.b16 %v1599, %v1598
    %v1875 = vpack.c.b16 %v1601, %v1600
    %v1876 = vpack.c.b16 %v1603, %v1602
    %v1877 = vpack.c.b16 %v1605, %v1604
    %v1878 = vpack.c.b16 %v1607, %v1606
    %v1879 = vpack.c.b16 %v1609, %v1608
    %v1880 = vpack.c.b16 %v1611, %v1610
    %v1881 = vpack.c.b16 %v1613, %v1612
    %v1882 = vpack.c.b16 %v1615, %v1614
    %v1883 = vpack.c.b16 %v1617, %v1616
    %v1884 = vpack.c.b16 %v1619, %v1618
    %v1885 = vpack.c.b16 %v1621, %v1620
    %v1886 = vpack.c.b16 %v1623, %v1622
    %v1887 = vpack.c.b16 %v1625, %v1624
    %v1888 = vpack.c.b16 %v1627, %v1626
    %v1889 = vpack.c.b16 %v1629, %v1628
    %v1890 = vpack.c.b16 %v1631, %v1630
    %v1891 = vpack.c.b16 %v1633, %v1632
    %v1892 = vpack.c.b16 %v1635, %v1634
    %v1893 = vpack.c.b16 %v1637, %v1636
    %2150 = vmatpush.bf16.msra.mxu0 %v1645
    %2151 = vmatpush.bf16.msra.mxu0 %v1644
    %2152 = vmatpush.bf16.msra.mxu0 %v1643
    %2153 = vmatpush.bf16.msra.mxu0 %v1642
    %2154 = vmatpush.bf16.msra.mxu0 %v1641
    %2155 = vmatpush.bf16.msra.mxu0 %v1640
    %2156 = vmatpush.bf16.msra.mxu0 %v1639
    %2157 = vmatpush.bf16.msra.mxu0 %v1638
    %2158 = vmatmul.bf16.gmra.mxu0 %v544
    %v2159 = vpop.f32.mrf.mxu0
    %v2160 = vadd.f32 %v540, %v2159
    %v2161 = vpop.f32.mrf.mxu0
    %2162 = vdwg.mxu0
    %2163 = vmatpush.bf16.msra.mxu0 %v1653
    %2164 = vmatpush.bf16.msra.mxu0 %v1652
    %2165 = vmatpush.bf16.msra.mxu0 %v1651
    %2166 = vmatpush.bf16.msra.mxu0 %v1650
    %2167 = vmatpush.bf16.msra.mxu0 %v1649
    %2168 = vmatpush.bf16.msra.mxu0 %v1648
    %2169 = vmatpush.bf16.msra.mxu0 %v1647
    %2170 = vmatpush.bf16.msra.mxu0 %v1646
    %2171 = vmatmul.bf16.gmra.mxu0 %v545
    %v2172 = vpop.f32.mrf.mxu0
    %v2173 = vadd.f32 %v2160, %v2172
    %v2174 = vpop.f32.mrf.mxu0
    %2175 = vdwg.mxu0
    %2176 = vmatpush.bf16.msra.mxu0 %v1661
    %2177 = vmatpush.bf16.msra.mxu0 %v1660
    %2178 = vmatpush.bf16.msra.mxu0 %v1659
    %2179 = vmatpush.bf16.msra.mxu0 %v1658
    %2180 = vmatpush.bf16.msra.mxu0 %v1657
    %2181 = vmatpush.bf16.msra.mxu0 %v1656
    %2182 = vmatpush.bf16.msra.mxu0 %v1655
    %2183 = vmatpush.bf16.msra.mxu0 %v1654
    %2184 = vmatmul.bf16.gmra.mxu0 %v546
    %v2185 = vpop.f32.mrf.mxu0
    %v2186 = vadd.f32 %v2173, %v2185
    %v2187 = vpop.f32.mrf.mxu0
    %2188 = vdwg.mxu0
    %2189 = vmatpush.bf16.msra.mxu0 %v1669
    %2190 = vmatpush.bf16.msra.mxu0 %v1668
    %2191 = vmatpush.bf16.msra.mxu0 %v1667
    %2192 = vmatpush.bf16.msra.mxu0 %v1666
    %2193 = vmatpush.bf16.msra.mxu0 %v1665
    %2194 = vmatpush.bf16.msra.mxu0 %v1664
    %2195 = vmatpush.bf16.msra.mxu0 %v1663
    %2196 = vmatpush.bf16.msra.mxu0 %v1662
    %2197 = vmatmul.bf16.gmra.mxu0 %v547
    %v2198 = vpop.f32.mrf.mxu0
    %v2199 = vadd.f32 %v2186, %v2198
    %v2200 = vpop.f32.mrf.mxu0
    %2201 = vdwg.mxu0
    %2202 = vmatpush.bf16.msra.mxu0 %v1677
    %2203 = vmatpush.bf16.msra.mxu0 %v1676
    %2204 = vmatpush.bf16.msra.mxu0 %v1675
    %2205 = vmatpush.bf16.msra.mxu0 %v1674
    %2206 = vmatpush.bf16.msra.mxu0 %v1673
    %2207 = vmatpush.bf16.msra.mxu0 %v1672
    %2208 = vmatpush.bf16.msra.mxu0 %v1671
    %2209 = vmatpush.bf16.msra.mxu0 %v1670
    %2210 = vmatmul.bf16.gmra.mxu0 %v548
    %v2211 = vpop.f32.mrf.mxu0
    %v2212 = vadd.f32 %v2199, %v2211
    %v2213 = vpop.f32.mrf.mxu0
    %2214 = vdwg.mxu0
    %2215 = vmatpush.bf16.msra.mxu0 %v1685
    %2216 = vmatpush.bf16.msra.mxu0 %v1684
    %2217 = vmatpush.bf16.msra.mxu0 %v1683
    %2218 = vmatpush.bf16.msra.mxu0 %v1682
    %2219 = vmatpush.bf16.msra.mxu0 %v1681
    %2220 = vmatpush.bf16.msra.mxu0 %v1680
    %2221 = vmatpush.bf16.msra.mxu0 %v1679
    %2222 = vmatpush.bf16.msra.mxu0 %v1678
    %2223 = vmatmul.bf16.gmra.mxu0 %v549
    %v2224 = vpop.f32.mrf.mxu0
    %v2225 = vadd.f32 %v2212, %v2224
    %v2226 = vpop.f32.mrf.mxu0
    %2227 = vdwg.mxu0
    %2228 = vmatpush.bf16.msra.mxu0 %v1693
    %2229 = vmatpush.bf16.msra.mxu0 %v1692
    %2230 = vmatpush.bf16.msra.mxu0 %v1691
    %2231 = vmatpush.bf16.msra.mxu0 %v1690
    %2232 = vmatpush.bf16.msra.mxu0 %v1689
    %2233 = vmatpush.bf16.msra.mxu0 %v1688
    %2234 = vmatpush.bf16.msra.mxu0 %v1687
    %2235 = vmatpush.bf16.msra.mxu0 %v1686
    %2236 = vmatmul.bf16.gmra.mxu0 %v550
    %v2237 = vpop.f32.mrf.mxu0
    %v2238 = vadd.f32 %v2225, %v2237
    %v2239 = vpop.f32.mrf.mxu0
    %2240 = vdwg.mxu0
    %2241 = vmatpush.bf16.msra.mxu0 %v1701
    %2242 = vmatpush.bf16.msra.mxu0 %v1700
    %2243 = vmatpush.bf16.msra.mxu0 %v1699
    %2244 = vmatpush.bf16.msra.mxu0 %v1698
    %2245 = vmatpush.bf16.msra.mxu0 %v1697
    %2246 = vmatpush.bf16.msra.mxu0 %v1696
    %2247 = vmatpush.bf16.msra.mxu0 %v1695
    %2248 = vmatpush.bf16.msra.mxu0 %v1694
    %2249 = vmatmul.bf16.gmra.mxu0 %v551
    %v2250 = vpop.f32.mrf.mxu0
    %v2251 = vadd.f32 %v2238, %v2250
    %v2252 = vpop.f32.mrf.mxu0
    %2253 = vdwg.mxu0
    %2254 = vmatpush.bf16.msra.mxu0 %v1709
    %2255 = vmatpush.bf16.msra.mxu0 %v1708
    %2256 = vmatpush.bf16.msra.mxu0 %v1707
    %2257 = vmatpush.bf16.msra.mxu0 %v1706
    %2258 = vmatpush.bf16.msra.mxu0 %v1705
    %2259 = vmatpush.bf16.msra.mxu0 %v1704
    %2260 = vmatpush.bf16.msra.mxu0 %v1703
    %2261 = vmatpush.bf16.msra.mxu0 %v1702
    %2262 = vmatmul.bf16.gmra.mxu0 %v554
    %v2263 = vpop.f32.mrf.mxu0
    %v2264 = vadd.f32 %v2251, %v2263
    %v2265 = vpop.f32.mrf.mxu0
    %2266 = vdwg.mxu0
    %2267 = vmatpush.bf16.msra.mxu0 %v1717
    %2268 = vmatpush.bf16.msra.mxu0 %v1716
    %2269 = vmatpush.bf16.msra.mxu0 %v1715
    %2270 = vmatpush.bf16.msra.mxu0 %v1714
    %2271 = vmatpush.bf16.msra.mxu0 %v1713
    %2272 = vmatpush.bf16.msra.mxu0 %v1712
    %2273 = vmatpush.bf16.msra.mxu0 %v1711
    %2274 = vmatpush.bf16.msra.mxu0 %v1710
    %2275 = vmatmul.bf16.gmra.mxu0 %v555
    %v2276 = vpop.f32.mrf.mxu0
    %v2277 = vadd.f32 %v2264, %v2276
    %v2278 = vpop.f32.mrf.mxu0
    %2279 = vdwg.mxu0
    %2280 = vmatpush.bf16.msra.mxu0 %v1725
    %2281 = vmatpush.bf16.msra.mxu0 %v1724
    %2282 = vmatpush.bf16.msra.mxu0 %v1723
    %2283 = vmatpush.bf16.msra.mxu0 %v1722
    %2284 = vmatpush.bf16.msra.mxu0 %v1721
    %2285 = vmatpush.bf16.msra.mxu0 %v1720
    %2286 = vmatpush.bf16.msra.mxu0 %v1719
    %2287 = vmatpush.bf16.msra.mxu0 %v1718
    %2288 = vmatmul.bf16.gmra.mxu0 %v556
    %v2289 = vpop.f32.mrf.mxu0
    %v2290 = vadd.f32 %v2277, %v2289
    %v2291 = vpop.f32.mrf.mxu0
    %2292 = vdwg.mxu0
    %2293 = vmatpush.bf16.msra.mxu0 %v1733
    %2294 = vmatpush.bf16.msra.mxu0 %v1732
    %2295 = vmatpush.bf16.msra.mxu0 %v1731
    %2296 = vmatpush.bf16.msra.mxu0 %v1730
    %2297 = vmatpush.bf16.msra.mxu0 %v1729
    %2298 = vmatpush.bf16.msra.mxu0 %v1728
    %2299 = vmatpush.bf16.msra.mxu0 %v1727
    %2300 = vmatpush.bf16.msra.mxu0 %v1726
    %2301 = vmatmul.bf16.gmra.mxu0 %v557
    %v2302 = vpop.f32.mrf.mxu0
    %v2303 = vadd.f32 %v2290, %v2302
    %v2304 = vpop.f32.mrf.mxu0
    %2305 = vdwg.mxu0
    %2306 = vmatpush.bf16.msra.mxu0 %v1741
    %2307 = vmatpush.bf16.msra.mxu0 %v1740
    %2308 = vmatpush.bf16.msra.mxu0 %v1739
    %2309 = vmatpush.bf16.msra.mxu0 %v1738
    %2310 = vmatpush.bf16.msra.mxu0 %v1737
    %2311 = vmatpush.bf16.msra.mxu0 %v1736
    %2312 = vmatpush.bf16.msra.mxu0 %v1735
    %2313 = vmatpush.bf16.msra.mxu0 %v1734
    %2314 = vmatmul.bf16.gmra.mxu0 %v558
    %v2315 = vpop.f32.mrf.mxu0
    %v2316 = vadd.f32 %v2303, %v2315
    %v2317 = vpop.f32.mrf.mxu0
    %2318 = vdwg.mxu0
    %2319 = vmatpush.bf16.msra.mxu0 %v1749
    %2320 = vmatpush.bf16.msra.mxu0 %v1748
    %2321 = vmatpush.bf16.msra.mxu0 %v1747
    %2322 = vmatpush.bf16.msra.mxu0 %v1746
    %2323 = vmatpush.bf16.msra.mxu0 %v1745
    %2324 = vmatpush.bf16.msra.mxu0 %v1744
    %2325 = vmatpush.bf16.msra.mxu0 %v1743
    %2326 = vmatpush.bf16.msra.mxu0 %v1742
    %2327 = vmatmul.bf16.gmra.mxu0 %v559
    %v2328 = vpop.f32.mrf.mxu0
    %v2329 = vadd.f32 %v2316, %v2328
    %v2330 = vpop.f32.mrf.mxu0
    %2331 = vdwg.mxu0
    %2332 = vmatpush.bf16.msra.mxu0 %v1757
    %2333 = vmatpush.bf16.msra.mxu0 %v1756
    %2334 = vmatpush.bf16.msra.mxu0 %v1755
    %2335 = vmatpush.bf16.msra.mxu0 %v1754
    %2336 = vmatpush.bf16.msra.mxu0 %v1753
    %2337 = vmatpush.bf16.msra.mxu0 %v1752
    %2338 = vmatpush.bf16.msra.mxu0 %v1751
    %2339 = vmatpush.bf16.msra.mxu0 %v1750
    %2340 = vmatmul.bf16.gmra.mxu0 %v560
    %v2341 = vpop.f32.mrf.mxu0
    %v2342 = vadd.f32 %v2329, %v2341
    %v2343 = vpop.f32.mrf.mxu0
    %2344 = vdwg.mxu0
    %2345 = vmatpush.bf16.msra.mxu0 %v1765
    %2346 = vmatpush.bf16.msra.mxu0 %v1764
    %2347 = vmatpush.bf16.msra.mxu0 %v1763
    %2348 = vmatpush.bf16.msra.mxu0 %v1762
    %2349 = vmatpush.bf16.msra.mxu0 %v1761
    %2350 = vmatpush.bf16.msra.mxu0 %v1760
    %2351 = vmatpush.bf16.msra.mxu0 %v1759
    %2352 = vmatpush.bf16.msra.mxu0 %v1758
    %2353 = vmatmul.bf16.gmra.mxu0 %v561
    %v2354 = vpop.f32.mrf.mxu0
    %v2355 = vadd.f32 %v2342, %v2354
    %v2356 = vpop.f32.mrf.mxu0
    %2357 = vdwg.mxu0
    %2358 = vmatpush.bf16.msra.mxu0 %v1773
    %2359 = vmatpush.bf16.msra.mxu0 %v1772
    %2360 = vmatpush.bf16.msra.mxu0 %v1771
    %2361 = vmatpush.bf16.msra.mxu0 %v1770
    %2362 = vmatpush.bf16.msra.mxu0 %v1769
    %2363 = vmatpush.bf16.msra.mxu0 %v1768
    %2364 = vmatpush.bf16.msra.mxu0 %v1767
    %2365 = vmatpush.bf16.msra.mxu0 %v1766
    %2366 = vmatmul.bf16.gmra.mxu0 %v564
    %v2367 = vpop.f32.mrf.mxu0
    %v2368 = vadd.f32 %v2355, %v2367
    %v2369 = vpop.f32.mrf.mxu0
    %2370 = vdwg.mxu0
    %2371 = vmatpush.bf16.msra.mxu0 %v1781
    %2372 = vmatpush.bf16.msra.mxu0 %v1780
    %2373 = vmatpush.bf16.msra.mxu0 %v1779
    %2374 = vmatpush.bf16.msra.mxu0 %v1778
    %2375 = vmatpush.bf16.msra.mxu0 %v1777
    %2376 = vmatpush.bf16.msra.mxu0 %v1776
    %2377 = vmatpush.bf16.msra.mxu0 %v1775
    %2378 = vmatpush.bf16.msra.mxu0 %v1774
    %2379 = vmatmul.bf16.gmra.mxu0 %v565
    %v2380 = vpop.f32.mrf.mxu0
    %v2381 = vadd.f32 %v2368, %v2380
    %v2382 = vpop.f32.mrf.mxu0
    %2383 = vdwg.mxu0
    %2384 = vmatpush.bf16.msra.mxu0 %v1789
    %2385 = vmatpush.bf16.msra.mxu0 %v1788
    %2386 = vmatpush.bf16.msra.mxu0 %v1787
    %2387 = vmatpush.bf16.msra.mxu0 %v1786
    %2388 = vmatpush.bf16.msra.mxu0 %v1785
    %2389 = vmatpush.bf16.msra.mxu0 %v1784
    %2390 = vmatpush.bf16.msra.mxu0 %v1783
    %2391 = vmatpush.bf16.msra.mxu0 %v1782
    %2392 = vmatmul.bf16.gmra.mxu0 %v566
    %v2393 = vpop.f32.mrf.mxu0
    %v2394 = vadd.f32 %v2381, %v2393
    %v2395 = vpop.f32.mrf.mxu0
    %2396 = vdwg.mxu0
    %2397 = vmatpush.bf16.msra.mxu0 %v1797
    %2398 = vmatpush.bf16.msra.mxu0 %v1796
    %2399 = vmatpush.bf16.msra.mxu0 %v1795
    %2400 = vmatpush.bf16.msra.mxu0 %v1794
    %2401 = vmatpush.bf16.msra.mxu0 %v1793
    %2402 = vmatpush.bf16.msra.mxu0 %v1792
    %2403 = vmatpush.bf16.msra.mxu0 %v1791
    %2404 = vmatpush.bf16.msra.mxu0 %v1790
    %2405 = vmatmul.bf16.gmra.mxu0 %v567
    %v2406 = vpop.f32.mrf.mxu0
    %v2407 = vadd.f32 %v2394, %v2406
    %v2408 = vpop.f32.mrf.mxu0
    %2409 = vdwg.mxu0
    %2410 = vmatpush.bf16.msra.mxu0 %v1805
    %2411 = vmatpush.bf16.msra.mxu0 %v1804
    %2412 = vmatpush.bf16.msra.mxu0 %v1803
    %2413 = vmatpush.bf16.msra.mxu0 %v1802
    %2414 = vmatpush.bf16.msra.mxu0 %v1801
    %2415 = vmatpush.bf16.msra.mxu0 %v1800
    %2416 = vmatpush.bf16.msra.mxu0 %v1799
    %2417 = vmatpush.bf16.msra.mxu0 %v1798
    %2418 = vmatmul.bf16.gmra.mxu0 %v568
    %v2419 = vpop.f32.mrf.mxu0
    %v2420 = vadd.f32 %v2407, %v2419
    %v2421 = vpop.f32.mrf.mxu0
    %2422 = vdwg.mxu0
    %2423 = vmatpush.bf16.msra.mxu0 %v1813
    %2424 = vmatpush.bf16.msra.mxu0 %v1812
    %2425 = vmatpush.bf16.msra.mxu0 %v1811
    %2426 = vmatpush.bf16.msra.mxu0 %v1810
    %2427 = vmatpush.bf16.msra.mxu0 %v1809
    %2428 = vmatpush.bf16.msra.mxu0 %v1808
    %2429 = vmatpush.bf16.msra.mxu0 %v1807
    %2430 = vmatpush.bf16.msra.mxu0 %v1806
    %2431 = vmatmul.bf16.gmra.mxu0 %v569
    %v2432 = vpop.f32.mrf.mxu0
    %v2433 = vadd.f32 %v2420, %v2432
    %v2434 = vpop.f32.mrf.mxu0
    %2435 = vdwg.mxu0
    %2436 = vmatpush.bf16.msra.mxu0 %v1821
    %2437 = vmatpush.bf16.msra.mxu0 %v1820
    %2438 = vmatpush.bf16.msra.mxu0 %v1819
    %2439 = vmatpush.bf16.msra.mxu0 %v1818
    %2440 = vmatpush.bf16.msra.mxu0 %v1817
    %2441 = vmatpush.bf16.msra.mxu0 %v1816
    %2442 = vmatpush.bf16.msra.mxu0 %v1815
    %2443 = vmatpush.bf16.msra.mxu0 %v1814
    %2444 = vmatmul.bf16.gmra.mxu0 %v570
    %v2445 = vpop.f32.mrf.mxu0
    %v2446 = vadd.f32 %v2433, %v2445
    %v2447 = vpop.f32.mrf.mxu0
    %2448 = vdwg.mxu0
    %2449 = vmatpush.bf16.msra.mxu0 %v1829
    %2450 = vmatpush.bf16.msra.mxu0 %v1828
    %2451 = vmatpush.bf16.msra.mxu0 %v1827
    %2452 = vmatpush.bf16.msra.mxu0 %v1826
    %2453 = vmatpush.bf16.msra.mxu0 %v1825
    %2454 = vmatpush.bf16.msra.mxu0 %v1824
    %2455 = vmatpush.bf16.msra.mxu0 %v1823
    %2456 = vmatpush.bf16.msra.mxu0 %v1822
    %2457 = vmatmul.bf16.gmra.mxu0 %v571
    %v2458 = vpop.f32.mrf.mxu0
    %v2459 = vadd.f32 %v2446, %v2458
    %v2460 = vpop.f32.mrf.mxu0
    %2461 = vdwg.mxu0
    %2462 = vmatpush.bf16.msra.mxu0 %v1837
    %2463 = vmatpush.bf16.msra.mxu0 %v1836
    %2464 = vmatpush.bf16.msra.mxu0 %v1835
    %2465 = vmatpush.bf16.msra.mxu0 %v1834
    %2466 = vmatpush.bf16.msra.mxu0 %v1833
    %2467 = vmatpush.bf16.msra.mxu0 %v1832
    %2468 = vmatpush.bf16.msra.mxu0 %v1831
    %2469 = vmatpush.bf16.msra.mxu0 %v1830
    %2470 = vmatmul.bf16.gmra.mxu0 %v574
    %v2471 = vpop.f32.mrf.mxu0
    %v2472 = vadd.f32 %v2459, %v2471
    %v2473 = vpop.f32.mrf.mxu0
    %2474 = vdwg.mxu0
    %2475 = vmatpush.bf16.msra.mxu0 %v1845
    %2476 = vmatpush.bf16.msra.mxu0 %v1844
    %2477 = vmatpush.bf16.msra.mxu0 %v1843
    %2478 = vmatpush.bf16.msra.mxu0 %v1842
    %2479 = vmatpush.bf16.msra.mxu0 %v1841
    %2480 = vmatpush.bf16.msra.mxu0 %v1840
    %2481 = vmatpush.bf16.msra.mxu0 %v1839
    %2482 = vmatpush.bf16.msra.mxu0 %v1838
    %2483 = vmatmul.bf16.gmra.mxu0 %v575
    %v2484 = vpop.f32.mrf.mxu0
    %v2485 = vadd.f32 %v2472, %v2484
    %v2486 = vpop.f32.mrf.mxu0
    %2487 = vdwg.mxu0
    %2488 = vmatpush.bf16.msra.mxu0 %v1853
    %2489 = vmatpush.bf16.msra.mxu0 %v1852
    %2490 = vmatpush.bf16.msra.mxu0 %v1851
    %2491 = vmatpush.bf16.msra.mxu0 %v1850
    %2492 = vmatpush.bf16.msra.mxu0 %v1849
    %2493 = vmatpush.bf16.msra.mxu0 %v1848
    %2494 = vmatpush.bf16.msra.mxu0 %v1847
    %2495 = vmatpush.bf16.msra.mxu0 %v1846
    %2496 = vmatmul.bf16.gmra.mxu0 %v576
    %v2497 = vpop.f32.mrf.mxu0
    %v2498 = vadd.f32 %v2485, %v2497
    %v2499 = vpop.f32.mrf.mxu0
    %2500 = vdwg.mxu0
    %2501 = vmatpush.bf16.msra.mxu0 %v1861
    %2502 = vmatpush.bf16.msra.mxu0 %v1860
    %2503 = vmatpush.bf16.msra.mxu0 %v1859
    %2504 = vmatpush.bf16.msra.mxu0 %v1858
    %2505 = vmatpush.bf16.msra.mxu0 %v1857
    %2506 = vmatpush.bf16.msra.mxu0 %v1856
    %2507 = vmatpush.bf16.msra.mxu0 %v1855
    %2508 = vmatpush.bf16.msra.mxu0 %v1854
    %2509 = vmatmul.bf16.gmra.mxu0 %v577
    %v2510 = vpop.f32.mrf.mxu0
    %v2511 = vadd.f32 %v2498, %v2510
    %v2512 = vpop.f32.mrf.mxu0
    %2513 = vdwg.mxu0
    %2514 = vmatpush.bf16.msra.mxu0 %v1869
    %2515 = vmatpush.bf16.msra.mxu0 %v1868
    %2516 = vmatpush.bf16.msra.mxu0 %v1867
    %2517 = vmatpush.bf16.msra.mxu0 %v1866
    %2518 = vmatpush.bf16.msra.mxu0 %v1865
    %2519 = vmatpush.bf16.msra.mxu0 %v1864
    %2520 = vmatpush.bf16.msra.mxu0 %v1863
    %2521 = vmatpush.bf16.msra.mxu0 %v1862
    %2522 = vmatmul.bf16.gmra.mxu0 %v578
    %v2523 = vpop.f32.mrf.mxu0
    %v2524 = vadd.f32 %v2511, %v2523
    %v2525 = vpop.f32.mrf.mxu0
    %2526 = vdwg.mxu0
    %2527 = vmatpush.bf16.msra.mxu0 %v1877
    %2528 = vmatpush.bf16.msra.mxu0 %v1876
    %2529 = vmatpush.bf16.msra.mxu0 %v1875
    %2530 = vmatpush.bf16.msra.mxu0 %v1874
    %2531 = vmatpush.bf16.msra.mxu0 %v1873
    %2532 = vmatpush.bf16.msra.mxu0 %v1872
    %2533 = vmatpush.bf16.msra.mxu0 %v1871
    %2534 = vmatpush.bf16.msra.mxu0 %v1870
    %2535 = vmatmul.bf16.gmra.mxu0 %v579
    %v2536 = vpop.f32.mrf.mxu0
    %v2537 = vadd.f32 %v2524, %v2536
    %v2538 = vpop.f32.mrf.mxu0
    %2539 = vdwg.mxu0
    %2540 = vmatpush.bf16.msra.mxu0 %v1885
    %2541 = vmatpush.bf16.msra.mxu0 %v1884
    %2542 = vmatpush.bf16.msra.mxu0 %v1883
    %2543 = vmatpush.bf16.msra.mxu0 %v1882
    %2544 = vmatpush.bf16.msra.mxu0 %v1881
    %2545 = vmatpush.bf16.msra.mxu0 %v1880
    %2546 = vmatpush.bf16.msra.mxu0 %v1879
    %2547 = vmatpush.bf16.msra.mxu0 %v1878
    %2548 = vmatmul.bf16.gmra.mxu0 %v580
    %v2549 = vpop.f32.mrf.mxu0
    %v2550 = vadd.f32 %v2537, %v2549
    %v2551 = vpop.f32.mrf.mxu0
    %2552 = vdwg.mxu0
    %2553 = vmatpush.bf16.msra.mxu0 %v1893
    %2554 = vmatpush.bf16.msra.mxu0 %v1892
    %2555 = vmatpush.bf16.msra.mxu0 %v1891
    %2556 = vmatpush.bf16.msra.mxu0 %v1890
    %2557 = vmatpush.bf16.msra.mxu0 %v1889
    %2558 = vmatpush.bf16.msra.mxu0 %v1888
    %2559 = vmatpush.bf16.msra.mxu0 %v1887
    %2560 = vmatpush.bf16.msra.mxu0 %v1886
    %2561 = vmatmul.bf16.gmra.mxu0 %v581
    %v2562 = vpop.f32.mrf.mxu0
    %v2563 = vadd.f32 %v2550, %v2562
    %v2564 = vpop.f32.mrf.mxu0
    %2565 = vdwg.mxu0
    %v2566 = vmax.f32 %v2563, 0.0
    %v2567 = vpack.c.bf16 %v2566, %v2566
    %v2568 = vld [vmem:[%s3] sm:$0xf]
    %v2569 = vld [vmem:[%s3 + $0x4] sm:$0xf]
    %v2570 = vld [vmem:[%s3 + $0x8] sm:$0xf]
    %v2571 = vld [vmem:[%s3 + $0xc] sm:$0xf]
    %v2572 = vld [vmem:[%s3 + $0x10] sm:$0xf]
    %v2573 = vld [vmem:[%s3 + $0x14] sm:$0xf]
    %v2574 = vld [vmem:[%s3 + $0x18] sm:$0xf]
    %v2575 = vld [vmem:[%s3 + $0x1c] sm:$0xf]
    %v2576 = vld [vmem:[%s4] sm:$0x1]
    %v2578 = vperm.slane %v2576, 0
    %v2588 = vunpack.c.l.b16 %v2568
    %v2589 = vunpack.c.l.b16 %v2569
    %v2590 = vunpack.c.l.b16 %v2570
    %v2591 = vunpack.c.l.b16 %v2571
    %v2592 = vunpack.c.l.b16 %v2572
    %v2593 = vunpack.c.l.b16 %v2573
    %v2594 = vunpack.c.l.b16 %v2574
    %v2595 = vunpack.c.l.b16 %v2575
    %v2596 = vpack.c.b16 %v2589, %v2588
    %v2597 = vpack.c.b16 %v2591, %v2590
    %v2598 = vpack.c.b16 %v2593, %v2592
    %v2599 = vpack.c.b16 %v2595, %v2594
    %vm2604 = vcmask 523264
    %v2606 = vsel %vm2604, %v2567, 0
    %2608 = vmatpush.bf16.msra.mxu0 0
    %2609 = vmatpush.bf16.msra.mxu0 0
    %2610 = vmatpush.bf16.msra.mxu0 0
    %2611 = vmatpush.bf16.msra.mxu0 0
    %2612 = vmatpush.bf16.msra.mxu0 %v2599
    %2613 = vmatpush.bf16.msra.mxu0 %v2598
    %2614 = vmatpush.bf16.msra.mxu0 %v2597
    %2615 = vmatpush.bf16.msra.mxu0 %v2596
    %2616 = vmatmul.bf16.gmra.mxu0 %v2606
    %v2617 = vpop.f32.mrf.mxu0
    %v2618 = vadd.f32 %v2578, %v2617
    %v2619 = vpop.f32.mrf.mxu0
    %2620 = vdwg.mxu0
    %vm2621 = vcmask 74752
    %2622 = vst.msk [vmem:[#allocation2] sm:$0x3] %vm2621, %v2618
    // Predicated region
    $region22: #{complex_cnn_forward.5} parent=1 // pred_check
      _
    $region23: #{complex_cnn_forward.5} parent=1 // pred_check_branch
      %2624 = sbr.rel (0) target = $region25
    $region24: #{complex_cnn_forward.5} parent=1 // pred_region
      %2626 = vsyncadd [#allocation3], 0
      %s2628 = sshll.u32 [#allocation2], 4
      %s2629 = int_to_ptr.vmem [resolvable:$true] %s2628
      %s2630 = sshll.u32 %s5, 4
      %s2631 = int_to_ptr.hbm [resolvable:$true] %s2630
      %2633 = dma.vmem_to_hbm [thread:$0]  %s2629, 32, %s2631, [#allocation3]
    $region25: #{complex_cnn_forward.5} parent=1 // pred_fallthru
      _
    // Predicated region
    $region26: #{complex_cnn_forward.5} parent=1 // pred_check
      _
    $region27: #{complex_cnn_forward.5} parent=1 // pred_check_branch
      %2635 = sbr.rel (0) target = $region29
    $region28: #{complex_cnn_forward.5} parent=1 // pred_region
      %2637 = dma.done [#allocation3], 32
    $region29: #{complex_cnn_forward.5} parent=1 // pred_fallthru
      _
    %2638 = vsyncpa [#allocation3], 1

</llo_original>
